<compile_context>
chip_gen: v6e
topology: v6e:2x2x1
jax: 0.10.0
libtpu: 0.0.40
codegen_flags: <defaults>
</compile_context>

<pallas_src>
import functools

import jax
import jax.numpy as jnp
import numpy as np
from jax.experimental import pallas as pl
from jax.experimental.pallas import tpu as pltpu


def _fused_singlelayer_kernel(x_ref, w1s_ref, b1_ref, w2t_ref, b2_ref, o_ref,
                              xpad_ref, s1_ref, hpad_ref,
                              *, H, W, ks, B, origin, apply_tanh, apply_sig):
    """conv1 -> conv2 -> [tanh] -> [sigmoid] for the B images of one grid step.

    x_ref    : (B, c0, H*W)        images, NCHW with HW flattened (lane-dense)
    w1s_ref  : (inc, ks*ks*c0)     conv1 weights, stacked-tap layout, bf16
    b1_ref   : (inc, 1)            f32
    w2t_ref  : (ks*ks, ouc, inc)   conv2 weights, per-tap layout, bf16
    b2_ref   : (ouc, 1)            f32
    o_ref    : (B, ouc, H*W)       lane-dense output
    xpad_ref : (c0, Lp)  f32 VMEM  flat H-padded image; interior starts at `origin`
    s1_ref   : (ks*ks*c0, H*W) f32 VMEM  stacked conv1 taps (one K=ks*ks*c0 matmul)
    hpad_ref : (inc, Lp) bf16 VMEM flat H-padded conv1 output (fused intermediate)
    """
    HW = H * W
    pw = ks // 2
    off = pw * W + pw                      # flat shift of the 'same' padding origin
    c0 = x_ref.shape[1]
    inc = w1s_ref.shape[0]
    ouc = w2t_ref.shape[1]
    Lp = xpad_ref.shape[1]

    # ---- per-step setup, shared by all B images (hoisted out of every loop) ----
    # Column index (j mod W) of every flattened output position.  Used to zero taps
    # that would otherwise wrap across an image row (the 'same' W-padding columns).
    j = jax.lax.broadcasted_iota(jnp.int32, (1, HW), 1)
    col = jnp.bitwise_and(j, W - 1) if (W & (W - 1)) == 0 else j % W
    edge_mask = {}                         # lo = pw - kw  ->  keep-mask (1, HW)
    for kw in range(ks):
        lo = pw - kw
        if lo > 0:
            edge_mask[lo] = col >= lo      # left-edge wrap
        elif lo < 0:
            edge_mask[lo] = col < W + lo   # right-edge wrap

    # Zero only the padding borders; the [origin, origin+HW) interior is fully
    # rewritten for every image.  Done once per grid step (cheap), and NOT gated on
    # program_id==0: with a core-sharded parallel grid (v7x) every core must see
    # zeroed borders in its own scratch.
    if origin > 0:
        xpad_ref[:, :origin] = jnp.zeros((c0, origin), xpad_ref.dtype)
        xpad_ref[:, origin + HW:] = jnp.zeros((c0, Lp - origin - HW), xpad_ref.dtype)
        hpad_ref[:, :origin] = jnp.zeros((inc, origin), hpad_ref.dtype)
        hpad_ref[:, origin + HW:] = jnp.zeros((inc, Lp - origin - HW), hpad_ref.dtype)

    base = origin - off    # tap (kh,kw) of output column j reads flat index base + kh*W + kw + j

    for b in range(B):     # static unroll over the images of this grid step
        # ---------- conv1: stack the ks*ks taps -> ONE MXU matmul (K = ks*ks*c0) ----------
        xpad_ref[:, origin:origin + HW] = x_ref[b].astype(xpad_ref.dtype)   # lane-aligned store
        for kh in range(ks):
            for kw in range(ks):
                t = kh * ks + kw
                s = base + kh * W + kw
                tap = xpad_ref[:, s:s + HW]                    # (c0, HW) f32
                lo = pw - kw
                if lo != 0:
                    tap = jnp.where(edge_mask[lo], tap, 0.0)   # mask the small (Cin) side
                s1_ref[t * c0:(t + 1) * c0, :] = tap
        h1 = jnp.dot(w1s_ref[...], s1_ref[...].astype(jnp.bfloat16),
                     preferred_element_type=jnp.float32)       # (inc, HW) f32 accumulation
        h1 = h1 + b1_ref[...]

        # ---------- conv2: per-tap matmuls straight off the padded bf16 intermediate ----------
        # ouc << inc, so the row-wrap mask is applied to the (ouc, HW) tap *result*;
        # exact by linearity (mask is per output column, contraction is over channels).
        hpad_ref[:, origin:origin + HW] = h1.astype(hpad_ref.dtype)         # lane-aligned store
        partials = [None, None, None]      # independent chains -> overlapped MXU pops
        for kh in range(ks):
            for kw in range(ks):
                t = kh * ks + kw
                s = base + kh * W + kw
                tap = hpad_ref[:, s:s + HW]                                   # (inc, HW) bf16
                yt = jnp.dot(w2t_ref[t], tap, preferred_element_type=jnp.float32)  # (ouc, HW)
                lo = pw - kw
                if lo != 0:
                    yt = jnp.where(edge_mask[lo], yt, 0.0)
                slot = t % len(partials)
                partials[slot] = yt if partials[slot] is None else partials[slot] + yt
        y = partials[0]
        for p in partials[1:]:
            if p is not None:
                y = y + p
        y = y + b2_ref[...]

        # ---------- fused activation tail (f32 on the EUP) ----------
        if apply_tanh and apply_sig:
            # sigmoid(tanh(y)) == 0.5 * (tanh(tanh(y) / 2) + 1)  (exact identity)
            y = 0.5 * (jnp.tanh(0.5 * jnp.tanh(y)) + 1.0)
        elif apply_tanh:
            y = jnp.tanh(y)
        elif apply_sig:
            y = jax.nn.sigmoid(y)

        o_ref[b] = y.astype(o_ref.dtype)


def _pick_batch_block(n, max_block=8):
    """Largest divisor of n that is <= max_block while keeping >= 2 grid steps
    (two parallel steps let the runtime use both TensorCores on v7x)."""
    divisors = [d for d in range(1, n + 1) if n % d == 0 and d <= max_block]
    two_step = [d for d in divisors if n // d >= 2]
    return max(two_step) if two_step else max(divisors)


def single_layer_forward(x_nchw, w1, b1, w2, b2, *, kernel_size,
                         tanh=False, sig=False, max_batch_block=8):
    """x: (N, 3, H, W) f32 NCHW.  w1: (inc, 3, ks, ks), w2: (ouc, inc, ks, ks) (PyTorch OIHW)."""
    N, c0, H, W = x_nchw.shape
    inc = w1.shape[0]
    ouc = w2.shape[0]
    ks = kernel_size
    assert ks % 2 == 1, "even kernel_size: PyTorch pad=k//2 differs from SAME padding"
    assert w1.shape == (inc, c0, ks, ks) and w2.shape == (ouc, inc, ks, ks)
    HW = H * W
    pw = ks // 2
    off = pw * W + pw
    origin = ((off + 127) // 128) * 128 if off > 0 else 0   # lane-aligned interior start
    Lp = 2 * origin + HW if origin > 0 else HW

    B = _pick_batch_block(N, max_batch_block)
    steps = N // B

    # Host-side (outside the kernel) weight prep — tiny and one-shot:
    #   conv1: stacked-tap layout (Cout, ks*ks*Cin), row index t*Cin + ci, t = kh*ks + kw
    #   conv2: per-tap layout (ks*ks, Cout, Cin)
    # MXU operands in bf16; biases (and all VPU/EUP math) stay f32.
    w1s = jnp.transpose(w1, (0, 2, 3, 1)).reshape(inc, ks * ks * c0).astype(jnp.bfloat16)
    w2t = jnp.transpose(w2, (2, 3, 0, 1)).reshape(ks * ks, ouc, inc).astype(jnp.bfloat16)
    b1c = jnp.asarray(b1, jnp.float32).reshape(inc, 1)
    b2c = jnp.asarray(b2, jnp.float32).reshape(ouc, 1)

    x_flat = x_nchw.reshape(N, c0, HW)      # row-major reshape: no data movement

    kernel = functools.partial(_fused_singlelayer_kernel, H=H, W=W, ks=ks, B=B,
                               origin=origin, apply_tanh=tanh, apply_sig=sig)

    y = pl.pallas_call(
        kernel,
        out_shape=jax.ShapeDtypeStruct((N, ouc, HW), x_nchw.dtype),
        grid=(steps,),
        in_specs=[
            pl.BlockSpec((B, c0, HW), lambda n: (n, 0, 0)),
            pl.BlockSpec((inc, ks * ks * c0), lambda n: (0, 0)),
            pl.BlockSpec((inc, 1), lambda n: (0, 0)),
            pl.BlockSpec((ks * ks, ouc, inc), lambda n: (0, 0, 0)),
            pl.BlockSpec((ouc, 1), lambda n: (0, 0)),
        ],
        out_specs=pl.BlockSpec((B, ouc, HW), lambda n: (n, 0, 0)),
        scratch_shapes=[
            pltpu.VMEM((c0, Lp), jnp.float32),            # flat H-padded input image
            pltpu.VMEM((ks * ks * c0, HW), jnp.float32),  # stacked conv1 taps
            pltpu.VMEM((inc, Lp), jnp.bfloat16),          # flat H-padded conv1 output
        ],
        compiler_params=pltpu.CompilerParams(dimension_semantics=("parallel",)),
    )(x_flat, w1s, b1c, w2t, b2c)

    return y.reshape(N, ouc, H, W)          # row-major reshape: no data movement


class SingleLayerPallas:
    """Mirrors models/augment_network.py::SingleLayer forward (weights kept in PyTorch OIHW)."""

    def __init__(self, inc=32, ouc=3, kernel_size=3, tanh=False, sig=False, key=None):
        assert kernel_size % 2 == 1, "only odd kernel_size matches PyTorch pad=k//2"
        if key is None:
            key = jax.random.PRNGKey(0)
        k1, k2, k3, k4 = jax.random.split(key, 4)
        ks = kernel_size
        u1 = 1.0 / np.sqrt(3 * ks * ks)
        u2 = 1.0 / np.sqrt(inc * ks * ks)
        self.w1 = jax.random.uniform(k1, (inc, 3, ks, ks), jnp.float32, -u1, u1)
        self.b1 = jax.random.uniform(k2, (inc,), jnp.float32, -u1, u1)
        self.w2 = jax.random.uniform(k3, (ouc, inc, ks, ks), jnp.float32, -u2, u2)
        self.b2 = jax.random.uniform(k4, (ouc,), jnp.float32, -u2, u2)
        self.ks = ks
        self.tanh = tanh
        self.sig = sig

    def __call__(self, x_nchw):
        return single_layer_forward(x_nchw, self.w1, self.b1, self.w2, self.b2,
                                    kernel_size=self.ks, tanh=self.tanh, sig=self.sig)


def _reference_forward(model, x_nchw):
    """Pure-JAX f32 reference (lax.conv) for sanity checking the fused Pallas kernel."""
    def conv(x, w, b):
        y = jax.lax.conv_general_dilated(
            x, w, window_strides=(1, 1), padding="SAME",
            dimension_numbers=("NCHW", "OIHW", "NCHW"))
        return y + b.reshape(1, -1, 1, 1)

    y = conv(x_nchw, model.w1, model.b1)
    y = conv(y, model.w2, model.b2)
    if model.tanh:
        y = jnp.tanh(y)
    if model.sig:
        y = jax.nn.sigmoid(y)
    return y


if __name__ == "__main__":
    key = jax.random.PRNGKey(0)
    kx, kp = jax.random.split(key)

    # conv1 requires 3 input channels (per the PyTorch module).
    N, C, H, W = 8, 3, 16, 16                    # 8 images -> 2 parallel grid steps of 4
    x = jax.random.normal(kx, (N, C, H, W), jnp.float32)

    # Default config (tanh=False, sig=False).
    model = SingleLayerPallas(inc=32, ouc=3, kernel_size=3, tanh=False, sig=False, key=kp)
    out = jax.block_until_ready(model(x))
    ref = jax.block_until_ready(_reference_forward(model, x))
    assert out.shape == (N, 3, H, W), out.shape
    # bf16 MXU operands / bf16 fused intermediate (f32 accumulation) -> relaxed tolerance
    # vs. the all-f32 lax.conv reference, as flagged in the perf review.
    np.testing.assert_allclose(np.asarray(out), np.asarray(ref), atol=3e-2, rtol=3e-2)

    # Also exercise the fused tanh+sigmoid tail and a small batch (1 image per step).
    model2 = SingleLayerPallas(inc=32, ouc=3, kernel_size=3, tanh=True, sig=True, key=kp)
    x2 = x[:2]
    out2 = jax.block_until_ready(model2(x2))
    ref2 = jax.block_until_ready(_reference_forward(model2, x2))
    np.testing.assert_allclose(np.asarray(out2), np.asarray(ref2), atol=3e-2, rtol=3e-2)

    print("KERNEL_OK")
</pallas_src>

<mosaic_0001>
module attributes {stable_mosaic.version = 11 : i64} {
  func.func @_fused_singlelayer_kernel(%arg0: i32, %arg1: memref<4x3x256xf32, #tpu.memory_space<vmem>>, %arg2: memref<32x27xbf16, #tpu.memory_space<vmem>>, %arg3: memref<32x1xf32, #tpu.memory_space<vmem>>, %arg4: memref<9x3x32xbf16, #tpu.memory_space<vmem>>, %arg5: memref<3x1xf32, #tpu.memory_space<vmem>>, %arg6: memref<4x3x256xf32, #tpu.memory_space<vmem>>, %arg7: memref<3x512xf32, #tpu.memory_space<vmem>>, %arg8: memref<27x256xf32, #tpu.memory_space<vmem>>, %arg9: memref<32x512xbf16, #tpu.memory_space<vmem>>) attributes {dimension_semantics = [#tpu.dimension_semantics<parallel>], iteration_bounds = array<i64: 2>, scalar_prefetch = 0 : i64, scratch_operands = 3 : i64, tpu.core_type = #tpu.core_type<tc>, window_params = [{transform_indices = @transform_0, window_bounds = array<i64: 4, 3, 256>}, {pipeline_mode = #tpu.pipeline_mode<synchronous>, transform_indices = @transform_1, window_bounds = array<i64: 32, 27>}, {pipeline_mode = #tpu.pipeline_mode<synchronous>, transform_indices = @transform_2, window_bounds = array<i64: 32, 1>}, {pipeline_mode = #tpu.pipeline_mode<synchronous>, transform_indices = @transform_3, window_bounds = array<i64: 9, 3, 32>}, {pipeline_mode = #tpu.pipeline_mode<synchronous>, transform_indices = @transform_4, window_bounds = array<i64: 3, 1>}, {transform_indices = @transform_5, window_bounds = array<i64: 4, 3, 256>}]} {
    %0 = tpu.iota {dimensions = array<i32: 1>} : vector<1x256xi32>
    %c15_i32 = arith.constant 15 : i32
    %1 = vector.broadcast %c15_i32 : i32 to vector<1x256xi32>
    %2 = arith.andi %0, %1 : vector<1x256xi32>
    %c1_i32 = arith.constant 1 : i32
    %3 = vector.broadcast %c1_i32 : i32 to vector<1x256xi32>
    %4 = arith.cmpi sge, %2, %3 : vector<1x256xi32>
    %c15_i32_0 = arith.constant 15 : i32
    %5 = vector.broadcast %c15_i32_0 : i32 to vector<1x256xi32>
    %6 = arith.cmpi slt, %2, %5 : vector<1x256xi32>
    %cst = arith.constant 0.000000e+00 : f32
    %7 = vector.broadcast %cst : f32 to vector<3x128xf32>
    %c0 = arith.constant 0 : index
    %c0_1 = arith.constant 0 : index
    %8 = vector.load %arg7[%c0, %c0_1] : memref<3x512xf32, #tpu.memory_space<vmem>>, vector<3x128xf32>
    tpu.vector_store %arg7[%c0, %c0_1], %7 {strides = array<i32>} : memref<3x512xf32, #tpu.memory_space<vmem>>, vector<3x128xf32>,
    %cst_2 = arith.constant 0.000000e+00 : f32
    %9 = vector.broadcast %cst_2 : f32 to vector<3x128xf32>
    %c0_3 = arith.constant 0 : index
    %c384 = arith.constant 384 : index
    %10 = vector.load %arg7[%c0_3, %c384] : memref<3x512xf32, #tpu.memory_space<vmem>>, vector<3x128xf32>
    tpu.vector_store %arg7[%c0_3, %c384], %9 {strides = array<i32>} : memref<3x512xf32, #tpu.memory_space<vmem>>, vector<3x128xf32>,
    %cst_4 = arith.constant 0.000000e+00 : bf16
    %11 = vector.broadcast %cst_4 : bf16 to vector<32x128xbf16>
    %c0_5 = arith.constant 0 : index
    %c0_6 = arith.constant 0 : index
    %12 = vector.load %arg9[%c0_5, %c0_6] : memref<32x512xbf16, #tpu.memory_space<vmem>>, vector<32x128xbf16>
    tpu.vector_store %arg9[%c0_5, %c0_6], %11 {strides = array<i32>} : memref<32x512xbf16, #tpu.memory_space<vmem>>, vector<32x128xbf16>,
    %cst_7 = arith.constant 0.000000e+00 : bf16
    %13 = vector.broadcast %cst_7 : bf16 to vector<32x128xbf16>
    %c0_8 = arith.constant 0 : index
    %c384_9 = arith.constant 384 : index
    %14 = vector.load %arg9[%c0_8, %c384_9] : memref<32x512xbf16, #tpu.memory_space<vmem>>, vector<32x128xbf16>
    tpu.vector_store %arg9[%c0_8, %c384_9], %13 {strides = array<i32>} : memref<32x512xbf16, #tpu.memory_space<vmem>>, vector<32x128xbf16>,
    %c0_10 = arith.constant 0 : index
    %c0_11 = arith.constant 0 : index
    %c0_12 = arith.constant 0 : index
    %15 = vector.load %arg1[%c0_10, %c0_11, %c0_12] : memref<4x3x256xf32, #tpu.memory_space<vmem>>, vector<1x3x256xf32>
    %16 = vector.shape_cast %15 : vector<1x3x256xf32> to vector<3x256xf32>
    %c0_13 = arith.constant 0 : index
    %c128 = arith.constant 128 : index
    %17 = vector.load %arg7[%c0_13, %c128] : memref<3x512xf32, #tpu.memory_space<vmem>>, vector<3x256xf32>
    tpu.vector_store %arg7[%c0_13, %c128], %16 {strides = array<i32>} : memref<3x512xf32, #tpu.memory_space<vmem>>, vector<3x256xf32>,
    %c0_14 = arith.constant 0 : index
    %c111 = arith.constant 111 : index
    %18 = vector.load %arg7[%c0_14, %c111] : memref<3x512xf32, #tpu.memory_space<vmem>>, vector<3x256xf32>
    %cst_15 = arith.constant 0.000000e+00 : f32
    %19 = vector.shape_cast %4 : vector<1x256xi1> to vector<1x256xi1>
    %20 = vector.broadcast %19 : vector<1x256xi1> to vector<3x256xi1>
    %21 = vector.broadcast %cst_15 : f32 to vector<3x256xf32>
    %22 = arith.select %20, %18, %21 : vector<3x256xi1>, vector<3x256xf32>
    %c0_16 = arith.constant 0 : index
    %c0_17 = arith.constant 0 : index
    %23 = vector.load %arg8[%c0_16, %c0_17] : memref<27x256xf32, #tpu.memory_space<vmem>>, vector<3x256xf32>
    tpu.vector_store %arg8[%c0_16, %c0_17], %22 {strides = array<i32>} : memref<27x256xf32, #tpu.memory_space<vmem>>, vector<3x256xf32>,
    %c0_18 = arith.constant 0 : index
    %c112 = arith.constant 112 : index
    %24 = vector.load %arg7[%c0_18, %c112] : memref<3x512xf32, #tpu.memory_space<vmem>>, vector<3x256xf32>
    %c3 = arith.constant 3 : index
    %c0_19 = arith.constant 0 : index
    %25 = vector.load %arg8[%c3, %c0_19] : memref<27x256xf32, #tpu.memory_space<vmem>>, vector<3x256xf32>
    tpu.vector_store %arg8[%c3, %c0_19], %24 {strides = array<i32>} : memref<27x256xf32, #tpu.memory_space<vmem>>, vector<3x256xf32>,
    %c0_20 = arith.constant 0 : index
    %c113 = arith.constant 113 : index
    %26 = vector.load %arg7[%c0_20, %c113] : memref<3x512xf32, #tpu.memory_space<vmem>>, vector<3x256xf32>
    %cst_21 = arith.constant 0.000000e+00 : f32
    %27 = vector.shape_cast %6 : vector<1x256xi1> to vector<1x256xi1>
    %28 = vector.broadcast %27 : vector<1x256xi1> to vector<3x256xi1>
    %29 = vector.broadcast %cst_21 : f32 to vector<3x256xf32>
    %30 = arith.select %28, %26, %29 : vector<3x256xi1>, vector<3x256xf32>
    %c6 = arith.constant 6 : index
    %c0_22 = arith.constant 0 : index
    %31 = vector.load %arg8[%c6, %c0_22] : memref<27x256xf32, #tpu.memory_space<vmem>>, vector<3x256xf32>
    tpu.vector_store %arg8[%c6, %c0_22], %30 {strides = array<i32>} : memref<27x256xf32, #tpu.memory_space<vmem>>, vector<3x256xf32>,
    %c0_23 = arith.constant 0 : index
    %c127 = arith.constant 127 : index
    %32 = vector.load %arg7[%c0_23, %c127] : memref<3x512xf32, #tpu.memory_space<vmem>>, vector<3x256xf32>
    %cst_24 = arith.constant 0.000000e+00 : f32
    %33 = vector.shape_cast %4 : vector<1x256xi1> to vector<1x256xi1>
    %34 = vector.broadcast %33 : vector<1x256xi1> to vector<3x256xi1>
    %35 = vector.broadcast %cst_24 : f32 to vector<3x256xf32>
    %36 = arith.select %34, %32, %35 : vector<3x256xi1>, vector<3x256xf32>
    %c9 = arith.constant 9 : index
    %c0_25 = arith.constant 0 : index
    %37 = vector.load %arg8[%c9, %c0_25] : memref<27x256xf32, #tpu.memory_space<vmem>>, vector<3x256xf32>
    tpu.vector_store %arg8[%c9, %c0_25], %36 {strides = array<i32>} : memref<27x256xf32, #tpu.memory_space<vmem>>, vector<3x256xf32>,
    %c0_26 = arith.constant 0 : index
    %c128_27 = arith.constant 128 : index
    %38 = vector.load %arg7[%c0_26, %c128_27] : memref<3x512xf32, #tpu.memory_space<vmem>>, vector<3x256xf32>
    %c12 = arith.constant 12 : index
    %c0_28 = arith.constant 0 : index
    %39 = vector.load %arg8[%c12, %c0_28] : memref<27x256xf32, #tpu.memory_space<vmem>>, vector<3x256xf32>
    tpu.vector_store %arg8[%c12, %c0_28], %38 {strides = array<i32>} : memref<27x256xf32, #tpu.memory_space<vmem>>, vector<3x256xf32>,
    %c0_29 = arith.constant 0 : index
    %c129 = arith.constant 129 : index
    %40 = vector.load %arg7[%c0_29, %c129] : memref<3x512xf32, #tpu.memory_space<vmem>>, vector<3x256xf32>
    %cst_30 = arith.constant 0.000000e+00 : f32
    %41 = vector.shape_cast %6 : vector<1x256xi1> to vector<1x256xi1>
    %42 = vector.broadcast %41 : vector<1x256xi1> to vector<3x256xi1>
    %43 = vector.broadcast %cst_30 : f32 to vector<3x256xf32>
    %44 = arith.select %42, %40, %43 : vector<3x256xi1>, vector<3x256xf32>
    %c15 = arith.constant 15 : index
    %c0_31 = arith.constant 0 : index
    %45 = vector.load %arg8[%c15, %c0_31] : memref<27x256xf32, #tpu.memory_space<vmem>>, vector<3x256xf32>
    tpu.vector_store %arg8[%c15, %c0_31], %44 {strides = array<i32>} : memref<27x256xf32, #tpu.memory_space<vmem>>, vector<3x256xf32>,
    %c0_32 = arith.constant 0 : index
    %c143 = arith.constant 143 : index
    %46 = vector.load %arg7[%c0_32, %c143] : memref<3x512xf32, #tpu.memory_space<vmem>>, vector<3x256xf32>
    %cst_33 = arith.constant 0.000000e+00 : f32
    %47 = vector.shape_cast %4 : vector<1x256xi1> to vector<1x256xi1>
    %48 = vector.broadcast %47 : vector<1x256xi1> to vector<3x256xi1>
    %49 = vector.broadcast %cst_33 : f32 to vector<3x256xf32>
    %50 = arith.select %48, %46, %49 : vector<3x256xi1>, vector<3x256xf32>
    %c18 = arith.constant 18 : index
    %c0_34 = arith.constant 0 : index
    %51 = vector.load %arg8[%c18, %c0_34] : memref<27x256xf32, #tpu.memory_space<vmem>>, vector<3x256xf32>
    tpu.vector_store %arg8[%c18, %c0_34], %50 {strides = array<i32>} : memref<27x256xf32, #tpu.memory_space<vmem>>, vector<3x256xf32>,
    %c0_35 = arith.constant 0 : index
    %c144 = arith.constant 144 : index
    %52 = vector.load %arg7[%c0_35, %c144] : memref<3x512xf32, #tpu.memory_space<vmem>>, vector<3x256xf32>
    %c21 = arith.constant 21 : index
    %c0_36 = arith.constant 0 : index
    %53 = vector.load %arg8[%c21, %c0_36] : memref<27x256xf32, #tpu.memory_space<vmem>>, vector<3x256xf32>
    tpu.vector_store %arg8[%c21, %c0_36], %52 {strides = array<i32>} : memref<27x256xf32, #tpu.memory_space<vmem>>, vector<3x256xf32>,
    %c0_37 = arith.constant 0 : index
    %c145 = arith.constant 145 : index
    %54 = vector.load %arg7[%c0_37, %c145] : memref<3x512xf32, #tpu.memory_space<vmem>>, vector<3x256xf32>
    %cst_38 = arith.constant 0.000000e+00 : f32
    %55 = vector.shape_cast %6 : vector<1x256xi1> to vector<1x256xi1>
    %56 = vector.broadcast %55 : vector<1x256xi1> to vector<3x256xi1>
    %57 = vector.broadcast %cst_38 : f32 to vector<3x256xf32>
    %58 = arith.select %56, %54, %57 : vector<3x256xi1>, vector<3x256xf32>
    %c24 = arith.constant 24 : index
    %c0_39 = arith.constant 0 : index
    %59 = vector.load %arg8[%c24, %c0_39] : memref<27x256xf32, #tpu.memory_space<vmem>>, vector<3x256xf32>
    tpu.vector_store %arg8[%c24, %c0_39], %58 {strides = array<i32>} : memref<27x256xf32, #tpu.memory_space<vmem>>, vector<3x256xf32>,
    %c0_40 = arith.constant 0 : index
    %c0_41 = arith.constant 0 : index
    %60 = vector.load %arg2[%c0_40, %c0_41] : memref<32x27xbf16, #tpu.memory_space<vmem>>, vector<32x27xbf16>
    %c0_42 = arith.constant 0 : index
    %c0_43 = arith.constant 0 : index
    %61 = vector.load %arg8[%c0_42, %c0_43] : memref<27x256xf32, #tpu.memory_space<vmem>>, vector<27x256xf32>
    %62 = arith.truncf %61 : vector<27x256xf32> to vector<27x256xbf16>
    %cst_44 = arith.constant dense<0.000000e+00> : vector<32x256xf32>
    %63 = tpu.matmul %60, %62, %cst_44 {dimension_numbers = #tpu.dot_dimension_numbers<[1], [0], [0], [1], [0, 0, 1, 1], [], []>} : vector<32x27xbf16>, vector<27x256xbf16>, vector<32x256xf32> -> vector<32x256xf32>
    %c0_45 = arith.constant 0 : index
    %c0_46 = arith.constant 0 : index
    %64 = vector.load %arg3[%c0_45, %c0_46] : memref<32x1xf32, #tpu.memory_space<vmem>>, vector<32x1xf32>
    %65 = vector.broadcast %64 : vector<32x1xf32> to vector<32x256xf32>
    %66 = arith.addf %63, %65 : vector<32x256xf32>
    %67 = arith.truncf %66 : vector<32x256xf32> to vector<32x256xbf16>
    %c0_47 = arith.constant 0 : index
    %c128_48 = arith.constant 128 : index
    %68 = vector.load %arg9[%c0_47, %c128_48] : memref<32x512xbf16, #tpu.memory_space<vmem>>, vector<32x256xbf16>
    tpu.vector_store %arg9[%c0_47, %c128_48], %67 {strides = array<i32>} : memref<32x512xbf16, #tpu.memory_space<vmem>>, vector<32x256xbf16>,
    %c0_49 = arith.constant 0 : index
    %c111_50 = arith.constant 111 : index
    %69 = vector.load %arg9[%c0_49, %c111_50] : memref<32x512xbf16, #tpu.memory_space<vmem>>, vector<32x256xbf16>
    %c0_51 = arith.constant 0 : index
    %c0_52 = arith.constant 0 : index
    %c0_53 = arith.constant 0 : index
    %70 = vector.load %arg4[%c0_51, %c0_52, %c0_53] : memref<9x3x32xbf16, #tpu.memory_space<vmem>>, vector<1x3x32xbf16>
    %71 = vector.shape_cast %70 : vector<1x3x32xbf16> to vector<3x32xbf16>
    %cst_54 = arith.constant dense<0.000000e+00> : vector<3x256xf32>
    %72 = tpu.matmul %71, %69, %cst_54 {dimension_numbers = #tpu.dot_dimension_numbers<[1], [0], [0], [1], [0, 0, 1, 1], [], []>} : vector<3x32xbf16>, vector<32x256xbf16>, vector<3x256xf32> -> vector<3x256xf32>
    %cst_55 = arith.constant 0.000000e+00 : f32
    %73 = vector.shape_cast %4 : vector<1x256xi1> to vector<1x256xi1>
    %74 = vector.broadcast %73 : vector<1x256xi1> to vector<3x256xi1>
    %75 = vector.broadcast %cst_55 : f32 to vector<3x256xf32>
    %76 = arith.select %74, %72, %75 : vector<3x256xi1>, vector<3x256xf32>
    %c0_56 = arith.constant 0 : index
    %c112_57 = arith.constant 112 : index
    %77 = vector.load %arg9[%c0_56, %c112_57] : memref<32x512xbf16, #tpu.memory_space<vmem>>, vector<32x256xbf16>
    %c1 = arith.constant 1 : index
    %c0_58 = arith.constant 0 : index
    %c0_59 = arith.constant 0 : index
    %78 = vector.load %arg4[%c1, %c0_58, %c0_59] : memref<9x3x32xbf16, #tpu.memory_space<vmem>>, vector<1x3x32xbf16>
    %79 = vector.shape_cast %78 : vector<1x3x32xbf16> to vector<3x32xbf16>
    %cst_60 = arith.constant dense<0.000000e+00> : vector<3x256xf32>
    %80 = tpu.matmul %79, %77, %cst_60 {dimension_numbers = #tpu.dot_dimension_numbers<[1], [0], [0], [1], [0, 0, 1, 1], [], []>} : vector<3x32xbf16>, vector<32x256xbf16>, vector<3x256xf32> -> vector<3x256xf32>
    %c0_61 = arith.constant 0 : index
    %c113_62 = arith.constant 113 : index
    %81 = vector.load %arg9[%c0_61, %c113_62] : memref<32x512xbf16, #tpu.memory_space<vmem>>, vector<32x256xbf16>
    %c2 = arith.constant 2 : index
    %c0_63 = arith.constant 0 : index
    %c0_64 = arith.constant 0 : index
    %82 = vector.load %arg4[%c2, %c0_63, %c0_64] : memref<9x3x32xbf16, #tpu.memory_space<vmem>>, vector<1x3x32xbf16>
    %83 = vector.shape_cast %82 : vector<1x3x32xbf16> to vector<3x32xbf16>
    %cst_65 = arith.constant dense<0.000000e+00> : vector<3x256xf32>
    %84 = tpu.matmul %83, %81, %cst_65 {dimension_numbers = #tpu.dot_dimension_numbers<[1], [0], [0], [1], [0, 0, 1, 1], [], []>} : vector<3x32xbf16>, vector<32x256xbf16>, vector<3x256xf32> -> vector<3x256xf32>
    %cst_66 = arith.constant 0.000000e+00 : f32
    %85 = vector.shape_cast %6 : vector<1x256xi1> to vector<1x256xi1>
    %86 = vector.broadcast %85 : vector<1x256xi1> to vector<3x256xi1>
    %87 = vector.broadcast %cst_66 : f32 to vector<3x256xf32>
    %88 = arith.select %86, %84, %87 : vector<3x256xi1>, vector<3x256xf32>
    %c0_67 = arith.constant 0 : index
    %c127_68 = arith.constant 127 : index
    %89 = vector.load %arg9[%c0_67, %c127_68] : memref<32x512xbf16, #tpu.memory_space<vmem>>, vector<32x256xbf16>
    %c3_69 = arith.constant 3 : index
    %c0_70 = arith.constant 0 : index
    %c0_71 = arith.constant 0 : index
    %90 = vector.load %arg4[%c3_69, %c0_70, %c0_71] : memref<9x3x32xbf16, #tpu.memory_space<vmem>>, vector<1x3x32xbf16>
    %91 = vector.shape_cast %90 : vector<1x3x32xbf16> to vector<3x32xbf16>
    %cst_72 = arith.constant dense<0.000000e+00> : vector<3x256xf32>
    %92 = tpu.matmul %91, %89, %cst_72 {dimension_numbers = #tpu.dot_dimension_numbers<[1], [0], [0], [1], [0, 0, 1, 1], [], []>} : vector<3x32xbf16>, vector<32x256xbf16>, vector<3x256xf32> -> vector<3x256xf32>
    %cst_73 = arith.constant 0.000000e+00 : f32
    %93 = vector.shape_cast %4 : vector<1x256xi1> to vector<1x256xi1>
    %94 = vector.broadcast %93 : vector<1x256xi1> to vector<3x256xi1>
    %95 = vector.broadcast %cst_73 : f32 to vector<3x256xf32>
    %96 = arith.select %94, %92, %95 : vector<3x256xi1>, vector<3x256xf32>
    %97 = arith.addf %76, %96 : vector<3x256xf32>
    %c0_74 = arith.constant 0 : index
    %c128_75 = arith.constant 128 : index
    %98 = vector.load %arg9[%c0_74, %c128_75] : memref<32x512xbf16, #tpu.memory_space<vmem>>, vector<32x256xbf16>
    %c4 = arith.constant 4 : index
    %c0_76 = arith.constant 0 : index
    %c0_77 = arith.constant 0 : index
    %99 = vector.load %arg4[%c4, %c0_76, %c0_77] : memref<9x3x32xbf16, #tpu.memory_space<vmem>>, vector<1x3x32xbf16>
    %100 = vector.shape_cast %99 : vector<1x3x32xbf16> to vector<3x32xbf16>
    %cst_78 = arith.constant dense<0.000000e+00> : vector<3x256xf32>
    %101 = tpu.matmul %100, %98, %cst_78 {dimension_numbers = #tpu.dot_dimension_numbers<[1], [0], [0], [1], [0, 0, 1, 1], [], []>} : vector<3x32xbf16>, vector<32x256xbf16>, vector<3x256xf32> -> vector<3x256xf32>
    %102 = arith.addf %80, %101 : vector<3x256xf32>
    %c0_79 = arith.constant 0 : index
    %c129_80 = arith.constant 129 : index
    %103 = vector.load %arg9[%c0_79, %c129_80] : memref<32x512xbf16, #tpu.memory_space<vmem>>, vector<32x256xbf16>
    %c5 = arith.constant 5 : index
    %c0_81 = arith.constant 0 : index
    %c0_82 = arith.constant 0 : index
    %104 = vector.load %arg4[%c5, %c0_81, %c0_82] : memref<9x3x32xbf16, #tpu.memory_space<vmem>>, vector<1x3x32xbf16>
    %105 = vector.shape_cast %104 : vector<1x3x32xbf16> to vector<3x32xbf16>
    %cst_83 = arith.constant dense<0.000000e+00> : vector<3x256xf32>
    %106 = tpu.matmul %105, %103, %cst_83 {dimension_numbers = #tpu.dot_dimension_numbers<[1], [0], [0], [1], [0, 0, 1, 1], [], []>} : vector<3x32xbf16>, vector<32x256xbf16>, vector<3x256xf32> -> vector<3x256xf32>
    %cst_84 = arith.constant 0.000000e+00 : f32
    %107 = vector.shape_cast %6 : vector<1x256xi1> to vector<1x256xi1>
    %108 = vector.broadcast %107 : vector<1x256xi1> to vector<3x256xi1>
    %109 = vector.broadcast %cst_84 : f32 to vector<3x256xf32>
    %110 = arith.select %108, %106, %109 : vector<3x256xi1>, vector<3x256xf32>
    %111 = arith.addf %88, %110 : vector<3x256xf32>
    %c0_85 = arith.constant 0 : index
    %c143_86 = arith.constant 143 : index
    %112 = vector.load %arg9[%c0_85, %c143_86] : memref<32x512xbf16, #tpu.memory_space<vmem>>, vector<32x256xbf16>
    %c6_87 = arith.constant 6 : index
    %c0_88 = arith.constant 0 : index
    %c0_89 = arith.constant 0 : index
    %113 = vector.load %arg4[%c6_87, %c0_88, %c0_89] : memref<9x3x32xbf16, #tpu.memory_space<vmem>>, vector<1x3x32xbf16>
    %114 = vector.shape_cast %113 : vector<1x3x32xbf16> to vector<3x32xbf16>
    %cst_90 = arith.constant dense<0.000000e+00> : vector<3x256xf32>
    %115 = tpu.matmul %114, %112, %cst_90 {dimension_numbers = #tpu.dot_dimension_numbers<[1], [0], [0], [1], [0, 0, 1, 1], [], []>} : vector<3x32xbf16>, vector<32x256xbf16>, vector<3x256xf32> -> vector<3x256xf32>
    %cst_91 = arith.constant 0.000000e+00 : f32
    %116 = vector.shape_cast %4 : vector<1x256xi1> to vector<1x256xi1>
    %117 = vector.broadcast %116 : vector<1x256xi1> to vector<3x256xi1>
    %118 = vector.broadcast %cst_91 : f32 to vector<3x256xf32>
    %119 = arith.select %117, %115, %118 : vector<3x256xi1>, vector<3x256xf32>
    %120 = arith.addf %97, %119 : vector<3x256xf32>
    %c0_92 = arith.constant 0 : index
    %c144_93 = arith.constant 144 : index
    %121 = vector.load %arg9[%c0_92, %c144_93] : memref<32x512xbf16, #tpu.memory_space<vmem>>, vector<32x256xbf16>
    %c7 = arith.constant 7 : index
    %c0_94 = arith.constant 0 : index
    %c0_95 = arith.constant 0 : index
    %122 = vector.load %arg4[%c7, %c0_94, %c0_95] : memref<9x3x32xbf16, #tpu.memory_space<vmem>>, vector<1x3x32xbf16>
    %123 = vector.shape_cast %122 : vector<1x3x32xbf16> to vector<3x32xbf16>
    %cst_96 = arith.constant dense<0.000000e+00> : vector<3x256xf32>
    %124 = tpu.matmul %123, %121, %cst_96 {dimension_numbers = #tpu.dot_dimension_numbers<[1], [0], [0], [1], [0, 0, 1, 1], [], []>} : vector<3x32xbf16>, vector<32x256xbf16>, vector<3x256xf32> -> vector<3x256xf32>
    %125 = arith.addf %102, %124 : vector<3x256xf32>
    %c0_97 = arith.constant 0 : index
    %c145_98 = arith.constant 145 : index
    %126 = vector.load %arg9[%c0_97, %c145_98] : memref<32x512xbf16, #tpu.memory_space<vmem>>, vector<32x256xbf16>
    %c8 = arith.constant 8 : index
    %c0_99 = arith.constant 0 : index
    %c0_100 = arith.constant 0 : index
    %127 = vector.load %arg4[%c8, %c0_99, %c0_100] : memref<9x3x32xbf16, #tpu.memory_space<vmem>>, vector<1x3x32xbf16>
    %128 = vector.shape_cast %127 : vector<1x3x32xbf16> to vector<3x32xbf16>
    %cst_101 = arith.constant dense<0.000000e+00> : vector<3x256xf32>
    %129 = tpu.matmul %128, %126, %cst_101 {dimension_numbers = #tpu.dot_dimension_numbers<[1], [0], [0], [1], [0, 0, 1, 1], [], []>} : vector<3x32xbf16>, vector<32x256xbf16>, vector<3x256xf32> -> vector<3x256xf32>
    %cst_102 = arith.constant 0.000000e+00 : f32
    %130 = vector.shape_cast %6 : vector<1x256xi1> to vector<1x256xi1>
    %131 = vector.broadcast %130 : vector<1x256xi1> to vector<3x256xi1>
    %132 = vector.broadcast %cst_102 : f32 to vector<3x256xf32>
    %133 = arith.select %131, %129, %132 : vector<3x256xi1>, vector<3x256xf32>
    %134 = arith.addf %111, %133 : vector<3x256xf32>
    %135 = arith.addf %120, %125 : vector<3x256xf32>
    %136 = arith.addf %135, %134 : vector<3x256xf32>
    %c0_103 = arith.constant 0 : index
    %c0_104 = arith.constant 0 : index
    %137 = vector.load %arg5[%c0_103, %c0_104] : memref<3x1xf32, #tpu.memory_space<vmem>>, vector<3x1xf32>
    %138 = vector.broadcast %137 : vector<3x1xf32> to vector<3x256xf32>
    %139 = arith.addf %136, %138 : vector<3x256xf32>
    %c0_105 = arith.constant 0 : index
    %c0_106 = arith.constant 0 : index
    %c0_107 = arith.constant 0 : index
    %140 = vector.load %arg6[%c0_105, %c0_106, %c0_107] : memref<4x3x256xf32, #tpu.memory_space<vmem>>, vector<1x3x256xf32>
    %141 = vector.shape_cast %140 : vector<1x3x256xf32> to vector<3x256xf32>
    %142 = vector.shape_cast %139 : vector<3x256xf32> to vector<1x3x256xf32>
    tpu.vector_store %arg6[%c0_105, %c0_106, %c0_107], %142 {strides = array<i32>} : memref<4x3x256xf32, #tpu.memory_space<vmem>>, vector<1x3x256xf32>,
    %c1_108 = arith.constant 1 : index
    %c0_109 = arith.constant 0 : index
    %c0_110 = arith.constant 0 : index
    %143 = vector.load %arg1[%c1_108, %c0_109, %c0_110] : memref<4x3x256xf32, #tpu.memory_space<vmem>>, vector<1x3x256xf32>
    %144 = vector.shape_cast %143 : vector<1x3x256xf32> to vector<3x256xf32>
    %c0_111 = arith.constant 0 : index
    %c128_112 = arith.constant 128 : index
    %145 = vector.load %arg7[%c0_111, %c128_112] : memref<3x512xf32, #tpu.memory_space<vmem>>, vector<3x256xf32>
    tpu.vector_store %arg7[%c0_111, %c128_112], %144 {strides = array<i32>} : memref<3x512xf32, #tpu.memory_space<vmem>>, vector<3x256xf32>,
    %c0_113 = arith.constant 0 : index
    %c111_114 = arith.constant 111 : index
    %146 = vector.load %arg7[%c0_113, %c111_114] : memref<3x512xf32, #tpu.memory_space<vmem>>, vector<3x256xf32>
    %cst_115 = arith.constant 0.000000e+00 : f32
    %147 = vector.shape_cast %4 : vector<1x256xi1> to vector<1x256xi1>
    %148 = vector.broadcast %147 : vector<1x256xi1> to vector<3x256xi1>
    %149 = vector.broadcast %cst_115 : f32 to vector<3x256xf32>
    %150 = arith.select %148, %146, %149 : vector<3x256xi1>, vector<3x256xf32>
    %c0_116 = arith.constant 0 : index
    %c0_117 = arith.constant 0 : index
    %151 = vector.load %arg8[%c0_116, %c0_117] : memref<27x256xf32, #tpu.memory_space<vmem>>, vector<3x256xf32>
    tpu.vector_store %arg8[%c0_116, %c0_117], %150 {strides = array<i32>} : memref<27x256xf32, #tpu.memory_space<vmem>>, vector<3x256xf32>,
    %c0_118 = arith.constant 0 : index
    %c112_119 = arith.constant 112 : index
    %152 = vector.load %arg7[%c0_118, %c112_119] : memref<3x512xf32, #tpu.memory_space<vmem>>, vector<3x256xf32>
    %c3_120 = arith.constant 3 : index
    %c0_121 = arith.constant 0 : index
    %153 = vector.load %arg8[%c3_120, %c0_121] : memref<27x256xf32, #tpu.memory_space<vmem>>, vector<3x256xf32>
    tpu.vector_store %arg8[%c3_120, %c0_121], %152 {strides = array<i32>} : memref<27x256xf32, #tpu.memory_space<vmem>>, vector<3x256xf32>,
    %c0_122 = arith.constant 0 : index
    %c113_123 = arith.constant 113 : index
    %154 = vector.load %arg7[%c0_122, %c113_123] : memref<3x512xf32, #tpu.memory_space<vmem>>, vector<3x256xf32>
    %cst_124 = arith.constant 0.000000e+00 : f32
    %155 = vector.shape_cast %6 : vector<1x256xi1> to vector<1x256xi1>
    %156 = vector.broadcast %155 : vector<1x256xi1> to vector<3x256xi1>
    %157 = vector.broadcast %cst_124 : f32 to vector<3x256xf32>
    %158 = arith.select %156, %154, %157 : vector<3x256xi1>, vector<3x256xf32>
    %c6_125 = arith.constant 6 : index
    %c0_126 = arith.constant 0 : index
    %159 = vector.load %arg8[%c6_125, %c0_126] : memref<27x256xf32, #tpu.memory_space<vmem>>, vector<3x256xf32>
    tpu.vector_store %arg8[%c6_125, %c0_126], %158 {strides = array<i32>} : memref<27x256xf32, #tpu.memory_space<vmem>>, vector<3x256xf32>,
    %c0_127 = arith.constant 0 : index
    %c127_128 = arith.constant 127 : index
    %160 = vector.load %arg7[%c0_127, %c127_128] : memref<3x512xf32, #tpu.memory_space<vmem>>, vector<3x256xf32>
    %cst_129 = arith.constant 0.000000e+00 : f32
    %161 = vector.shape_cast %4 : vector<1x256xi1> to vector<1x256xi1>
    %162 = vector.broadcast %161 : vector<1x256xi1> to vector<3x256xi1>
    %163 = vector.broadcast %cst_129 : f32 to vector<3x256xf32>
    %164 = arith.select %162, %160, %163 : vector<3x256xi1>, vector<3x256xf32>
    %c9_130 = arith.constant 9 : index
    %c0_131 = arith.constant 0 : index
    %165 = vector.load %arg8[%c9_130, %c0_131] : memref<27x256xf32, #tpu.memory_space<vmem>>, vector<3x256xf32>
    tpu.vector_store %arg8[%c9_130, %c0_131], %164 {strides = array<i32>} : memref<27x256xf32, #tpu.memory_space<vmem>>, vector<3x256xf32>,
    %c0_132 = arith.constant 0 : index
    %c128_133 = arith.constant 128 : index
    %166 = vector.load %arg7[%c0_132, %c128_133] : memref<3x512xf32, #tpu.memory_space<vmem>>, vector<3x256xf32>
    %c12_134 = arith.constant 12 : index
    %c0_135 = arith.constant 0 : index
    %167 = vector.load %arg8[%c12_134, %c0_135] : memref<27x256xf32, #tpu.memory_space<vmem>>, vector<3x256xf32>
    tpu.vector_store %arg8[%c12_134, %c0_135], %166 {strides = array<i32>} : memref<27x256xf32, #tpu.memory_space<vmem>>, vector<3x256xf32>,
    %c0_136 = arith.constant 0 : index
    %c129_137 = arith.constant 129 : index
    %168 = vector.load %arg7[%c0_136, %c129_137] : memref<3x512xf32, #tpu.memory_space<vmem>>, vector<3x256xf32>
    %cst_138 = arith.constant 0.000000e+00 : f32
    %169 = vector.shape_cast %6 : vector<1x256xi1> to vector<1x256xi1>
    %170 = vector.broadcast %169 : vector<1x256xi1> to vector<3x256xi1>
    %171 = vector.broadcast %cst_138 : f32 to vector<3x256xf32>
    %172 = arith.select %170, %168, %171 : vector<3x256xi1>, vector<3x256xf32>
    %c15_139 = arith.constant 15 : index
    %c0_140 = arith.constant 0 : index
    %173 = vector.load %arg8[%c15_139, %c0_140] : memref<27x256xf32, #tpu.memory_space<vmem>>, vector<3x256xf32>
    tpu.vector_store %arg8[%c15_139, %c0_140], %172 {strides = array<i32>} : memref<27x256xf32, #tpu.memory_space<vmem>>, vector<3x256xf32>,
    %c0_141 = arith.constant 0 : index
    %c143_142 = arith.constant 143 : index
    %174 = vector.load %arg7[%c0_141, %c143_142] : memref<3x512xf32, #tpu.memory_space<vmem>>, vector<3x256xf32>
    %cst_143 = arith.constant 0.000000e+00 : f32
    %175 = vector.shape_cast %4 : vector<1x256xi1> to vector<1x256xi1>
    %176 = vector.broadcast %175 : vector<1x256xi1> to vector<3x256xi1>
    %177 = vector.broadcast %cst_143 : f32 to vector<3x256xf32>
    %178 = arith.select %176, %174, %177 : vector<3x256xi1>, vector<3x256xf32>
    %c18_144 = arith.constant 18 : index
    %c0_145 = arith.constant 0 : index
    %179 = vector.load %arg8[%c18_144, %c0_145] : memref<27x256xf32, #tpu.memory_space<vmem>>, vector<3x256xf32>
    tpu.vector_store %arg8[%c18_144, %c0_145], %178 {strides = array<i32>} : memref<27x256xf32, #tpu.memory_space<vmem>>, vector<3x256xf32>,
    %c0_146 = arith.constant 0 : index
    %c144_147 = arith.constant 144 : index
    %180 = vector.load %arg7[%c0_146, %c144_147] : memref<3x512xf32, #tpu.memory_space<vmem>>, vector<3x256xf32>
    %c21_148 = arith.constant 21 : index
    %c0_149 = arith.constant 0 : index
    %181 = vector.load %arg8[%c21_148, %c0_149] : memref<27x256xf32, #tpu.memory_space<vmem>>, vector<3x256xf32>
    tpu.vector_store %arg8[%c21_148, %c0_149], %180 {strides = array<i32>} : memref<27x256xf32, #tpu.memory_space<vmem>>, vector<3x256xf32>,
    %c0_150 = arith.constant 0 : index
    %c145_151 = arith.constant 145 : index
    %182 = vector.load %arg7[%c0_150, %c145_151] : memref<3x512xf32, #tpu.memory_space<vmem>>, vector<3x256xf32>
    %cst_152 = arith.constant 0.000000e+00 : f32
    %183 = vector.shape_cast %6 : vector<1x256xi1> to vector<1x256xi1>
    %184 = vector.broadcast %183 : vector<1x256xi1> to vector<3x256xi1>
    %185 = vector.broadcast %cst_152 : f32 to vector<3x256xf32>
    %186 = arith.select %184, %182, %185 : vector<3x256xi1>, vector<3x256xf32>
    %c24_153 = arith.constant 24 : index
    %c0_154 = arith.constant 0 : index
    %187 = vector.load %arg8[%c24_153, %c0_154] : memref<27x256xf32, #tpu.memory_space<vmem>>, vector<3x256xf32>
    tpu.vector_store %arg8[%c24_153, %c0_154], %186 {strides = array<i32>} : memref<27x256xf32, #tpu.memory_space<vmem>>, vector<3x256xf32>,
    %c0_155 = arith.constant 0 : index
    %c0_156 = arith.constant 0 : index
    %188 = vector.load %arg2[%c0_155, %c0_156] : memref<32x27xbf16, #tpu.memory_space<vmem>>, vector<32x27xbf16>
    %c0_157 = arith.constant 0 : index
    %c0_158 = arith.constant 0 : index
    %189 = vector.load %arg8[%c0_157, %c0_158] : memref<27x256xf32, #tpu.memory_space<vmem>>, vector<27x256xf32>
    %190 = arith.truncf %189 : vector<27x256xf32> to vector<27x256xbf16>
    %cst_159 = arith.constant dense<0.000000e+00> : vector<32x256xf32>
    %191 = tpu.matmul %188, %190, %cst_159 {dimension_numbers = #tpu.dot_dimension_numbers<[1], [0], [0], [1], [0, 0, 1, 1], [], []>} : vector<32x27xbf16>, vector<27x256xbf16>, vector<32x256xf32> -> vector<32x256xf32>
    %c0_160 = arith.constant 0 : index
    %c0_161 = arith.constant 0 : index
    %192 = vector.load %arg3[%c0_160, %c0_161] : memref<32x1xf32, #tpu.memory_space<vmem>>, vector<32x1xf32>
    %193 = vector.broadcast %192 : vector<32x1xf32> to vector<32x256xf32>
    %194 = arith.addf %191, %193 : vector<32x256xf32>
    %195 = arith.truncf %194 : vector<32x256xf32> to vector<32x256xbf16>
    %c0_162 = arith.constant 0 : index
    %c128_163 = arith.constant 128 : index
    %196 = vector.load %arg9[%c0_162, %c128_163] : memref<32x512xbf16, #tpu.memory_space<vmem>>, vector<32x256xbf16>
    tpu.vector_store %arg9[%c0_162, %c128_163], %195 {strides = array<i32>} : memref<32x512xbf16, #tpu.memory_space<vmem>>, vector<32x256xbf16>,
    %c0_164 = arith.constant 0 : index
    %c111_165 = arith.constant 111 : index
    %197 = vector.load %arg9[%c0_164, %c111_165] : memref<32x512xbf16, #tpu.memory_space<vmem>>, vector<32x256xbf16>
    %c0_166 = arith.constant 0 : index
    %c0_167 = arith.constant 0 : index
    %c0_168 = arith.constant 0 : index
    %198 = vector.load %arg4[%c0_166, %c0_167, %c0_168] : memref<9x3x32xbf16, #tpu.memory_space<vmem>>, vector<1x3x32xbf16>
    %199 = vector.shape_cast %198 : vector<1x3x32xbf16> to vector<3x32xbf16>
    %cst_169 = arith.constant dense<0.000000e+00> : vector<3x256xf32>
    %200 = tpu.matmul %199, %197, %cst_169 {dimension_numbers = #tpu.dot_dimension_numbers<[1], [0], [0], [1], [0, 0, 1, 1], [], []>} : vector<3x32xbf16>, vector<32x256xbf16>, vector<3x256xf32> -> vector<3x256xf32>
    %cst_170 = arith.constant 0.000000e+00 : f32
    %201 = vector.shape_cast %4 : vector<1x256xi1> to vector<1x256xi1>
    %202 = vector.broadcast %201 : vector<1x256xi1> to vector<3x256xi1>
    %203 = vector.broadcast %cst_170 : f32 to vector<3x256xf32>
    %204 = arith.select %202, %200, %203 : vector<3x256xi1>, vector<3x256xf32>
    %c0_171 = arith.constant 0 : index
    %c112_172 = arith.constant 112 : index
    %205 = vector.load %arg9[%c0_171, %c112_172] : memref<32x512xbf16, #tpu.memory_space<vmem>>, vector<32x256xbf16>
    %c1_173 = arith.constant 1 : index
    %c0_174 = arith.constant 0 : index
    %c0_175 = arith.constant 0 : index
    %206 = vector.load %arg4[%c1_173, %c0_174, %c0_175] : memref<9x3x32xbf16, #tpu.memory_space<vmem>>, vector<1x3x32xbf16>
    %207 = vector.shape_cast %206 : vector<1x3x32xbf16> to vector<3x32xbf16>
    %cst_176 = arith.constant dense<0.000000e+00> : vector<3x256xf32>
    %208 = tpu.matmul %207, %205, %cst_176 {dimension_numbers = #tpu.dot_dimension_numbers<[1], [0], [0], [1], [0, 0, 1, 1], [], []>} : vector<3x32xbf16>, vector<32x256xbf16>, vector<3x256xf32> -> vector<3x256xf32>
    %c0_177 = arith.constant 0 : index
    %c113_178 = arith.constant 113 : index
    %209 = vector.load %arg9[%c0_177, %c113_178] : memref<32x512xbf16, #tpu.memory_space<vmem>>, vector<32x256xbf16>
    %c2_179 = arith.constant 2 : index
    %c0_180 = arith.constant 0 : index
    %c0_181 = arith.constant 0 : index
    %210 = vector.load %arg4[%c2_179, %c0_180, %c0_181] : memref<9x3x32xbf16, #tpu.memory_space<vmem>>, vector<1x3x32xbf16>
    %211 = vector.shape_cast %210 : vector<1x3x32xbf16> to vector<3x32xbf16>
    %cst_182 = arith.constant dense<0.000000e+00> : vector<3x256xf32>
    %212 = tpu.matmul %211, %209, %cst_182 {dimension_numbers = #tpu.dot_dimension_numbers<[1], [0], [0], [1], [0, 0, 1, 1], [], []>} : vector<3x32xbf16>, vector<32x256xbf16>, vector<3x256xf32> -> vector<3x256xf32>
    %cst_183 = arith.constant 0.000000e+00 : f32
    %213 = vector.shape_cast %6 : vector<1x256xi1> to vector<1x256xi1>
    %214 = vector.broadcast %213 : vector<1x256xi1> to vector<3x256xi1>
    %215 = vector.broadcast %cst_183 : f32 to vector<3x256xf32>
    %216 = arith.select %214, %212, %215 : vector<3x256xi1>, vector<3x256xf32>
    %c0_184 = arith.constant 0 : index
    %c127_185 = arith.constant 127 : index
    %217 = vector.load %arg9[%c0_184, %c127_185] : memref<32x512xbf16, #tpu.memory_space<vmem>>, vector<32x256xbf16>
    %c3_186 = arith.constant 3 : index
    %c0_187 = arith.constant 0 : index
    %c0_188 = arith.constant 0 : index
    %218 = vector.load %arg4[%c3_186, %c0_187, %c0_188] : memref<9x3x32xbf16, #tpu.memory_space<vmem>>, vector<1x3x32xbf16>
    %219 = vector.shape_cast %218 : vector<1x3x32xbf16> to vector<3x32xbf16>
    %cst_189 = arith.constant dense<0.000000e+00> : vector<3x256xf32>
    %220 = tpu.matmul %219, %217, %cst_189 {dimension_numbers = #tpu.dot_dimension_numbers<[1], [0], [0], [1], [0, 0, 1, 1], [], []>} : vector<3x32xbf16>, vector<32x256xbf16>, vector<3x256xf32> -> vector<3x256xf32>
    %cst_190 = arith.constant 0.000000e+00 : f32
    %221 = vector.shape_cast %4 : vector<1x256xi1> to vector<1x256xi1>
    %222 = vector.broadcast %221 : vector<1x256xi1> to vector<3x256xi1>
    %223 = vector.broadcast %cst_190 : f32 to vector<3x256xf32>
    %224 = arith.select %222, %220, %223 : vector<3x256xi1>, vector<3x256xf32>
    %225 = arith.addf %204, %224 : vector<3x256xf32>
    %c0_191 = arith.constant 0 : index
    %c128_192 = arith.constant 128 : index
    %226 = vector.load %arg9[%c0_191, %c128_192] : memref<32x512xbf16, #tpu.memory_space<vmem>>, vector<32x256xbf16>
    %c4_193 = arith.constant 4 : index
    %c0_194 = arith.constant 0 : index
    %c0_195 = arith.constant 0 : index
    %227 = vector.load %arg4[%c4_193, %c0_194, %c0_195] : memref<9x3x32xbf16, #tpu.memory_space<vmem>>, vector<1x3x32xbf16>
    %228 = vector.shape_cast %227 : vector<1x3x32xbf16> to vector<3x32xbf16>
    %cst_196 = arith.constant dense<0.000000e+00> : vector<3x256xf32>
    %229 = tpu.matmul %228, %226, %cst_196 {dimension_numbers = #tpu.dot_dimension_numbers<[1], [0], [0], [1], [0, 0, 1, 1], [], []>} : vector<3x32xbf16>, vector<32x256xbf16>, vector<3x256xf32> -> vector<3x256xf32>
    %230 = arith.addf %208, %229 : vector<3x256xf32>
    %c0_197 = arith.constant 0 : index
    %c129_198 = arith.constant 129 : index
    %231 = vector.load %arg9[%c0_197, %c129_198] : memref<32x512xbf16, #tpu.memory_space<vmem>>, vector<32x256xbf16>
    %c5_199 = arith.constant 5 : index
    %c0_200 = arith.constant 0 : index
    %c0_201 = arith.constant 0 : index
    %232 = vector.load %arg4[%c5_199, %c0_200, %c0_201] : memref<9x3x32xbf16, #tpu.memory_space<vmem>>, vector<1x3x32xbf16>
    %233 = vector.shape_cast %232 : vector<1x3x32xbf16> to vector<3x32xbf16>
    %cst_202 = arith.constant dense<0.000000e+00> : vector<3x256xf32>
    %234 = tpu.matmul %233, %231, %cst_202 {dimension_numbers = #tpu.dot_dimension_numbers<[1], [0], [0], [1], [0, 0, 1, 1], [], []>} : vector<3x32xbf16>, vector<32x256xbf16>, vector<3x256xf32> -> vector<3x256xf32>
    %cst_203 = arith.constant 0.000000e+00 : f32
    %235 = vector.shape_cast %6 : vector<1x256xi1> to vector<1x256xi1>
    %236 = vector.broadcast %235 : vector<1x256xi1> to vector<3x256xi1>
    %237 = vector.broadcast %cst_203 : f32 to vector<3x256xf32>
    %238 = arith.select %236, %234, %237 : vector<3x256xi1>, vector<3x256xf32>
    %239 = arith.addf %216, %238 : vector<3x256xf32>
    %c0_204 = arith.constant 0 : index
    %c143_205 = arith.constant 143 : index
    %240 = vector.load %arg9[%c0_204, %c143_205] : memref<32x512xbf16, #tpu.memory_space<vmem>>, vector<32x256xbf16>
    %c6_206 = arith.constant 6 : index
    %c0_207 = arith.constant 0 : index
    %c0_208 = arith.constant 0 : index
    %241 = vector.load %arg4[%c6_206, %c0_207, %c0_208] : memref<9x3x32xbf16, #tpu.memory_space<vmem>>, vector<1x3x32xbf16>
    %242 = vector.shape_cast %241 : vector<1x3x32xbf16> to vector<3x32xbf16>
    %cst_209 = arith.constant dense<0.000000e+00> : vector<3x256xf32>
    %243 = tpu.matmul %242, %240, %cst_209 {dimension_numbers = #tpu.dot_dimension_numbers<[1], [0], [0], [1], [0, 0, 1, 1], [], []>} : vector<3x32xbf16>, vector<32x256xbf16>, vector<3x256xf32> -> vector<3x256xf32>
    %cst_210 = arith.constant 0.000000e+00 : f32
    %244 = vector.shape_cast %4 : vector<1x256xi1> to vector<1x256xi1>
    %245 = vector.broadcast %244 : vector<1x256xi1> to vector<3x256xi1>
    %246 = vector.broadcast %cst_210 : f32 to vector<3x256xf32>
    %247 = arith.select %245, %243, %246 : vector<3x256xi1>, vector<3x256xf32>
    %248 = arith.addf %225, %247 : vector<3x256xf32>
    %c0_211 = arith.constant 0 : index
    %c144_212 = arith.constant 144 : index
    %249 = vector.load %arg9[%c0_211, %c144_212] : memref<32x512xbf16, #tpu.memory_space<vmem>>, vector<32x256xbf16>
    %c7_213 = arith.constant 7 : index
    %c0_214 = arith.constant 0 : index
    %c0_215 = arith.constant 0 : index
    %250 = vector.load %arg4[%c7_213, %c0_214, %c0_215] : memref<9x3x32xbf16, #tpu.memory_space<vmem>>, vector<1x3x32xbf16>
    %251 = vector.shape_cast %250 : vector<1x3x32xbf16> to vector<3x32xbf16>
    %cst_216 = arith.constant dense<0.000000e+00> : vector<3x256xf32>
    %252 = tpu.matmul %251, %249, %cst_216 {dimension_numbers = #tpu.dot_dimension_numbers<[1], [0], [0], [1], [0, 0, 1, 1], [], []>} : vector<3x32xbf16>, vector<32x256xbf16>, vector<3x256xf32> -> vector<3x256xf32>
    %253 = arith.addf %230, %252 : vector<3x256xf32>
    %c0_217 = arith.constant 0 : index
    %c145_218 = arith.constant 145 : index
    %254 = vector.load %arg9[%c0_217, %c145_218] : memref<32x512xbf16, #tpu.memory_space<vmem>>, vector<32x256xbf16>
    %c8_219 = arith.constant 8 : index
    %c0_220 = arith.constant 0 : index
    %c0_221 = arith.constant 0 : index
    %255 = vector.load %arg4[%c8_219, %c0_220, %c0_221] : memref<9x3x32xbf16, #tpu.memory_space<vmem>>, vector<1x3x32xbf16>
    %256 = vector.shape_cast %255 : vector<1x3x32xbf16> to vector<3x32xbf16>
    %cst_222 = arith.constant dense<0.000000e+00> : vector<3x256xf32>
    %257 = tpu.matmul %256, %254, %cst_222 {dimension_numbers = #tpu.dot_dimension_numbers<[1], [0], [0], [1], [0, 0, 1, 1], [], []>} : vector<3x32xbf16>, vector<32x256xbf16>, vector<3x256xf32> -> vector<3x256xf32>
    %cst_223 = arith.constant 0.000000e+00 : f32
    %258 = vector.shape_cast %6 : vector<1x256xi1> to vector<1x256xi1>
    %259 = vector.broadcast %258 : vector<1x256xi1> to vector<3x256xi1>
    %260 = vector.broadcast %cst_223 : f32 to vector<3x256xf32>
    %261 = arith.select %259, %257, %260 : vector<3x256xi1>, vector<3x256xf32>
    %262 = arith.addf %239, %261 : vector<3x256xf32>
    %263 = arith.addf %248, %253 : vector<3x256xf32>
    %264 = arith.addf %263, %262 : vector<3x256xf32>
    %c0_224 = arith.constant 0 : index
    %c0_225 = arith.constant 0 : index
    %265 = vector.load %arg5[%c0_224, %c0_225] : memref<3x1xf32, #tpu.memory_space<vmem>>, vector<3x1xf32>
    %266 = vector.broadcast %265 : vector<3x1xf32> to vector<3x256xf32>
    %267 = arith.addf %264, %266 : vector<3x256xf32>
    %c1_226 = arith.constant 1 : index
    %c0_227 = arith.constant 0 : index
    %c0_228 = arith.constant 0 : index
    %268 = vector.load %arg6[%c1_226, %c0_227, %c0_228] : memref<4x3x256xf32, #tpu.memory_space<vmem>>, vector<1x3x256xf32>
    %269 = vector.shape_cast %268 : vector<1x3x256xf32> to vector<3x256xf32>
    %270 = vector.shape_cast %267 : vector<3x256xf32> to vector<1x3x256xf32>
    tpu.vector_store %arg6[%c1_226, %c0_227, %c0_228], %270 {strides = array<i32>} : memref<4x3x256xf32, #tpu.memory_space<vmem>>, vector<1x3x256xf32>,
    %c2_229 = arith.constant 2 : index
    %c0_230 = arith.constant 0 : index
    %c0_231 = arith.constant 0 : index
    %271 = vector.load %arg1[%c2_229, %c0_230, %c0_231] : memref<4x3x256xf32, #tpu.memory_space<vmem>>, vector<1x3x256xf32>
    %272 = vector.shape_cast %271 : vector<1x3x256xf32> to vector<3x256xf32>
    %c0_232 = arith.constant 0 : index
    %c128_233 = arith.constant 128 : index
    %273 = vector.load %arg7[%c0_232, %c128_233] : memref<3x512xf32, #tpu.memory_space<vmem>>, vector<3x256xf32>
    tpu.vector_store %arg7[%c0_232, %c128_233], %272 {strides = array<i32>} : memref<3x512xf32, #tpu.memory_space<vmem>>, vector<3x256xf32>,
    %c0_234 = arith.constant 0 : index
    %c111_235 = arith.constant 111 : index
    %274 = vector.load %arg7[%c0_234, %c111_235] : memref<3x512xf32, #tpu.memory_space<vmem>>, vector<3x256xf32>
    %cst_236 = arith.constant 0.000000e+00 : f32
    %275 = vector.shape_cast %4 : vector<1x256xi1> to vector<1x256xi1>
    %276 = vector.broadcast %275 : vector<1x256xi1> to vector<3x256xi1>
    %277 = vector.broadcast %cst_236 : f32 to vector<3x256xf32>
    %278 = arith.select %276, %274, %277 : vector<3x256xi1>, vector<3x256xf32>
    %c0_237 = arith.constant 0 : index
    %c0_238 = arith.constant 0 : index
    %279 = vector.load %arg8[%c0_237, %c0_238] : memref<27x256xf32, #tpu.memory_space<vmem>>, vector<3x256xf32>
    tpu.vector_store %arg8[%c0_237, %c0_238], %278 {strides = array<i32>} : memref<27x256xf32, #tpu.memory_space<vmem>>, vector<3x256xf32>,
    %c0_239 = arith.constant 0 : index
    %c112_240 = arith.constant 112 : index
    %280 = vector.load %arg7[%c0_239, %c112_240] : memref<3x512xf32, #tpu.memory_space<vmem>>, vector<3x256xf32>
    %c3_241 = arith.constant 3 : index
    %c0_242 = arith.constant 0 : index
    %281 = vector.load %arg8[%c3_241, %c0_242] : memref<27x256xf32, #tpu.memory_space<vmem>>, vector<3x256xf32>
    tpu.vector_store %arg8[%c3_241, %c0_242], %280 {strides = array<i32>} : memref<27x256xf32, #tpu.memory_space<vmem>>, vector<3x256xf32>,
    %c0_243 = arith.constant 0 : index
    %c113_244 = arith.constant 113 : index
    %282 = vector.load %arg7[%c0_243, %c113_244] : memref<3x512xf32, #tpu.memory_space<vmem>>, vector<3x256xf32>
    %cst_245 = arith.constant 0.000000e+00 : f32
    %283 = vector.shape_cast %6 : vector<1x256xi1> to vector<1x256xi1>
    %284 = vector.broadcast %283 : vector<1x256xi1> to vector<3x256xi1>
    %285 = vector.broadcast %cst_245 : f32 to vector<3x256xf32>
    %286 = arith.select %284, %282, %285 : vector<3x256xi1>, vector<3x256xf32>
    %c6_246 = arith.constant 6 : index
    %c0_247 = arith.constant 0 : index
    %287 = vector.load %arg8[%c6_246, %c0_247] : memref<27x256xf32, #tpu.memory_space<vmem>>, vector<3x256xf32>
    tpu.vector_store %arg8[%c6_246, %c0_247], %286 {strides = array<i32>} : memref<27x256xf32, #tpu.memory_space<vmem>>, vector<3x256xf32>,
    %c0_248 = arith.constant 0 : index
    %c127_249 = arith.constant 127 : index
    %288 = vector.load %arg7[%c0_248, %c127_249] : memref<3x512xf32, #tpu.memory_space<vmem>>, vector<3x256xf32>
    %cst_250 = arith.constant 0.000000e+00 : f32
    %289 = vector.shape_cast %4 : vector<1x256xi1> to vector<1x256xi1>
    %290 = vector.broadcast %289 : vector<1x256xi1> to vector<3x256xi1>
    %291 = vector.broadcast %cst_250 : f32 to vector<3x256xf32>
    %292 = arith.select %290, %288, %291 : vector<3x256xi1>, vector<3x256xf32>
    %c9_251 = arith.constant 9 : index
    %c0_252 = arith.constant 0 : index
    %293 = vector.load %arg8[%c9_251, %c0_252] : memref<27x256xf32, #tpu.memory_space<vmem>>, vector<3x256xf32>
    tpu.vector_store %arg8[%c9_251, %c0_252], %292 {strides = array<i32>} : memref<27x256xf32, #tpu.memory_space<vmem>>, vector<3x256xf32>,
    %c0_253 = arith.constant 0 : index
    %c128_254 = arith.constant 128 : index
    %294 = vector.load %arg7[%c0_253, %c128_254] : memref<3x512xf32, #tpu.memory_space<vmem>>, vector<3x256xf32>
    %c12_255 = arith.constant 12 : index
    %c0_256 = arith.constant 0 : index
    %295 = vector.load %arg8[%c12_255, %c0_256] : memref<27x256xf32, #tpu.memory_space<vmem>>, vector<3x256xf32>
    tpu.vector_store %arg8[%c12_255, %c0_256], %294 {strides = array<i32>} : memref<27x256xf32, #tpu.memory_space<vmem>>, vector<3x256xf32>,
    %c0_257 = arith.constant 0 : index
    %c129_258 = arith.constant 129 : index
    %296 = vector.load %arg7[%c0_257, %c129_258] : memref<3x512xf32, #tpu.memory_space<vmem>>, vector<3x256xf32>
    %cst_259 = arith.constant 0.000000e+00 : f32
    %297 = vector.shape_cast %6 : vector<1x256xi1> to vector<1x256xi1>
    %298 = vector.broadcast %297 : vector<1x256xi1> to vector<3x256xi1>
    %299 = vector.broadcast %cst_259 : f32 to vector<3x256xf32>
    %300 = arith.select %298, %296, %299 : vector<3x256xi1>, vector<3x256xf32>
    %c15_260 = arith.constant 15 : index
    %c0_261 = arith.constant 0 : index
    %301 = vector.load %arg8[%c15_260, %c0_261] : memref<27x256xf32, #tpu.memory_space<vmem>>, vector<3x256xf32>
    tpu.vector_store %arg8[%c15_260, %c0_261], %300 {strides = array<i32>} : memref<27x256xf32, #tpu.memory_space<vmem>>, vector<3x256xf32>,
    %c0_262 = arith.constant 0 : index
    %c143_263 = arith.constant 143 : index
    %302 = vector.load %arg7[%c0_262, %c143_263] : memref<3x512xf32, #tpu.memory_space<vmem>>, vector<3x256xf32>
    %cst_264 = arith.constant 0.000000e+00 : f32
    %303 = vector.shape_cast %4 : vector<1x256xi1> to vector<1x256xi1>
    %304 = vector.broadcast %303 : vector<1x256xi1> to vector<3x256xi1>
    %305 = vector.broadcast %cst_264 : f32 to vector<3x256xf32>
    %306 = arith.select %304, %302, %305 : vector<3x256xi1>, vector<3x256xf32>
    %c18_265 = arith.constant 18 : index
    %c0_266 = arith.constant 0 : index
    %307 = vector.load %arg8[%c18_265, %c0_266] : memref<27x256xf32, #tpu.memory_space<vmem>>, vector<3x256xf32>
    tpu.vector_store %arg8[%c18_265, %c0_266], %306 {strides = array<i32>} : memref<27x256xf32, #tpu.memory_space<vmem>>, vector<3x256xf32>,
    %c0_267 = arith.constant 0 : index
    %c144_268 = arith.constant 144 : index
    %308 = vector.load %arg7[%c0_267, %c144_268] : memref<3x512xf32, #tpu.memory_space<vmem>>, vector<3x256xf32>
    %c21_269 = arith.constant 21 : index
    %c0_270 = arith.constant 0 : index
    %309 = vector.load %arg8[%c21_269, %c0_270] : memref<27x256xf32, #tpu.memory_space<vmem>>, vector<3x256xf32>
    tpu.vector_store %arg8[%c21_269, %c0_270], %308 {strides = array<i32>} : memref<27x256xf32, #tpu.memory_space<vmem>>, vector<3x256xf32>,
    %c0_271 = arith.constant 0 : index
    %c145_272 = arith.constant 145 : index
    %310 = vector.load %arg7[%c0_271, %c145_272] : memref<3x512xf32, #tpu.memory_space<vmem>>, vector<3x256xf32>
    %cst_273 = arith.constant 0.000000e+00 : f32
    %311 = vector.shape_cast %6 : vector<1x256xi1> to vector<1x256xi1>
    %312 = vector.broadcast %311 : vector<1x256xi1> to vector<3x256xi1>
    %313 = vector.broadcast %cst_273 : f32 to vector<3x256xf32>
    %314 = arith.select %312, %310, %313 : vector<3x256xi1>, vector<3x256xf32>
    %c24_274 = arith.constant 24 : index
    %c0_275 = arith.constant 0 : index
    %315 = vector.load %arg8[%c24_274, %c0_275] : memref<27x256xf32, #tpu.memory_space<vmem>>, vector<3x256xf32>
    tpu.vector_store %arg8[%c24_274, %c0_275], %314 {strides = array<i32>} : memref<27x256xf32, #tpu.memory_space<vmem>>, vector<3x256xf32>,
    %c0_276 = arith.constant 0 : index
    %c0_277 = arith.constant 0 : index
    %316 = vector.load %arg2[%c0_276, %c0_277] : memref<32x27xbf16, #tpu.memory_space<vmem>>, vector<32x27xbf16>
    %c0_278 = arith.constant 0 : index
    %c0_279 = arith.constant 0 : index
    %317 = vector.load %arg8[%c0_278, %c0_279] : memref<27x256xf32, #tpu.memory_space<vmem>>, vector<27x256xf32>
    %318 = arith.truncf %317 : vector<27x256xf32> to vector<27x256xbf16>
    %cst_280 = arith.constant dense<0.000000e+00> : vector<32x256xf32>
    %319 = tpu.matmul %316, %318, %cst_280 {dimension_numbers = #tpu.dot_dimension_numbers<[1], [0], [0], [1], [0, 0, 1, 1], [], []>} : vector<32x27xbf16>, vector<27x256xbf16>, vector<32x256xf32> -> vector<32x256xf32>
    %c0_281 = arith.constant 0 : index
    %c0_282 = arith.constant 0 : index
    %320 = vector.load %arg3[%c0_281, %c0_282] : memref<32x1xf32, #tpu.memory_space<vmem>>, vector<32x1xf32>
    %321 = vector.broadcast %320 : vector<32x1xf32> to vector<32x256xf32>
    %322 = arith.addf %319, %321 : vector<32x256xf32>
    %323 = arith.truncf %322 : vector<32x256xf32> to vector<32x256xbf16>
    %c0_283 = arith.constant 0 : index
    %c128_284 = arith.constant 128 : index
    %324 = vector.load %arg9[%c0_283, %c128_284] : memref<32x512xbf16, #tpu.memory_space<vmem>>, vector<32x256xbf16>
    tpu.vector_store %arg9[%c0_283, %c128_284], %323 {strides = array<i32>} : memref<32x512xbf16, #tpu.memory_space<vmem>>, vector<32x256xbf16>,
    %c0_285 = arith.constant 0 : index
    %c111_286 = arith.constant 111 : index
    %325 = vector.load %arg9[%c0_285, %c111_286] : memref<32x512xbf16, #tpu.memory_space<vmem>>, vector<32x256xbf16>
    %c0_287 = arith.constant 0 : index
    %c0_288 = arith.constant 0 : index
    %c0_289 = arith.constant 0 : index
    %326 = vector.load %arg4[%c0_287, %c0_288, %c0_289] : memref<9x3x32xbf16, #tpu.memory_space<vmem>>, vector<1x3x32xbf16>
    %327 = vector.shape_cast %326 : vector<1x3x32xbf16> to vector<3x32xbf16>
    %cst_290 = arith.constant dense<0.000000e+00> : vector<3x256xf32>
    %328 = tpu.matmul %327, %325, %cst_290 {dimension_numbers = #tpu.dot_dimension_numbers<[1], [0], [0], [1], [0, 0, 1, 1], [], []>} : vector<3x32xbf16>, vector<32x256xbf16>, vector<3x256xf32> -> vector<3x256xf32>
    %cst_291 = arith.constant 0.000000e+00 : f32
    %329 = vector.shape_cast %4 : vector<1x256xi1> to vector<1x256xi1>
    %330 = vector.broadcast %329 : vector<1x256xi1> to vector<3x256xi1>
    %331 = vector.broadcast %cst_291 : f32 to vector<3x256xf32>
    %332 = arith.select %330, %328, %331 : vector<3x256xi1>, vector<3x256xf32>
    %c0_292 = arith.constant 0 : index
    %c112_293 = arith.constant 112 : index
    %333 = vector.load %arg9[%c0_292, %c112_293] : memref<32x512xbf16, #tpu.memory_space<vmem>>, vector<32x256xbf16>
    %c1_294 = arith.constant 1 : index
    %c0_295 = arith.constant 0 : index
    %c0_296 = arith.constant 0 : index
    %334 = vector.load %arg4[%c1_294, %c0_295, %c0_296] : memref<9x3x32xbf16, #tpu.memory_space<vmem>>, vector<1x3x32xbf16>
    %335 = vector.shape_cast %334 : vector<1x3x32xbf16> to vector<3x32xbf16>
    %cst_297 = arith.constant dense<0.000000e+00> : vector<3x256xf32>
    %336 = tpu.matmul %335, %333, %cst_297 {dimension_numbers = #tpu.dot_dimension_numbers<[1], [0], [0], [1], [0, 0, 1, 1], [], []>} : vector<3x32xbf16>, vector<32x256xbf16>, vector<3x256xf32> -> vector<3x256xf32>
    %c0_298 = arith.constant 0 : index
    %c113_299 = arith.constant 113 : index
    %337 = vector.load %arg9[%c0_298, %c113_299] : memref<32x512xbf16, #tpu.memory_space<vmem>>, vector<32x256xbf16>
    %c2_300 = arith.constant 2 : index
    %c0_301 = arith.constant 0 : index
    %c0_302 = arith.constant 0 : index
    %338 = vector.load %arg4[%c2_300, %c0_301, %c0_302] : memref<9x3x32xbf16, #tpu.memory_space<vmem>>, vector<1x3x32xbf16>
    %339 = vector.shape_cast %338 : vector<1x3x32xbf16> to vector<3x32xbf16>
    %cst_303 = arith.constant dense<0.000000e+00> : vector<3x256xf32>
    %340 = tpu.matmul %339, %337, %cst_303 {dimension_numbers = #tpu.dot_dimension_numbers<[1], [0], [0], [1], [0, 0, 1, 1], [], []>} : vector<3x32xbf16>, vector<32x256xbf16>, vector<3x256xf32> -> vector<3x256xf32>
    %cst_304 = arith.constant 0.000000e+00 : f32
    %341 = vector.shape_cast %6 : vector<1x256xi1> to vector<1x256xi1>
    %342 = vector.broadcast %341 : vector<1x256xi1> to vector<3x256xi1>
    %343 = vector.broadcast %cst_304 : f32 to vector<3x256xf32>
    %344 = arith.select %342, %340, %343 : vector<3x256xi1>, vector<3x256xf32>
    %c0_305 = arith.constant 0 : index
    %c127_306 = arith.constant 127 : index
    %345 = vector.load %arg9[%c0_305, %c127_306] : memref<32x512xbf16, #tpu.memory_space<vmem>>, vector<32x256xbf16>
    %c3_307 = arith.constant 3 : index
    %c0_308 = arith.constant 0 : index
    %c0_309 = arith.constant 0 : index
    %346 = vector.load %arg4[%c3_307, %c0_308, %c0_309] : memref<9x3x32xbf16, #tpu.memory_space<vmem>>, vector<1x3x32xbf16>
    %347 = vector.shape_cast %346 : vector<1x3x32xbf16> to vector<3x32xbf16>
    %cst_310 = arith.constant dense<0.000000e+00> : vector<3x256xf32>
    %348 = tpu.matmul %347, %345, %cst_310 {dimension_numbers = #tpu.dot_dimension_numbers<[1], [0], [0], [1], [0, 0, 1, 1], [], []>} : vector<3x32xbf16>, vector<32x256xbf16>, vector<3x256xf32> -> vector<3x256xf32>
    %cst_311 = arith.constant 0.000000e+00 : f32
    %349 = vector.shape_cast %4 : vector<1x256xi1> to vector<1x256xi1>
    %350 = vector.broadcast %349 : vector<1x256xi1> to vector<3x256xi1>
    %351 = vector.broadcast %cst_311 : f32 to vector<3x256xf32>
    %352 = arith.select %350, %348, %351 : vector<3x256xi1>, vector<3x256xf32>
    %353 = arith.addf %332, %352 : vector<3x256xf32>
    %c0_312 = arith.constant 0 : index
    %c128_313 = arith.constant 128 : index
    %354 = vector.load %arg9[%c0_312, %c128_313] : memref<32x512xbf16, #tpu.memory_space<vmem>>, vector<32x256xbf16>
    %c4_314 = arith.constant 4 : index
    %c0_315 = arith.constant 0 : index
    %c0_316 = arith.constant 0 : index
    %355 = vector.load %arg4[%c4_314, %c0_315, %c0_316] : memref<9x3x32xbf16, #tpu.memory_space<vmem>>, vector<1x3x32xbf16>
    %356 = vector.shape_cast %355 : vector<1x3x32xbf16> to vector<3x32xbf16>
    %cst_317 = arith.constant dense<0.000000e+00> : vector<3x256xf32>
    %357 = tpu.matmul %356, %354, %cst_317 {dimension_numbers = #tpu.dot_dimension_numbers<[1], [0], [0], [1], [0, 0, 1, 1], [], []>} : vector<3x32xbf16>, vector<32x256xbf16>, vector<3x256xf32> -> vector<3x256xf32>
    %358 = arith.addf %336, %357 : vector<3x256xf32>
    %c0_318 = arith.constant 0 : index
    %c129_319 = arith.constant 129 : index
    %359 = vector.load %arg9[%c0_318, %c129_319] : memref<32x512xbf16, #tpu.memory_space<vmem>>, vector<32x256xbf16>
    %c5_320 = arith.constant 5 : index
    %c0_321 = arith.constant 0 : index
    %c0_322 = arith.constant 0 : index
    %360 = vector.load %arg4[%c5_320, %c0_321, %c0_322] : memref<9x3x32xbf16, #tpu.memory_space<vmem>>, vector<1x3x32xbf16>
    %361 = vector.shape_cast %360 : vector<1x3x32xbf16> to vector<3x32xbf16>
    %cst_323 = arith.constant dense<0.000000e+00> : vector<3x256xf32>
    %362 = tpu.matmul %361, %359, %cst_323 {dimension_numbers = #tpu.dot_dimension_numbers<[1], [0], [0], [1], [0, 0, 1, 1], [], []>} : vector<3x32xbf16>, vector<32x256xbf16>, vector<3x256xf32> -> vector<3x256xf32>
    %cst_324 = arith.constant 0.000000e+00 : f32
    %363 = vector.shape_cast %6 : vector<1x256xi1> to vector<1x256xi1>
    %364 = vector.broadcast %363 : vector<1x256xi1> to vector<3x256xi1>
    %365 = vector.broadcast %cst_324 : f32 to vector<3x256xf32>
    %366 = arith.select %364, %362, %365 : vector<3x256xi1>, vector<3x256xf32>
    %367 = arith.addf %344, %366 : vector<3x256xf32>
    %c0_325 = arith.constant 0 : index
    %c143_326 = arith.constant 143 : index
    %368 = vector.load %arg9[%c0_325, %c143_326] : memref<32x512xbf16, #tpu.memory_space<vmem>>, vector<32x256xbf16>
    %c6_327 = arith.constant 6 : index
    %c0_328 = arith.constant 0 : index
    %c0_329 = arith.constant 0 : index
    %369 = vector.load %arg4[%c6_327, %c0_328, %c0_329] : memref<9x3x32xbf16, #tpu.memory_space<vmem>>, vector<1x3x32xbf16>
    %370 = vector.shape_cast %369 : vector<1x3x32xbf16> to vector<3x32xbf16>
    %cst_330 = arith.constant dense<0.000000e+00> : vector<3x256xf32>
    %371 = tpu.matmul %370, %368, %cst_330 {dimension_numbers = #tpu.dot_dimension_numbers<[1], [0], [0], [1], [0, 0, 1, 1], [], []>} : vector<3x32xbf16>, vector<32x256xbf16>, vector<3x256xf32> -> vector<3x256xf32>
    %cst_331 = arith.constant 0.000000e+00 : f32
    %372 = vector.shape_cast %4 : vector<1x256xi1> to vector<1x256xi1>
    %373 = vector.broadcast %372 : vector<1x256xi1> to vector<3x256xi1>
    %374 = vector.broadcast %cst_331 : f32 to vector<3x256xf32>
    %375 = arith.select %373, %371, %374 : vector<3x256xi1>, vector<3x256xf32>
    %376 = arith.addf %353, %375 : vector<3x256xf32>
    %c0_332 = arith.constant 0 : index
    %c144_333 = arith.constant 144 : index
    %377 = vector.load %arg9[%c0_332, %c144_333] : memref<32x512xbf16, #tpu.memory_space<vmem>>, vector<32x256xbf16>
    %c7_334 = arith.constant 7 : index
    %c0_335 = arith.constant 0 : index
    %c0_336 = arith.constant 0 : index
    %378 = vector.load %arg4[%c7_334, %c0_335, %c0_336] : memref<9x3x32xbf16, #tpu.memory_space<vmem>>, vector<1x3x32xbf16>
    %379 = vector.shape_cast %378 : vector<1x3x32xbf16> to vector<3x32xbf16>
    %cst_337 = arith.constant dense<0.000000e+00> : vector<3x256xf32>
    %380 = tpu.matmul %379, %377, %cst_337 {dimension_numbers = #tpu.dot_dimension_numbers<[1], [0], [0], [1], [0, 0, 1, 1], [], []>} : vector<3x32xbf16>, vector<32x256xbf16>, vector<3x256xf32> -> vector<3x256xf32>
    %381 = arith.addf %358, %380 : vector<3x256xf32>
    %c0_338 = arith.constant 0 : index
    %c145_339 = arith.constant 145 : index
    %382 = vector.load %arg9[%c0_338, %c145_339] : memref<32x512xbf16, #tpu.memory_space<vmem>>, vector<32x256xbf16>
    %c8_340 = arith.constant 8 : index
    %c0_341 = arith.constant 0 : index
    %c0_342 = arith.constant 0 : index
    %383 = vector.load %arg4[%c8_340, %c0_341, %c0_342] : memref<9x3x32xbf16, #tpu.memory_space<vmem>>, vector<1x3x32xbf16>
    %384 = vector.shape_cast %383 : vector<1x3x32xbf16> to vector<3x32xbf16>
    %cst_343 = arith.constant dense<0.000000e+00> : vector<3x256xf32>
    %385 = tpu.matmul %384, %382, %cst_343 {dimension_numbers = #tpu.dot_dimension_numbers<[1], [0], [0], [1], [0, 0, 1, 1], [], []>} : vector<3x32xbf16>, vector<32x256xbf16>, vector<3x256xf32> -> vector<3x256xf32>
    %cst_344 = arith.constant 0.000000e+00 : f32
    %386 = vector.shape_cast %6 : vector<1x256xi1> to vector<1x256xi1>
    %387 = vector.broadcast %386 : vector<1x256xi1> to vector<3x256xi1>
    %388 = vector.broadcast %cst_344 : f32 to vector<3x256xf32>
    %389 = arith.select %387, %385, %388 : vector<3x256xi1>, vector<3x256xf32>
    %390 = arith.addf %367, %389 : vector<3x256xf32>
    %391 = arith.addf %376, %381 : vector<3x256xf32>
    %392 = arith.addf %391, %390 : vector<3x256xf32>
    %c0_345 = arith.constant 0 : index
    %c0_346 = arith.constant 0 : index
    %393 = vector.load %arg5[%c0_345, %c0_346] : memref<3x1xf32, #tpu.memory_space<vmem>>, vector<3x1xf32>
    %394 = vector.broadcast %393 : vector<3x1xf32> to vector<3x256xf32>
    %395 = arith.addf %392, %394 : vector<3x256xf32>
    %c2_347 = arith.constant 2 : index
    %c0_348 = arith.constant 0 : index
    %c0_349 = arith.constant 0 : index
    %396 = vector.load %arg6[%c2_347, %c0_348, %c0_349] : memref<4x3x256xf32, #tpu.memory_space<vmem>>, vector<1x3x256xf32>
    %397 = vector.shape_cast %396 : vector<1x3x256xf32> to vector<3x256xf32>
    %398 = vector.shape_cast %395 : vector<3x256xf32> to vector<1x3x256xf32>
    tpu.vector_store %arg6[%c2_347, %c0_348, %c0_349], %398 {strides = array<i32>} : memref<4x3x256xf32, #tpu.memory_space<vmem>>, vector<1x3x256xf32>,
    %c3_350 = arith.constant 3 : index
    %c0_351 = arith.constant 0 : index
    %c0_352 = arith.constant 0 : index
    %399 = vector.load %arg1[%c3_350, %c0_351, %c0_352] : memref<4x3x256xf32, #tpu.memory_space<vmem>>, vector<1x3x256xf32>
    %400 = vector.shape_cast %399 : vector<1x3x256xf32> to vector<3x256xf32>
    %c0_353 = arith.constant 0 : index
    %c128_354 = arith.constant 128 : index
    %401 = vector.load %arg7[%c0_353, %c128_354] : memref<3x512xf32, #tpu.memory_space<vmem>>, vector<3x256xf32>
    tpu.vector_store %arg7[%c0_353, %c128_354], %400 {strides = array<i32>} : memref<3x512xf32, #tpu.memory_space<vmem>>, vector<3x256xf32>,
    %c0_355 = arith.constant 0 : index
    %c111_356 = arith.constant 111 : index
    %402 = vector.load %arg7[%c0_355, %c111_356] : memref<3x512xf32, #tpu.memory_space<vmem>>, vector<3x256xf32>
    %cst_357 = arith.constant 0.000000e+00 : f32
    %403 = vector.shape_cast %4 : vector<1x256xi1> to vector<1x256xi1>
    %404 = vector.broadcast %403 : vector<1x256xi1> to vector<3x256xi1>
    %405 = vector.broadcast %cst_357 : f32 to vector<3x256xf32>
    %406 = arith.select %404, %402, %405 : vector<3x256xi1>, vector<3x256xf32>
    %c0_358 = arith.constant 0 : index
    %c0_359 = arith.constant 0 : index
    %407 = vector.load %arg8[%c0_358, %c0_359] : memref<27x256xf32, #tpu.memory_space<vmem>>, vector<3x256xf32>
    tpu.vector_store %arg8[%c0_358, %c0_359], %406 {strides = array<i32>} : memref<27x256xf32, #tpu.memory_space<vmem>>, vector<3x256xf32>,
    %c0_360 = arith.constant 0 : index
    %c112_361 = arith.constant 112 : index
    %408 = vector.load %arg7[%c0_360, %c112_361] : memref<3x512xf32, #tpu.memory_space<vmem>>, vector<3x256xf32>
    %c3_362 = arith.constant 3 : index
    %c0_363 = arith.constant 0 : index
    %409 = vector.load %arg8[%c3_362, %c0_363] : memref<27x256xf32, #tpu.memory_space<vmem>>, vector<3x256xf32>
    tpu.vector_store %arg8[%c3_362, %c0_363], %408 {strides = array<i32>} : memref<27x256xf32, #tpu.memory_space<vmem>>, vector<3x256xf32>,
    %c0_364 = arith.constant 0 : index
    %c113_365 = arith.constant 113 : index
    %410 = vector.load %arg7[%c0_364, %c113_365] : memref<3x512xf32, #tpu.memory_space<vmem>>, vector<3x256xf32>
    %cst_366 = arith.constant 0.000000e+00 : f32
    %411 = vector.shape_cast %6 : vector<1x256xi1> to vector<1x256xi1>
    %412 = vector.broadcast %411 : vector<1x256xi1> to vector<3x256xi1>
    %413 = vector.broadcast %cst_366 : f32 to vector<3x256xf32>
    %414 = arith.select %412, %410, %413 : vector<3x256xi1>, vector<3x256xf32>
    %c6_367 = arith.constant 6 : index
    %c0_368 = arith.constant 0 : index
    %415 = vector.load %arg8[%c6_367, %c0_368] : memref<27x256xf32, #tpu.memory_space<vmem>>, vector<3x256xf32>
    tpu.vector_store %arg8[%c6_367, %c0_368], %414 {strides = array<i32>} : memref<27x256xf32, #tpu.memory_space<vmem>>, vector<3x256xf32>,
    %c0_369 = arith.constant 0 : index
    %c127_370 = arith.constant 127 : index
    %416 = vector.load %arg7[%c0_369, %c127_370] : memref<3x512xf32, #tpu.memory_space<vmem>>, vector<3x256xf32>
    %cst_371 = arith.constant 0.000000e+00 : f32
    %417 = vector.shape_cast %4 : vector<1x256xi1> to vector<1x256xi1>
    %418 = vector.broadcast %417 : vector<1x256xi1> to vector<3x256xi1>
    %419 = vector.broadcast %cst_371 : f32 to vector<3x256xf32>
    %420 = arith.select %418, %416, %419 : vector<3x256xi1>, vector<3x256xf32>
    %c9_372 = arith.constant 9 : index
    %c0_373 = arith.constant 0 : index
    %421 = vector.load %arg8[%c9_372, %c0_373] : memref<27x256xf32, #tpu.memory_space<vmem>>, vector<3x256xf32>
    tpu.vector_store %arg8[%c9_372, %c0_373], %420 {strides = array<i32>} : memref<27x256xf32, #tpu.memory_space<vmem>>, vector<3x256xf32>,
    %c0_374 = arith.constant 0 : index
    %c128_375 = arith.constant 128 : index
    %422 = vector.load %arg7[%c0_374, %c128_375] : memref<3x512xf32, #tpu.memory_space<vmem>>, vector<3x256xf32>
    %c12_376 = arith.constant 12 : index
    %c0_377 = arith.constant 0 : index
    %423 = vector.load %arg8[%c12_376, %c0_377] : memref<27x256xf32, #tpu.memory_space<vmem>>, vector<3x256xf32>
    tpu.vector_store %arg8[%c12_376, %c0_377], %422 {strides = array<i32>} : memref<27x256xf32, #tpu.memory_space<vmem>>, vector<3x256xf32>,
    %c0_378 = arith.constant 0 : index
    %c129_379 = arith.constant 129 : index
    %424 = vector.load %arg7[%c0_378, %c129_379] : memref<3x512xf32, #tpu.memory_space<vmem>>, vector<3x256xf32>
    %cst_380 = arith.constant 0.000000e+00 : f32
    %425 = vector.shape_cast %6 : vector<1x256xi1> to vector<1x256xi1>
    %426 = vector.broadcast %425 : vector<1x256xi1> to vector<3x256xi1>
    %427 = vector.broadcast %cst_380 : f32 to vector<3x256xf32>
    %428 = arith.select %426, %424, %427 : vector<3x256xi1>, vector<3x256xf32>
    %c15_381 = arith.constant 15 : index
    %c0_382 = arith.constant 0 : index
    %429 = vector.load %arg8[%c15_381, %c0_382] : memref<27x256xf32, #tpu.memory_space<vmem>>, vector<3x256xf32>
    tpu.vector_store %arg8[%c15_381, %c0_382], %428 {strides = array<i32>} : memref<27x256xf32, #tpu.memory_space<vmem>>, vector<3x256xf32>,
    %c0_383 = arith.constant 0 : index
    %c143_384 = arith.constant 143 : index
    %430 = vector.load %arg7[%c0_383, %c143_384] : memref<3x512xf32, #tpu.memory_space<vmem>>, vector<3x256xf32>
    %cst_385 = arith.constant 0.000000e+00 : f32
    %431 = vector.shape_cast %4 : vector<1x256xi1> to vector<1x256xi1>
    %432 = vector.broadcast %431 : vector<1x256xi1> to vector<3x256xi1>
    %433 = vector.broadcast %cst_385 : f32 to vector<3x256xf32>
    %434 = arith.select %432, %430, %433 : vector<3x256xi1>, vector<3x256xf32>
    %c18_386 = arith.constant 18 : index
    %c0_387 = arith.constant 0 : index
    %435 = vector.load %arg8[%c18_386, %c0_387] : memref<27x256xf32, #tpu.memory_space<vmem>>, vector<3x256xf32>
    tpu.vector_store %arg8[%c18_386, %c0_387], %434 {strides = array<i32>} : memref<27x256xf32, #tpu.memory_space<vmem>>, vector<3x256xf32>,
    %c0_388 = arith.constant 0 : index
    %c144_389 = arith.constant 144 : index
    %436 = vector.load %arg7[%c0_388, %c144_389] : memref<3x512xf32, #tpu.memory_space<vmem>>, vector<3x256xf32>
    %c21_390 = arith.constant 21 : index
    %c0_391 = arith.constant 0 : index
    %437 = vector.load %arg8[%c21_390, %c0_391] : memref<27x256xf32, #tpu.memory_space<vmem>>, vector<3x256xf32>
    tpu.vector_store %arg8[%c21_390, %c0_391], %436 {strides = array<i32>} : memref<27x256xf32, #tpu.memory_space<vmem>>, vector<3x256xf32>,
    %c0_392 = arith.constant 0 : index
    %c145_393 = arith.constant 145 : index
    %438 = vector.load %arg7[%c0_392, %c145_393] : memref<3x512xf32, #tpu.memory_space<vmem>>, vector<3x256xf32>
    %cst_394 = arith.constant 0.000000e+00 : f32
    %439 = vector.shape_cast %6 : vector<1x256xi1> to vector<1x256xi1>
    %440 = vector.broadcast %439 : vector<1x256xi1> to vector<3x256xi1>
    %441 = vector.broadcast %cst_394 : f32 to vector<3x256xf32>
    %442 = arith.select %440, %438, %441 : vector<3x256xi1>, vector<3x256xf32>
    %c24_395 = arith.constant 24 : index
    %c0_396 = arith.constant 0 : index
    %443 = vector.load %arg8[%c24_395, %c0_396] : memref<27x256xf32, #tpu.memory_space<vmem>>, vector<3x256xf32>
    tpu.vector_store %arg8[%c24_395, %c0_396], %442 {strides = array<i32>} : memref<27x256xf32, #tpu.memory_space<vmem>>, vector<3x256xf32>,
    %c0_397 = arith.constant 0 : index
    %c0_398 = arith.constant 0 : index
    %444 = vector.load %arg2[%c0_397, %c0_398] : memref<32x27xbf16, #tpu.memory_space<vmem>>, vector<32x27xbf16>
    %c0_399 = arith.constant 0 : index
    %c0_400 = arith.constant 0 : index
    %445 = vector.load %arg8[%c0_399, %c0_400] : memref<27x256xf32, #tpu.memory_space<vmem>>, vector<27x256xf32>
    %446 = arith.truncf %445 : vector<27x256xf32> to vector<27x256xbf16>
    %cst_401 = arith.constant dense<0.000000e+00> : vector<32x256xf32>
    %447 = tpu.matmul %444, %446, %cst_401 {dimension_numbers = #tpu.dot_dimension_numbers<[1], [0], [0], [1], [0, 0, 1, 1], [], []>} : vector<32x27xbf16>, vector<27x256xbf16>, vector<32x256xf32> -> vector<32x256xf32>
    %c0_402 = arith.constant 0 : index
    %c0_403 = arith.constant 0 : index
    %448 = vector.load %arg3[%c0_402, %c0_403] : memref<32x1xf32, #tpu.memory_space<vmem>>, vector<32x1xf32>
    %449 = vector.broadcast %448 : vector<32x1xf32> to vector<32x256xf32>
    %450 = arith.addf %447, %449 : vector<32x256xf32>
    %451 = arith.truncf %450 : vector<32x256xf32> to vector<32x256xbf16>
    %c0_404 = arith.constant 0 : index
    %c128_405 = arith.constant 128 : index
    %452 = vector.load %arg9[%c0_404, %c128_405] : memref<32x512xbf16, #tpu.memory_space<vmem>>, vector<32x256xbf16>
    tpu.vector_store %arg9[%c0_404, %c128_405], %451 {strides = array<i32>} : memref<32x512xbf16, #tpu.memory_space<vmem>>, vector<32x256xbf16>,
    %c0_406 = arith.constant 0 : index
    %c111_407 = arith.constant 111 : index
    %453 = vector.load %arg9[%c0_406, %c111_407] : memref<32x512xbf16, #tpu.memory_space<vmem>>, vector<32x256xbf16>
    %c0_408 = arith.constant 0 : index
    %c0_409 = arith.constant 0 : index
    %c0_410 = arith.constant 0 : index
    %454 = vector.load %arg4[%c0_408, %c0_409, %c0_410] : memref<9x3x32xbf16, #tpu.memory_space<vmem>>, vector<1x3x32xbf16>
    %455 = vector.shape_cast %454 : vector<1x3x32xbf16> to vector<3x32xbf16>
    %cst_411 = arith.constant dense<0.000000e+00> : vector<3x256xf32>
    %456 = tpu.matmul %455, %453, %cst_411 {dimension_numbers = #tpu.dot_dimension_numbers<[1], [0], [0], [1], [0, 0, 1, 1], [], []>} : vector<3x32xbf16>, vector<32x256xbf16>, vector<3x256xf32> -> vector<3x256xf32>
    %cst_412 = arith.constant 0.000000e+00 : f32
    %457 = vector.shape_cast %4 : vector<1x256xi1> to vector<1x256xi1>
    %458 = vector.broadcast %457 : vector<1x256xi1> to vector<3x256xi1>
    %459 = vector.broadcast %cst_412 : f32 to vector<3x256xf32>
    %460 = arith.select %458, %456, %459 : vector<3x256xi1>, vector<3x256xf32>
    %c0_413 = arith.constant 0 : index
    %c112_414 = arith.constant 112 : index
    %461 = vector.load %arg9[%c0_413, %c112_414] : memref<32x512xbf16, #tpu.memory_space<vmem>>, vector<32x256xbf16>
    %c1_415 = arith.constant 1 : index
    %c0_416 = arith.constant 0 : index
    %c0_417 = arith.constant 0 : index
    %462 = vector.load %arg4[%c1_415, %c0_416, %c0_417] : memref<9x3x32xbf16, #tpu.memory_space<vmem>>, vector<1x3x32xbf16>
    %463 = vector.shape_cast %462 : vector<1x3x32xbf16> to vector<3x32xbf16>
    %cst_418 = arith.constant dense<0.000000e+00> : vector<3x256xf32>
    %464 = tpu.matmul %463, %461, %cst_418 {dimension_numbers = #tpu.dot_dimension_numbers<[1], [0], [0], [1], [0, 0, 1, 1], [], []>} : vector<3x32xbf16>, vector<32x256xbf16>, vector<3x256xf32> -> vector<3x256xf32>
    %c0_419 = arith.constant 0 : index
    %c113_420 = arith.constant 113 : index
    %465 = vector.load %arg9[%c0_419, %c113_420] : memref<32x512xbf16, #tpu.memory_space<vmem>>, vector<32x256xbf16>
    %c2_421 = arith.constant 2 : index
    %c0_422 = arith.constant 0 : index
    %c0_423 = arith.constant 0 : index
    %466 = vector.load %arg4[%c2_421, %c0_422, %c0_423] : memref<9x3x32xbf16, #tpu.memory_space<vmem>>, vector<1x3x32xbf16>
    %467 = vector.shape_cast %466 : vector<1x3x32xbf16> to vector<3x32xbf16>
    %cst_424 = arith.constant dense<0.000000e+00> : vector<3x256xf32>
    %468 = tpu.matmul %467, %465, %cst_424 {dimension_numbers = #tpu.dot_dimension_numbers<[1], [0], [0], [1], [0, 0, 1, 1], [], []>} : vector<3x32xbf16>, vector<32x256xbf16>, vector<3x256xf32> -> vector<3x256xf32>
    %cst_425 = arith.constant 0.000000e+00 : f32
    %469 = vector.shape_cast %6 : vector<1x256xi1> to vector<1x256xi1>
    %470 = vector.broadcast %469 : vector<1x256xi1> to vector<3x256xi1>
    %471 = vector.broadcast %cst_425 : f32 to vector<3x256xf32>
    %472 = arith.select %470, %468, %471 : vector<3x256xi1>, vector<3x256xf32>
    %c0_426 = arith.constant 0 : index
    %c127_427 = arith.constant 127 : index
    %473 = vector.load %arg9[%c0_426, %c127_427] : memref<32x512xbf16, #tpu.memory_space<vmem>>, vector<32x256xbf16>
    %c3_428 = arith.constant 3 : index
    %c0_429 = arith.constant 0 : index
    %c0_430 = arith.constant 0 : index
    %474 = vector.load %arg4[%c3_428, %c0_429, %c0_430] : memref<9x3x32xbf16, #tpu.memory_space<vmem>>, vector<1x3x32xbf16>
    %475 = vector.shape_cast %474 : vector<1x3x32xbf16> to vector<3x32xbf16>
    %cst_431 = arith.constant dense<0.000000e+00> : vector<3x256xf32>
    %476 = tpu.matmul %475, %473, %cst_431 {dimension_numbers = #tpu.dot_dimension_numbers<[1], [0], [0], [1], [0, 0, 1, 1], [], []>} : vector<3x32xbf16>, vector<32x256xbf16>, vector<3x256xf32> -> vector<3x256xf32>
    %cst_432 = arith.constant 0.000000e+00 : f32
    %477 = vector.shape_cast %4 : vector<1x256xi1> to vector<1x256xi1>
    %478 = vector.broadcast %477 : vector<1x256xi1> to vector<3x256xi1>
    %479 = vector.broadcast %cst_432 : f32 to vector<3x256xf32>
    %480 = arith.select %478, %476, %479 : vector<3x256xi1>, vector<3x256xf32>
    %481 = arith.addf %460, %480 : vector<3x256xf32>
    %c0_433 = arith.constant 0 : index
    %c128_434 = arith.constant 128 : index
    %482 = vector.load %arg9[%c0_433, %c128_434] : memref<32x512xbf16, #tpu.memory_space<vmem>>, vector<32x256xbf16>
    %c4_435 = arith.constant 4 : index
    %c0_436 = arith.constant 0 : index
    %c0_437 = arith.constant 0 : index
    %483 = vector.load %arg4[%c4_435, %c0_436, %c0_437] : memref<9x3x32xbf16, #tpu.memory_space<vmem>>, vector<1x3x32xbf16>
    %484 = vector.shape_cast %483 : vector<1x3x32xbf16> to vector<3x32xbf16>
    %cst_438 = arith.constant dense<0.000000e+00> : vector<3x256xf32>
    %485 = tpu.matmul %484, %482, %cst_438 {dimension_numbers = #tpu.dot_dimension_numbers<[1], [0], [0], [1], [0, 0, 1, 1], [], []>} : vector<3x32xbf16>, vector<32x256xbf16>, vector<3x256xf32> -> vector<3x256xf32>
    %486 = arith.addf %464, %485 : vector<3x256xf32>
    %c0_439 = arith.constant 0 : index
    %c129_440 = arith.constant 129 : index
    %487 = vector.load %arg9[%c0_439, %c129_440] : memref<32x512xbf16, #tpu.memory_space<vmem>>, vector<32x256xbf16>
    %c5_441 = arith.constant 5 : index
    %c0_442 = arith.constant 0 : index
    %c0_443 = arith.constant 0 : index
    %488 = vector.load %arg4[%c5_441, %c0_442, %c0_443] : memref<9x3x32xbf16, #tpu.memory_space<vmem>>, vector<1x3x32xbf16>
    %489 = vector.shape_cast %488 : vector<1x3x32xbf16> to vector<3x32xbf16>
    %cst_444 = arith.constant dense<0.000000e+00> : vector<3x256xf32>
    %490 = tpu.matmul %489, %487, %cst_444 {dimension_numbers = #tpu.dot_dimension_numbers<[1], [0], [0], [1], [0, 0, 1, 1], [], []>} : vector<3x32xbf16>, vector<32x256xbf16>, vector<3x256xf32> -> vector<3x256xf32>
    %cst_445 = arith.constant 0.000000e+00 : f32
    %491 = vector.shape_cast %6 : vector<1x256xi1> to vector<1x256xi1>
    %492 = vector.broadcast %491 : vector<1x256xi1> to vector<3x256xi1>
    %493 = vector.broadcast %cst_445 : f32 to vector<3x256xf32>
    %494 = arith.select %492, %490, %493 : vector<3x256xi1>, vector<3x256xf32>
    %495 = arith.addf %472, %494 : vector<3x256xf32>
    %c0_446 = arith.constant 0 : index
    %c143_447 = arith.constant 143 : index
    %496 = vector.load %arg9[%c0_446, %c143_447] : memref<32x512xbf16, #tpu.memory_space<vmem>>, vector<32x256xbf16>
    %c6_448 = arith.constant 6 : index
    %c0_449 = arith.constant 0 : index
    %c0_450 = arith.constant 0 : index
    %497 = vector.load %arg4[%c6_448, %c0_449, %c0_450] : memref<9x3x32xbf16, #tpu.memory_space<vmem>>, vector<1x3x32xbf16>
    %498 = vector.shape_cast %497 : vector<1x3x32xbf16> to vector<3x32xbf16>
    %cst_451 = arith.constant dense<0.000000e+00> : vector<3x256xf32>
    %499 = tpu.matmul %498, %496, %cst_451 {dimension_numbers = #tpu.dot_dimension_numbers<[1], [0], [0], [1], [0, 0, 1, 1], [], []>} : vector<3x32xbf16>, vector<32x256xbf16>, vector<3x256xf32> -> vector<3x256xf32>
    %cst_452 = arith.constant 0.000000e+00 : f32
    %500 = vector.shape_cast %4 : vector<1x256xi1> to vector<1x256xi1>
    %501 = vector.broadcast %500 : vector<1x256xi1> to vector<3x256xi1>
    %502 = vector.broadcast %cst_452 : f32 to vector<3x256xf32>
    %503 = arith.select %501, %499, %502 : vector<3x256xi1>, vector<3x256xf32>
    %504 = arith.addf %481, %503 : vector<3x256xf32>
    %c0_453 = arith.constant 0 : index
    %c144_454 = arith.constant 144 : index
    %505 = vector.load %arg9[%c0_453, %c144_454] : memref<32x512xbf16, #tpu.memory_space<vmem>>, vector<32x256xbf16>
    %c7_455 = arith.constant 7 : index
    %c0_456 = arith.constant 0 : index
    %c0_457 = arith.constant 0 : index
    %506 = vector.load %arg4[%c7_455, %c0_456, %c0_457] : memref<9x3x32xbf16, #tpu.memory_space<vmem>>, vector<1x3x32xbf16>
    %507 = vector.shape_cast %506 : vector<1x3x32xbf16> to vector<3x32xbf16>
    %cst_458 = arith.constant dense<0.000000e+00> : vector<3x256xf32>
    %508 = tpu.matmul %507, %505, %cst_458 {dimension_numbers = #tpu.dot_dimension_numbers<[1], [0], [0], [1], [0, 0, 1, 1], [], []>} : vector<3x32xbf16>, vector<32x256xbf16>, vector<3x256xf32> -> vector<3x256xf32>
    %509 = arith.addf %486, %508 : vector<3x256xf32>
    %c0_459 = arith.constant 0 : index
    %c145_460 = arith.constant 145 : index
    %510 = vector.load %arg9[%c0_459, %c145_460] : memref<32x512xbf16, #tpu.memory_space<vmem>>, vector<32x256xbf16>
    %c8_461 = arith.constant 8 : index
    %c0_462 = arith.constant 0 : index
    %c0_463 = arith.constant 0 : index
    %511 = vector.load %arg4[%c8_461, %c0_462, %c0_463] : memref<9x3x32xbf16, #tpu.memory_space<vmem>>, vector<1x3x32xbf16>
    %512 = vector.shape_cast %511 : vector<1x3x32xbf16> to vector<3x32xbf16>
    %cst_464 = arith.constant dense<0.000000e+00> : vector<3x256xf32>
    %513 = tpu.matmul %512, %510, %cst_464 {dimension_numbers = #tpu.dot_dimension_numbers<[1], [0], [0], [1], [0, 0, 1, 1], [], []>} : vector<3x32xbf16>, vector<32x256xbf16>, vector<3x256xf32> -> vector<3x256xf32>
    %cst_465 = arith.constant 0.000000e+00 : f32
    %514 = vector.shape_cast %6 : vector<1x256xi1> to vector<1x256xi1>
    %515 = vector.broadcast %514 : vector<1x256xi1> to vector<3x256xi1>
    %516 = vector.broadcast %cst_465 : f32 to vector<3x256xf32>
    %517 = arith.select %515, %513, %516 : vector<3x256xi1>, vector<3x256xf32>
    %518 = arith.addf %495, %517 : vector<3x256xf32>
    %519 = arith.addf %504, %509 : vector<3x256xf32>
    %520 = arith.addf %519, %518 : vector<3x256xf32>
    %c0_466 = arith.constant 0 : index
    %c0_467 = arith.constant 0 : index
    %521 = vector.load %arg5[%c0_466, %c0_467] : memref<3x1xf32, #tpu.memory_space<vmem>>, vector<3x1xf32>
    %522 = vector.broadcast %521 : vector<3x1xf32> to vector<3x256xf32>
    %523 = arith.addf %520, %522 : vector<3x256xf32>
    %c3_468 = arith.constant 3 : index
    %c0_469 = arith.constant 0 : index
    %c0_470 = arith.constant 0 : index
    %524 = vector.load %arg6[%c3_468, %c0_469, %c0_470] : memref<4x3x256xf32, #tpu.memory_space<vmem>>, vector<1x3x256xf32>
    %525 = vector.shape_cast %524 : vector<1x3x256xf32> to vector<3x256xf32>
    %526 = vector.shape_cast %523 : vector<3x256xf32> to vector<1x3x256xf32>
    tpu.vector_store %arg6[%c3_468, %c0_469, %c0_470], %526 {strides = array<i32>} : memref<4x3x256xf32, #tpu.memory_space<vmem>>, vector<1x3x256xf32>,
    return
  }
  func.func @transform_0(%arg0: i32) -> (i32, i32, i32) {
    %c0_i32 = arith.constant 0 : i32
    %c0_i32_0 = arith.constant 0 : i32
    %c0_i32_1 = arith.constant 0 : i32
    return %arg0, %c0_i32, %c0_i32_0 : i32, i32, i32
  }
  func.func @transform_1(%arg0: i32) -> (i32, i32) {
    %c0_i32 = arith.constant 0 : i32
    %c0_i32_0 = arith.constant 0 : i32
    %c0_i32_1 = arith.constant 0 : i32
    return %c0_i32, %c0_i32_0 : i32, i32
  }
  func.func @transform_2(%arg0: i32) -> (i32, i32) {
    %c0_i32 = arith.constant 0 : i32
    %c0_i32_0 = arith.constant 0 : i32
    %c0_i32_1 = arith.constant 0 : i32
    return %c0_i32, %c0_i32_0 : i32, i32
  }
  func.func @transform_3(%arg0: i32) -> (i32, i32, i32) {
    %c0_i32 = arith.constant 0 : i32
    %c0_i32_0 = arith.constant 0 : i32
    %c0_i32_1 = arith.constant 0 : i32
    %c0_i32_2 = arith.constant 0 : i32
    return %c0_i32, %c0_i32_0, %c0_i32_1 : i32, i32, i32
  }
  func.func @transform_4(%arg0: i32) -> (i32, i32) {
    %c0_i32 = arith.constant 0 : i32
    %c0_i32_0 = arith.constant 0 : i32
    %c0_i32_1 = arith.constant 0 : i32
    return %c0_i32, %c0_i32_0 : i32, i32
  }
  func.func @transform_5(%arg0: i32) -> (i32, i32, i32) {
    %c0_i32 = arith.constant 0 : i32
    %c0_i32_0 = arith.constant 0 : i32
    %c0_i32_1 = arith.constant 0 : i32
    return %arg0, %c0_i32, %c0_i32_0 : i32, i32, i32
  }
}

</mosaic_0001>

<llo_original>
// kernel: tpu_custom_call.1
$region0: #{tpu_custom_call.1}
  #allocation0 [shape = 'u32[]', space=smem, size = 0x4, offset = 0x4, fixed_abs, tag = 'smem constant byte address 0x4 - core index']
  #allocation1 [shape = 'u32[144,128]{1,0:T(1,128)}', space=vmem, size = 0x12000, scoped, tag = 'internal scratch']
  #allocation2 [shape = 'f32[3,512]{1,0:T(4,128)}', space=vmem, size = 0x2000, scoped, tag = 'scratch operand']
  #allocation3 [shape = 'f32[27,256]{1,0:T(8,128)}', space=vmem, size = 0x8000, scoped, tag = 'scratch operand']
  #allocation4 [shape = 'bf16[32,512]{1,0:T(8,128)(2,1)}', space=vmem, size = 0x8000, scoped, tag = 'scratch operand']
  %s0 = inlined_call_operand.vmem [shape: f32[8,3,256], index: 0, kind: input, shape index: {}]
  %s1 = inlined_call_operand.vmem [shape: bf16[32,27], index: 1, kind: input, shape index: {}]
  %s2 = inlined_call_operand.vmem [shape: f32[32,1], index: 2, kind: input, shape index: {}]
  %s3 = inlined_call_operand.vmem [shape: bf16[9,3,32], index: 3, kind: input, shape index: {}]
  %s4 = inlined_call_operand.vmem [shape: f32[3,1], index: 4, kind: input, shape index: {}]
  %s5 = inlined_call_operand.vmem [shape: f32[8,3,256], index: 5, kind: output, shape index: {}]
  %s6 = sld [smem:[#allocation0]]
  $region53: #{tpu_custom_call.1} parent=0
    _
  %s8 = ssub.s32 1, %s6
  %s9 = scalar_select 0, %s8, %s6
  loop: start=0, step=1, limit=4
  $region2: #{tpu_custom_call.1} parent=0 // loop_pre_header
    _
  $region3: #{tpu_custom_call.1} parent=0 // loop_header
    %s11 = sphi 0, %s15
    %p12 = scmp.ge.s32.totalorder %s11, 4
    %s21 = sphi 0, %s23
    %s24 = sphi 0, %s21
    %s25 = sphi 0, %s24
    %s41 = sphi 0, %s25
    %s45 = sphi 0, %s45
    %s47 = sphi 0, %s45
    %s48 = sphi 0, %s47
    %s62 = sphi 0, %s48
    %s66 = sphi 0, %s66
    %s68 = sphi 0, %s66
    %s69 = sphi 0, %s68
    %s83 = sphi 0, %s69
    %s87 = sphi 0, %s87
    %s89 = sphi 0, %s87
    %s90 = sphi 0, %s89
    %s104 = sphi 0, %s90
    %s108 = sphi 0, %s108
    %s110 = sphi 0, %s108
    %s111 = sphi 0, %s110
    %s125 = sphi 0, %s111
    %s131 = sphi 0, %s133
    %s134 = sphi 0, %s131
    %s135 = sphi 0, %s134
    %s151 = sphi 0, %s135
  $region4: #{tpu_custom_call.1} parent=0 // loop_header_branch
    %14 = sbr.rel (%p12) target = $region8
  $region5: #{tpu_custom_call.1} parent=0 // loop_body
    %s16 = ssub.s32 %s11, 1
    %s17 = ssub.s32 %s11, 2
    %s18 = sadd.s32 %s11, 1
    %s19 = ssub.s32 %s11, %s18
    %p20 = scmp.eq.s32.totalorder %s19, 0
    %s22 = sadd.s32 %s21, 1
    %s23 = scalar_select %p20, %s21, %s22
    %p26 = pneg %p20
    %p27 = scmp.eq.s32.totalorder %s11, 1
    %p28 = por %p26, %p27
    %p29 = scmp.ne.s32.totalorder %s21, %s24
    %p30 = scmp.eq.s32.totalorder %s11, 0
    %p31 = por %p29, %p30
    %p32 = scmp.ne.s32.totalorder %s21, %s24
    %p33 = scmp.eq.s32.totalorder %s16, 1
    %p34 = por %p32, %p33
    %p35 = scmp.ne.s32.totalorder %s24, %s25
    %p36 = scmp.eq.s32.totalorder %s16, 0
    %p37 = por %p35, %p36
    %p38 = scmp.ne.s32.totalorder %s24, %s25
    %p39 = scmp.eq.s32.totalorder %s17, 1
    %p40 = por %p38, %p39
    %p42 = scmp.ne.s32.totalorder %s25, %s41
    %p43 = scmp.eq.s32.totalorder %s17, 0
    %p44 = por %p42, %p43
    %s46 = sadd.s32 %s45, 1
    %p49 = scmp.eq.s32.totalorder %s11, 1
    %p50 = scmp.ne.s32.totalorder %s45, %s47
    %p51 = scmp.eq.s32.totalorder %s11, 0
    %p52 = por %p50, %p51
    %p53 = scmp.ne.s32.totalorder %s45, %s47
    %p54 = scmp.eq.s32.totalorder %s16, 1
    %p55 = por %p53, %p54
    %p56 = scmp.ne.s32.totalorder %s47, %s48
    %p57 = scmp.eq.s32.totalorder %s16, 0
    %p58 = por %p56, %p57
    %p59 = scmp.ne.s32.totalorder %s47, %s48
    %p60 = scmp.eq.s32.totalorder %s17, 1
    %p61 = por %p59, %p60
    %p63 = scmp.ne.s32.totalorder %s48, %s62
    %p64 = scmp.eq.s32.totalorder %s17, 0
    %p65 = por %p63, %p64
    %s67 = sadd.s32 %s66, 1
    %p70 = scmp.eq.s32.totalorder %s11, 1
    %p71 = scmp.ne.s32.totalorder %s66, %s68
    %p72 = scmp.eq.s32.totalorder %s11, 0
    %p73 = por %p71, %p72
    %p74 = scmp.ne.s32.totalorder %s66, %s68
    %p75 = scmp.eq.s32.totalorder %s16, 1
    %p76 = por %p74, %p75
    %p77 = scmp.ne.s32.totalorder %s68, %s69
    %p78 = scmp.eq.s32.totalorder %s16, 0
    %p79 = por %p77, %p78
    %p80 = scmp.ne.s32.totalorder %s68, %s69
    %p81 = scmp.eq.s32.totalorder %s17, 1
    %p82 = por %p80, %p81
    %p84 = scmp.ne.s32.totalorder %s69, %s83
    %p85 = scmp.eq.s32.totalorder %s17, 0
    %p86 = por %p84, %p85
    %s88 = sadd.s32 %s87, 1
    %p91 = scmp.eq.s32.totalorder %s11, 1
    %p92 = scmp.ne.s32.totalorder %s87, %s89
    %p93 = scmp.eq.s32.totalorder %s11, 0
    %p94 = por %p92, %p93
    %p95 = scmp.ne.s32.totalorder %s87, %s89
    %p96 = scmp.eq.s32.totalorder %s16, 1
    %p97 = por %p95, %p96
    %p98 = scmp.ne.s32.totalorder %s89, %s90
    %p99 = scmp.eq.s32.totalorder %s16, 0
    %p100 = por %p98, %p99
    %p101 = scmp.ne.s32.totalorder %s89, %s90
    %p102 = scmp.eq.s32.totalorder %s17, 1
    %p103 = por %p101, %p102
    %p105 = scmp.ne.s32.totalorder %s90, %s104
    %p106 = scmp.eq.s32.totalorder %s17, 0
    %p107 = por %p105, %p106
    %s109 = sadd.s32 %s108, 1
    %p112 = scmp.eq.s32.totalorder %s11, 1
    %p113 = scmp.ne.s32.totalorder %s108, %s110
    %p114 = scmp.eq.s32.totalorder %s11, 0
    %p115 = por %p113, %p114
    %p116 = scmp.ne.s32.totalorder %s108, %s110
    %p117 = scmp.eq.s32.totalorder %s16, 1
    %p118 = por %p116, %p117
    %p119 = scmp.ne.s32.totalorder %s110, %s111
    %p120 = scmp.eq.s32.totalorder %s16, 0
    %p121 = por %p119, %p120
    %p122 = scmp.ne.s32.totalorder %s110, %s111
    %p123 = scmp.eq.s32.totalorder %s17, 1
    %p124 = por %p122, %p123
    %p126 = scmp.ne.s32.totalorder %s111, %s125
    %p127 = scmp.eq.s32.totalorder %s17, 0
    %p128 = por %p126, %p127
    %s129 = ssub.s32 %s11, %s18
    %p130 = scmp.eq.s32.totalorder %s129, 0
    %s132 = sadd.s32 %s131, 1
    %s133 = scalar_select %p130, %s131, %s132
    %p136 = pneg %p130
    %p137 = scmp.eq.s32.totalorder %s11, 1
    %p138 = por %p136, %p137
    %p139 = scmp.ne.s32.totalorder %s131, %s134
    %p140 = scmp.eq.s32.totalorder %s11, 0
    %p141 = por %p139, %p140
    %p142 = scmp.ne.s32.totalorder %s131, %s134
    %p143 = scmp.eq.s32.totalorder %s16, 1
    %p144 = por %p142, %p143
    %p145 = scmp.ne.s32.totalorder %s134, %s135
    %p146 = scmp.eq.s32.totalorder %s16, 0
    %p147 = por %p145, %p146
    %p148 = scmp.ne.s32.totalorder %s134, %s135
    %p149 = scmp.eq.s32.totalorder %s17, 1
    %p150 = por %p148, %p149
    %p152 = scmp.ne.s32.totalorder %s135, %s151
    %p153 = scmp.eq.s32.totalorder %s17, 0
    %p154 = por %p152, %p153
    %p155 = scmp.le.s32.totalorder 1, %s11
    %p156 = scmp.lt.s32.totalorder %s11, 3
    %p157 = pnand %p155, %p156
    %p158 = pneg %p157
    // Predicated region
    $region9: #{tpu_custom_call.1} parent=5 // pred_check
      _
    $region10: #{tpu_custom_call.1} parent=5 // pred_check_branch
      %160 = sbr.rel (%p157) target = $region12
    $region11: #{tpu_custom_call.1} parent=5 // pred_region
      %s161 = ssub.s32 %s11, 1
      // Predicated region
      $region13: #{tpu_custom_call.1} parent=11 // pred_check
        %p162 = pneg %p58
      $region14: #{tpu_custom_call.1} parent=11 // pred_check_branch
        %164 = sbr.rel (%p162) target = $region16
      $region15: #{tpu_custom_call.1} parent=11 // pred_region
        _
      $region16: #{tpu_custom_call.1} parent=11 // pred_fallthru
        _
      // Predicated region
      $region17: #{tpu_custom_call.1} parent=11 // pred_check
        %p165 = pneg %p79
      $region18: #{tpu_custom_call.1} parent=11 // pred_check_branch
        %167 = sbr.rel (%p165) target = $region20
      $region19: #{tpu_custom_call.1} parent=11 // pred_region
        _
      $region20: #{tpu_custom_call.1} parent=11 // pred_fallthru
        _
      // Predicated region
      $region21: #{tpu_custom_call.1} parent=11 // pred_check
        %p168 = pneg %p100
      $region22: #{tpu_custom_call.1} parent=11 // pred_check_branch
        %170 = sbr.rel (%p168) target = $region24
      $region23: #{tpu_custom_call.1} parent=11 // pred_region
        _
      $region24: #{tpu_custom_call.1} parent=11 // pred_fallthru
        _
      // Predicated region
      $region25: #{tpu_custom_call.1} parent=11 // pred_check
        %p171 = pneg %p121
      $region26: #{tpu_custom_call.1} parent=11 // pred_check_branch
        %173 = sbr.rel (%p171) target = $region28
      $region27: #{tpu_custom_call.1} parent=11 // pred_region
        _
      $region28: #{tpu_custom_call.1} parent=11 // pred_fallthru
        _
    $region12: #{tpu_custom_call.1} parent=5 // pred_fallthru
      _
    %p174 = scmp.lt.s32.totalorder %s11, 2
    // Predicated region
    $region29: #{tpu_custom_call.1} parent=5 // pred_check
      %p175 = pneg %p174
    $region30: #{tpu_custom_call.1} parent=5 // pred_check_branch
      %177 = sbr.rel (%p175) target = $region32
    $region31: #{tpu_custom_call.1} parent=5 // pred_region
      // Predicated region
      $region33: #{tpu_custom_call.1} parent=31 // pred_check
        %p178 = pneg %p31
      $region34: #{tpu_custom_call.1} parent=31 // pred_check_branch
        %180 = sbr.rel (%p178) target = $region36
      $region35: #{tpu_custom_call.1} parent=31 // pred_region
        %s181 = smul.u32 4, %s11
        %p182 = scmp.lt.s32.totalorder %s181, 7
        %s183 = scalar_select %p182, %s181, 7
        %s184 = smul.addr %s183, 2
        %s185 = smul.addr %s184, 4
        %s186 = scalar_lea.vmem %s0, %s185
        %s187 = smul.u32 4, %s11
      $region36: #{tpu_custom_call.1} parent=31 // pred_fallthru
        _
    $region32: #{tpu_custom_call.1} parent=5 // pred_fallthru
      _
    %p188 = scmp.le.s32.totalorder 1, %s11
    %p189 = scmp.lt.s32.totalorder %s11, 3
    %p190 = pnand %p188, %p189
    %p191 = pneg %p190
    // Predicated region
    $region37: #{tpu_custom_call.1} parent=5 // pred_check
      _
    $region38: #{tpu_custom_call.1} parent=5 // pred_check_branch
      %193 = sbr.rel (%p190) target = $region40
    $region39: #{tpu_custom_call.1} parent=5 // pred_region
      %s194 = ssub.s32 %s11, 1
      %s195 = smul.u32 4, %s16
      %p196 = scmp.lt.s32.totalorder %s195, 7
      %s197 = scalar_select %p196, %s195, 7
      %s198 = smul.addr %s197, 2
      %s199 = smul.addr %s198, 4
      %s200 = scalar_lea.vmem %s0, %s199
      %p201 = pneg %p37
      %p202 = pneg %p34
      %p203 = pneg %p58
      %p204 = pneg %p55
      %p205 = pneg %p79
      %p206 = pneg %p76
      %p207 = pneg %p100
      %p208 = pneg %p97
      %p209 = pneg %p121
      %p210 = pneg %p118
      %p211 = pneg %p147
      %p212 = pneg %p144
      %s213 = smul.u32 4, %s16
      %p214 = scmp.lt.s32.totalorder %s213, 7
      %s215 = scalar_select %p214, %s213, 7
      %s216 = smul.addr %s215, 2
      %s217 = smul.addr %s216, 4
      %s218 = scalar_lea.vmem %s5, %s217
      %s219 = smul.u32 4, %s16
      %p220 = scmp.lt.s32.totalorder %s219, 7
      %s221 = scalar_select %p220, %s219, 7
      %s222 = smul.addr %s221, 2
      %s223 = smul.addr %s222, 4
      %s224 = scalar_lea.vmem %s0, %s223
      %s225 = smul.u32 4, %s16
      %s226 = smul.u32 4, %s16
      %p227 = scmp.lt.s32.totalorder %s226, 7
      %s228 = scalar_select %p227, %s226, 7
      %s229 = smul.addr %s228, 2
      %s230 = smul.addr %s229, 4
      %s231 = scalar_lea.vmem %s5, %s230
      %s232 = smul.u32 4, %s16
      %v234 = vlaneseq
      %v235 = vand.u32 %v234, 127
      %v236 = vadd.s32 %v235, 128
      %v237 = vand.u32 %v235, 15
      %v238 = vand.u32 %v236, 15
      %vm239 = vcmp.ge.s32.totalorder %v237, 1
      %vm240 = vcmp.ge.s32.totalorder %v238, 1
      %vm241 = vcmp.lt.s32.totalorder %v237, 15
      %vm242 = vcmp.lt.s32.totalorder %v238, 15
      %243 = vst [vmem:[#allocation2] sm:$0x7] 0.0
      %244 = vst [vmem:[#allocation2 + $0xc] sm:$0x7] 0.0
      %245 = vst [vmem:[#allocation4] sm:$0xf] 0
      %246 = vst [vmem:[#allocation4 + $0x10] sm:$0xf] 0
      %247 = vst [vmem:[#allocation4 + $0x20] sm:$0xf] 0
      %248 = vst [vmem:[#allocation4 + $0x30] sm:$0xf] 0
      %249 = vst [vmem:[#allocation4 + $0xc] sm:$0xf] 0
      %250 = vst [vmem:[#allocation4 + $0x1c] sm:$0xf] 0
      %251 = vst [vmem:[#allocation4 + $0x2c] sm:$0xf] 0
      %252 = vst [vmem:[#allocation4 + $0x3c] sm:$0xf] 0
      %v253 = vld [vmem:[%s224] sm:$0x77]
      %254 = vst [vmem:[#allocation2 + $0x4] sm:$0x77] %v253
      %v255 = vld [vmem:[#allocation2] sm:$0x77]
      %v256 = vld [vmem:[#allocation2 + $0x8] sm:$0x7]
      %v257 = vsel %vm239, 1, 0
      %v258 = vsel %vm240, 1, 0
      %vm259 = vcmp.eq.s32.totalorder %v257, 1
      %vm260 = vcmp.eq.s32.totalorder %v258, 1
      %v263 = vcombine.high %v255, %v255
      %264 = vrot.lane.b32.xlu0 %v255, 17
      %v265 = vpop.permute.xlu0 %264
      %266 = vrot.lane.b32.xlu0 %v263, 17
      %v267 = vpop.permute.xlu0 %266
      %268 = vrot.lane.b32.xlu0 %v256, 17
      %v269 = vpop.permute.xlu0 %268
      %vm270 = vcmask 138240
      %v271 = vsel %vm270, %v265, %v267
      %v272 = vsel %vm270, %v267, %v269
      %v275 = vsel %vm259, %v271, 0.0
      %v276 = vsel %vm260, %v272, 0.0
      %277 = vst [vmem:[#allocation3] sm:$0x7] %v275
      %278 = vst [vmem:[#allocation3 + $0x8] sm:$0x7] %v276
      %v279 = vld [vmem:[#allocation2] sm:$0x77]
      %v280 = vld [vmem:[#allocation2 + $0x8] sm:$0x7]
      %v283 = vcombine.high %v279, %v279
      %v284 = vrot.slane %v279, 5
      %v285 = vrot.slane %v283, 5
      %v286 = vrot.slane %v280, 5
      %287 = vrot.lane.b32.xlu0 %v284, 16
      %v288 = vpop.permute.xlu0 %287
      %289 = vrot.lane.b32.xlu0 %v285, 16
      %v290 = vpop.permute.xlu0 %289
      %291 = vrot.lane.b32.xlu0 %v286, 16
      %v292 = vpop.permute.xlu0 %291
      %vm293 = vcmask 130048
      %v294 = vsel %vm293, %v288, %v290
      %v295 = vsel %vm293, %v290, %v292
      %298 = vst [vmem:[#allocation3] sm:$0x38] %v294
      %299 = vst [vmem:[#allocation3 + $0x8] sm:$0x38] %v295
      %v300 = vld [vmem:[#allocation2] sm:$0x77]
      %v301 = vld [vmem:[#allocation2 + $0x8] sm:$0x7]
      %v302 = vsel %vm241, 1, 0
      %v303 = vsel %vm242, 1, 0
      %vm304 = vcmp.eq.s32.totalorder %v302, 1
      %vm305 = vcmp.eq.s32.totalorder %v303, 1
      %v308 = vcombine.high %v300, %v300
      %309 = vrot.lane.b32.xlu0 %v300, 15
      %v310 = vpop.permute.xlu0 %309
      %311 = vrot.lane.b32.xlu0 %v308, 15
      %v312 = vpop.permute.xlu0 %311
      %313 = vrot.lane.b32.xlu0 %v301, 15
      %v314 = vpop.permute.xlu0 %313
      %vm315 = vcmask 121856
      %v316 = vsel %vm315, %v310, %v312
      %v317 = vsel %vm315, %v312, %v314
      %v320 = vsel %vm304, %v316, 0.0
      %v321 = vsel %vm305, %v317, 0.0
      %v324 = vrot.slane %v320, 2
      %v325 = vrot.slane %v321, 2
      %328 = vst [vmem:[#allocation3] sm:$0xc0] %v324
      %329 = vst [vmem:[#allocation3 + $0x8] sm:$0xc0] %v325
      %330 = vst [vmem:[#allocation3 + $0x10] sm:$0x1] %v324
      %331 = vst [vmem:[#allocation3 + $0x18] sm:$0x1] %v325
      %v332 = vld [vmem:[#allocation2] sm:$0x77]
      %v333 = vld [vmem:[#allocation2 + $0x8] sm:$0x7]
      %v336 = vcombine.high %v332, %v332
      %337 = vrot.lane.b32.xlu0 %v332, 1
      %v338 = vpop.permute.xlu0 %337
      %339 = vrot.lane.b32.xlu0 %v336, 1
      %v340 = vpop.permute.xlu0 %339
      %341 = vrot.lane.b32.xlu0 %v333, 1
      %v342 = vpop.permute.xlu0 %341
      %vm343 = vcmask 7168
      %v344 = vsel %vm343, %v338, %v340
      %v345 = vsel %vm343, %v340, %v342
      %v348 = vsel %vm259, %v344, 0.0
      %v349 = vsel %vm260, %v345, 0.0
      %v352 = vrot.slane %v348, 7
      %v353 = vrot.slane %v349, 7
      %356 = vst [vmem:[#allocation3 + $0x10] sm:$0xe] %v352
      %357 = vst [vmem:[#allocation3 + $0x18] sm:$0xe] %v353
      %v358 = vld [vmem:[#allocation2 + $0x4] sm:$0x77]
      %v360 = vcombine.low %v358, %v358
      %362 = vst [vmem:[#allocation3 + $0x10] sm:$0x70] %v360
      %363 = vst [vmem:[#allocation3 + $0x18] sm:$0x70] %v358
      %v364 = vld [vmem:[#allocation2 + $0x4] sm:$0x77]
      %v365 = vld [vmem:[#allocation2 + $0xc] sm:$0x7]
      %v368 = vcombine.high %v364, %v364
      %369 = vrot.lane.b32.xlu0 %v364, 127
      %v370 = vpop.permute.xlu0 %369
      %371 = vrot.lane.b32.xlu0 %v368, 127
      %v372 = vpop.permute.xlu0 %371
      %373 = vrot.lane.b32.xlu0 %v365, 127
      %v374 = vpop.permute.xlu0 %373
      %vm375 = vcmask 1039360
      %v376 = vsel %vm375, %v370, %v372
      %v377 = vsel %vm375, %v372, %v374
      %v380 = vsel %vm304, %v376, 0.0
      %v381 = vsel %vm305, %v377, 0.0
      %v384 = vrot.slane %v380, 1
      %v385 = vrot.slane %v381, 1
      %388 = vst [vmem:[#allocation3 + $0x10] sm:$0x80] %v384
      %389 = vst [vmem:[#allocation3 + $0x18] sm:$0x80] %v385
      %390 = vst [vmem:[#allocation3 + $0x20] sm:$0x3] %v384
      %391 = vst [vmem:[#allocation3 + $0x28] sm:$0x3] %v385
      %v392 = vld [vmem:[#allocation2 + $0x4] sm:$0x77]
      %v393 = vld [vmem:[#allocation2 + $0xc] sm:$0x7]
      %v396 = vcombine.high %v392, %v392
      %397 = vrot.lane.b32.xlu0 %v392, 113
      %v398 = vpop.permute.xlu0 %397
      %399 = vrot.lane.b32.xlu0 %v396, 113
      %v400 = vpop.permute.xlu0 %399
      %401 = vrot.lane.b32.xlu0 %v393, 113
      %v402 = vpop.permute.xlu0 %401
      %vm403 = vcmask 924672
      %v404 = vsel %vm403, %v398, %v400
      %v405 = vsel %vm403, %v400, %v402
      %v408 = vsel %vm259, %v404, 0.0
      %v409 = vsel %vm260, %v405, 0.0
      %v412 = vrot.slane %v408, 6
      %v413 = vrot.slane %v409, 6
      %416 = vst [vmem:[#allocation3 + $0x20] sm:$0x1c] %v412
      %417 = vst [vmem:[#allocation3 + $0x28] sm:$0x1c] %v413
      %v418 = vld [vmem:[#allocation2 + $0x4] sm:$0x77]
      %v419 = vld [vmem:[#allocation2 + $0xc] sm:$0x7]
      %v422 = vcombine.high %v418, %v418
      %v423 = vrot.slane %v418, 3
      %v424 = vrot.slane %v422, 3
      %v425 = vrot.slane %v419, 3
      %426 = vrot.lane.b32.xlu0 %v423, 112
      %v427 = vpop.permute.xlu0 %426
      %428 = vrot.lane.b32.xlu0 %v424, 112
      %v429 = vpop.permute.xlu0 %428
      %430 = vrot.lane.b32.xlu0 %v425, 112
      %v431 = vpop.permute.xlu0 %430
      %vm432 = vcmask 916480
      %v433 = vsel %vm432, %v427, %v429
      %v434 = vsel %vm432, %v429, %v431
      %437 = vst [vmem:[#allocation3 + $0x20] sm:$0xe0] %v433
      %438 = vst [vmem:[#allocation3 + $0x28] sm:$0xe0] %v434
      %v439 = vld [vmem:[#allocation2 + $0x4] sm:$0x77]
      %v440 = vld [vmem:[#allocation2 + $0xc] sm:$0x7]
      %v443 = vcombine.high %v439, %v439
      %444 = vrot.lane.b32.xlu0 %v439, 111
      %v445 = vpop.permute.xlu0 %444
      %446 = vrot.lane.b32.xlu0 %v443, 111
      %v447 = vpop.permute.xlu0 %446
      %448 = vrot.lane.b32.xlu0 %v440, 111
      %v449 = vpop.permute.xlu0 %448
      %vm450 = vcmask 908288
      %v451 = vsel %vm450, %v445, %v447
      %v452 = vsel %vm450, %v447, %v449
      %v455 = vsel %vm304, %v451, 0.0
      %v456 = vsel %vm305, %v452, 0.0
      %457 = vst [vmem:[#allocation3 + $0x30] sm:$0x7] %v455
      %458 = vst [vmem:[#allocation3 + $0x38] sm:$0x7] %v456
      %v459 = vld [vmem:[%s1] sm:$0xf]
      %v460 = vld [vmem:[%s1 + $0x4] sm:$0xf]
      %v461 = vld [vmem:[%s1 + $0x8] sm:$0xf]
      %v462 = vld [vmem:[%s1 + $0xc] sm:$0xf]
      %v463 = vld [vmem:[#allocation3] sm:$0xff]
      %v464 = vld [vmem:[#allocation3 + $0x8] sm:$0xff]
      %v465 = vld [vmem:[#allocation3 + $0x10] sm:$0xff]
      %v466 = vld [vmem:[#allocation3 + $0x18] sm:$0xff]
      %v467 = vld [vmem:[#allocation3 + $0x20] sm:$0xff]
      %v468 = vld [vmem:[#allocation3 + $0x28] sm:$0xff]
      %v469 = vld [vmem:[#allocation3 + $0x30] sm:$0x7]
      %v470 = vld [vmem:[#allocation3 + $0x38] sm:$0x7]
      %v471 = vpack.c.bf16 %v465, %v463
      %v472 = vpack.c.bf16 %v466, %v464
      %v473 = vpack.c.bf16 %v469, %v467
      %v474 = vpack.c.bf16 %v470, %v468
      %v475 = vld [vmem:[%s2] sm:$0xff]
      %v476 = vld [vmem:[%s2 + $0x8] sm:$0xff]
      %v477 = vld [vmem:[%s2 + $0x10] sm:$0xff]
      %v478 = vld [vmem:[%s2 + $0x18] sm:$0xff]
      %480 = vset.pattern.permute.xlu0 0
      %481 = vperm.xlu0 %480, %v475
      %v482 = vpop.permute.xlu0 %481
      %485 = vset.pattern.permute.xlu0 0
      %486 = vperm.xlu0 %485, %v476
      %v487 = vpop.permute.xlu0 %486
      %490 = vset.pattern.permute.xlu0 0
      %491 = vperm.xlu0 %490, %v477
      %v492 = vpop.permute.xlu0 %491
      %495 = vset.pattern.permute.xlu0 0
      %496 = vperm.xlu0 %495, %v478
      %v497 = vpop.permute.xlu0 %496
      %v503 = vunpack.c.l.b16 %v459
      %v504 = vunpack.c.l.b16 %v460
      %v505 = vunpack.c.l.b16 %v461
      %v506 = vunpack.c.l.b16 %v462
      %v507 = vpack.c.b16 %v504, %v503
      %v508 = vpack.c.b16 %v506, %v505
      %vm509 = vcmask 220160
      %v511 = vsel %vm509, %v507, 0
      %v514 = vsel %vm509, %v508, 0
      %vm516 = vcmask 1044480
      %vm517 = vcmask 1045504
      %v518 = vsel %vm516, 4294967295, 65535
      %v519 = vsel %vm517, %v518, 0
      %v521 = vand.u32 %v473, %v519
      %v524 = vand.u32 %v474, %v519
      %526 = vmatprep.subr.bf16.mxu0 0
      %527 = vmatpush1.bf16.msra.mxu0 0
      %528 = vmatprep.subr.bf16.mxu0 0
      %529 = vmatpush1.bf16.msra.mxu0 0
      %530 = vmatprep.subr.bf16.mxu0 0
      %531 = vmatpush1.bf16.msra.mxu0 0
      %532 = vmatprep.subr.bf16.mxu0 0
      %533 = vmatpush1.bf16.msra.mxu0 0
      %534 = vmatprep.subr.bf16.mxu0 0
      %535 = vmatpush1.bf16.msra.mxu0 0
      %536 = vmatprep.subr.bf16.mxu0 0
      %537 = vmatpush1.bf16.msra.mxu0 0
      %538 = vmatprep.subr.bf16.mxu0 %v524
      %539 = vmatpush1.bf16.msra.mxu0 %v521
      %540 = vmatprep.subr.bf16.mxu0 %v472
      %541 = vmatpush1.bf16.msra.mxu0 %v471
      %542 = vmatprep.subr.bf16.mxu0 0
      %543 = vmatpush2.bf16.msra.mxu0 0
      %544 = vmatprep.subr.bf16.mxu0 0
      %545 = vmatpush2.bf16.msra.mxu0 0
      %546 = vmatprep.subr.bf16.mxu0 0
      %547 = vmatpush2.bf16.msra.mxu0 0
      %548 = vmatprep.subr.bf16.mxu0 0
      %549 = vmatpush2.bf16.msra.mxu0 0
      %550 = vmatprep.subr.bf16.mxu0 0
      %551 = vmatpush2.bf16.msra.mxu0 0
      %552 = vmatprep.subr.bf16.mxu0 0
      %553 = vmatpush2.bf16.msra.mxu0 0
      %554 = vmatprep.subr.bf16.mxu0 0
      %555 = vmatpush2.bf16.msra.mxu0 0
      %556 = vmatprep.subr.bf16.mxu0 0
      %557 = vmatpush2.bf16.msra.mxu0 0
      %558 = vmatprep.mubr.bf16.mxu0 0
      %559 = vmatmul.mubr.bf16.gmra.mxu0 %v511
      %v560 = vpop.f32.mrf.mxu0
      %v561 = vadd.f32 %v482, %v560
      %v562 = vpop.f32.mrf.mxu0
      %v563 = vadd.f32 %v482, %v562
      %v564 = vpop.f32.mrf.mxu0
      %v565 = vadd.f32 %v487, %v564
      %v566 = vpop.f32.mrf.mxu0
      %v567 = vadd.f32 %v487, %v566
      %568 = vmatprep.mubr.bf16.mxu0 0
      %569 = vmatmul.mubr.bf16.gmra.mxu0 %v514
      %v570 = vpop.f32.mrf.mxu0
      %v571 = vadd.f32 %v492, %v570
      %v572 = vpop.f32.mrf.mxu0
      %v573 = vadd.f32 %v492, %v572
      %v574 = vpop.f32.mrf.mxu0
      %v575 = vadd.f32 %v497, %v574
      %v576 = vpop.f32.mrf.mxu0
      %v577 = vadd.f32 %v497, %v576
      %578 = vdwg.mxu0
      %v579 = vpack.c.bf16 %v565, %v561
      %v580 = vpack.c.bf16 %v567, %v563
      %v581 = vpack.c.bf16 %v575, %v571
      %v582 = vpack.c.bf16 %v577, %v573
      %v587 = vunpack.c.l.b16 %v579
      %v588 = vunpack.c.l.b16 %v580
      %v589 = vunpack.c.h.b16 %v579
      %v590 = vunpack.c.h.b16 %v580
      %v591 = vunpack.c.l.b16 %v581
      %v592 = vunpack.c.l.b16 %v582
      %v593 = vunpack.c.h.b16 %v581
      %v594 = vunpack.c.h.b16 %v582
      %v595 = vpack.c.b16 %v588, %v587
      %v596 = vpack.c.b16 %v590, %v589
      %v597 = vpack.c.b16 %v592, %v591
      %v598 = vpack.c.b16 %v594, %v593
      %603 = vst [vmem:[#allocation4 + $0x4] sm:$0xff] %v595
      %604 = vst [vmem:[#allocation4 + $0x14] sm:$0xff] %v596
      %605 = vst [vmem:[#allocation4 + $0x24] sm:$0xff] %v597
      %606 = vst [vmem:[#allocation4 + $0x34] sm:$0xff] %v598
      %v607 = vld [vmem:[#allocation4] sm:$0xff]
      %v608 = vld [vmem:[#allocation4 + $0x8] sm:$0xf]
      %v609 = vld [vmem:[#allocation4 + $0x10] sm:$0xff]
      %v610 = vld [vmem:[#allocation4 + $0x18] sm:$0xf]
      %v611 = vld [vmem:[#allocation4 + $0x20] sm:$0xff]
      %v612 = vld [vmem:[#allocation4 + $0x28] sm:$0xf]
      %v613 = vld [vmem:[#allocation4 + $0x30] sm:$0xff]
      %v614 = vld [vmem:[#allocation4 + $0x38] sm:$0xf]
      %v615 = vld [vmem:[%s3] sm:$0x3]
      %v624 = vunpack.c.l.b16 %v607
      %v625 = vunpack.c.h.b16 %v607
      %v626 = vunpack.c.l.b16 %v608
      %v627 = vunpack.c.l.b16 %v609
      %v628 = vunpack.c.h.b16 %v609
      %v629 = vunpack.c.l.b16 %v610
      %v630 = vunpack.c.l.b16 %v611
      %v631 = vunpack.c.h.b16 %v611
      %v632 = vunpack.c.l.b16 %v612
      %v633 = vunpack.c.l.b16 %v613
      %v634 = vunpack.c.h.b16 %v613
      %v635 = vunpack.c.l.b16 %v614
      %v636 = vpack.c.b16 %v627, %v624
      %v637 = vpack.c.b16 %v628, %v625
      %v638 = vpack.c.b16 %v629, %v626
      %v639 = vpack.c.b16 %v633, %v630
      %v640 = vpack.c.b16 %v634, %v631
      %v641 = vpack.c.b16 %v635, %v632
      %642 = vrot.lane.b32.xlu0 %v636, 17
      %v643 = vpop.permute.xlu0 %642
      %644 = vrot.lane.b32.xlu0 %v637, 17
      %v645 = vpop.permute.xlu0 %644
      %646 = vrot.lane.b32.xlu0 %v638, 17
      %v647 = vpop.permute.xlu0 %646
      %648 = vrot.lane.b32.xlu0 %v639, 17
      %v649 = vpop.permute.xlu0 %648
      %650 = vrot.lane.b32.xlu0 %v640, 17
      %v651 = vpop.permute.xlu0 %650
      %652 = vrot.lane.b32.xlu0 %v641, 17
      %v653 = vpop.permute.xlu0 %652
      %vm654 = vcmask 138240
      %v655 = vsel %vm654, %v643, %v645
      %v656 = vsel %vm654, %v645, %v647
      %v657 = vsel %vm654, %v649, %v651
      %v658 = vsel %vm654, %v651, %v653
      %vm663 = vcmask 261120
      %v665 = vsel %vm663, %v615, 0
      %667 = vmatprep.subr.bf16.mxu0 0
      %668 = vmatpush1.bf16.msra.mxu0 0
      %669 = vmatprep.subr.bf16.mxu0 0
      %670 = vmatpush1.bf16.msra.mxu0 0
      %671 = vmatprep.subr.bf16.mxu0 0
      %672 = vmatpush1.bf16.msra.mxu0 0
      %673 = vmatprep.subr.bf16.mxu0 0
      %674 = vmatpush1.bf16.msra.mxu0 0
      %675 = vmatprep.subr.bf16.mxu0 0
      %676 = vmatpush1.bf16.msra.mxu0 0
      %677 = vmatprep.subr.bf16.mxu0 0
      %678 = vmatpush1.bf16.msra.mxu0 0
      %679 = vmatprep.subr.bf16.mxu0 %v658
      %680 = vmatpush1.bf16.msra.mxu0 %v657
      %681 = vmatprep.subr.bf16.mxu0 %v656
      %682 = vmatpush1.bf16.msra.mxu0 %v655
      %683 = vmatprep.subr.bf16.mxu0 0
      %684 = vmatpush2.bf16.msra.mxu0 0
      %685 = vmatprep.subr.bf16.mxu0 0
      %686 = vmatpush2.bf16.msra.mxu0 0
      %687 = vmatprep.subr.bf16.mxu0 0
      %688 = vmatpush2.bf16.msra.mxu0 0
      %689 = vmatprep.subr.bf16.mxu0 0
      %690 = vmatpush2.bf16.msra.mxu0 0
      %691 = vmatprep.subr.bf16.mxu0 0
      %692 = vmatpush2.bf16.msra.mxu0 0
      %693 = vmatprep.subr.bf16.mxu0 0
      %694 = vmatpush2.bf16.msra.mxu0 0
      %695 = vmatprep.subr.bf16.mxu0 0
      %696 = vmatpush2.bf16.msra.mxu0 0
      %697 = vmatprep.subr.bf16.mxu0 0
      %698 = vmatpush2.bf16.msra.mxu0 0
      %699 = vmatprep.mubr.bf16.mxu0 0
      %700 = vmatmul.mubr.bf16.gmra.mxu0 %v665
      %v701 = vpop.f32.mrf.mxu0
      %v702 = vadd.f32 0.0, %v701
      %v703 = vpop.f32.mrf.mxu0
      %v704 = vadd.f32 0.0, %v703
      %v705 = vpop.f32.mrf.mxu0
      %v706 = vpop.f32.mrf.mxu0
      %707 = vdwg.mxu0
      %v708 = vsel %vm259, %v702, 0.0
      %v709 = vsel %vm260, %v704, 0.0
      %s710 = scalar_lea.vmem %s3, 2
      %v711 = vld [vmem:[%s710] sm:$0x3]
      %s712 = scalar_lea.vmem %s3, 4
      %v713 = vld [vmem:[%s712] sm:$0x3]
      %714 = vrot.lane.b32.xlu0 %v636, 15
      %v715 = vpop.permute.xlu0 %714
      %716 = vrot.lane.b32.xlu0 %v637, 15
      %v717 = vpop.permute.xlu0 %716
      %718 = vrot.lane.b32.xlu0 %v638, 15
      %v719 = vpop.permute.xlu0 %718
      %720 = vrot.lane.b32.xlu0 %v639, 15
      %v721 = vpop.permute.xlu0 %720
      %722 = vrot.lane.b32.xlu0 %v640, 15
      %v723 = vpop.permute.xlu0 %722
      %724 = vrot.lane.b32.xlu0 %v641, 15
      %v725 = vpop.permute.xlu0 %724
      %vm726 = vcmask 121856
      %v727 = vsel %vm726, %v715, %v717
      %v728 = vsel %vm726, %v717, %v719
      %v729 = vsel %vm726, %v721, %v723
      %v730 = vsel %vm726, %v723, %v725
      %v736 = vsel %vm663, %v713, 0
      %738 = vmatprep.subr.bf16.mxu0 0
      %739 = vmatpush1.bf16.msra.mxu0 0
      %740 = vmatprep.subr.bf16.mxu0 0
      %741 = vmatpush1.bf16.msra.mxu0 0
      %742 = vmatprep.subr.bf16.mxu0 0
      %743 = vmatpush1.bf16.msra.mxu0 0
      %744 = vmatprep.subr.bf16.mxu0 0
      %745 = vmatpush1.bf16.msra.mxu0 0
      %746 = vmatprep.subr.bf16.mxu0 0
      %747 = vmatpush1.bf16.msra.mxu0 0
      %748 = vmatprep.subr.bf16.mxu0 0
      %749 = vmatpush1.bf16.msra.mxu0 0
      %750 = vmatprep.subr.bf16.mxu0 %v730
      %751 = vmatpush1.bf16.msra.mxu0 %v729
      %752 = vmatprep.subr.bf16.mxu0 %v728
      %753 = vmatpush1.bf16.msra.mxu0 %v727
      %754 = vmatprep.subr.bf16.mxu0 0
      %755 = vmatpush2.bf16.msra.mxu0 0
      %756 = vmatprep.subr.bf16.mxu0 0
      %757 = vmatpush2.bf16.msra.mxu0 0
      %758 = vmatprep.subr.bf16.mxu0 0
      %759 = vmatpush2.bf16.msra.mxu0 0
      %760 = vmatprep.subr.bf16.mxu0 0
      %761 = vmatpush2.bf16.msra.mxu0 0
      %762 = vmatprep.subr.bf16.mxu0 0
      %763 = vmatpush2.bf16.msra.mxu0 0
      %764 = vmatprep.subr.bf16.mxu0 0
      %765 = vmatpush2.bf16.msra.mxu0 0
      %766 = vmatprep.subr.bf16.mxu0 0
      %767 = vmatpush2.bf16.msra.mxu0 0
      %768 = vmatprep.subr.bf16.mxu0 0
      %769 = vmatpush2.bf16.msra.mxu0 0
      %770 = vmatprep.mubr.bf16.mxu0 0
      %771 = vmatmul.mubr.bf16.gmra.mxu0 %v736
      %v772 = vpop.f32.mrf.mxu0
      %v773 = vadd.f32 0.0, %v772
      %v774 = vpop.f32.mrf.mxu0
      %v775 = vadd.f32 0.0, %v774
      %v776 = vpop.f32.mrf.mxu0
      %v777 = vpop.f32.mrf.mxu0
      %778 = vdwg.mxu0
      %v779 = vsel %vm304, %v773, 0.0
      %v780 = vsel %vm305, %v775, 0.0
      %s781 = scalar_lea.vmem %s3, 6
      %v782 = vld [vmem:[%s781] sm:$0x3]
      %783 = vrot.lane.b32.xlu0 %v636, 1
      %v784 = vpop.permute.xlu0 %783
      %785 = vrot.lane.b32.xlu0 %v637, 1
      %v786 = vpop.permute.xlu0 %785
      %787 = vrot.lane.b32.xlu0 %v638, 1
      %v788 = vpop.permute.xlu0 %787
      %789 = vrot.lane.b32.xlu0 %v639, 1
      %v790 = vpop.permute.xlu0 %789
      %791 = vrot.lane.b32.xlu0 %v640, 1
      %v792 = vpop.permute.xlu0 %791
      %793 = vrot.lane.b32.xlu0 %v641, 1
      %v794 = vpop.permute.xlu0 %793
      %vm795 = vcmask 7168
      %v796 = vsel %vm795, %v784, %v786
      %v797 = vsel %vm795, %v786, %v788
      %v798 = vsel %vm795, %v790, %v792
      %v799 = vsel %vm795, %v792, %v794
      %v805 = vsel %vm663, %v782, 0
      %807 = vmatprep.subr.bf16.mxu0 0
      %808 = vmatpush1.bf16.msra.mxu0 0
      %809 = vmatprep.subr.bf16.mxu0 0
      %810 = vmatpush1.bf16.msra.mxu0 0
      %811 = vmatprep.subr.bf16.mxu0 0
      %812 = vmatpush1.bf16.msra.mxu0 0
      %813 = vmatprep.subr.bf16.mxu0 0
      %814 = vmatpush1.bf16.msra.mxu0 0
      %815 = vmatprep.subr.bf16.mxu0 0
      %816 = vmatpush1.bf16.msra.mxu0 0
      %817 = vmatprep.subr.bf16.mxu0 0
      %818 = vmatpush1.bf16.msra.mxu0 0
      %819 = vmatprep.subr.bf16.mxu0 %v799
      %820 = vmatpush1.bf16.msra.mxu0 %v798
      %821 = vmatprep.subr.bf16.mxu0 %v797
      %822 = vmatpush1.bf16.msra.mxu0 %v796
      %823 = vmatprep.subr.bf16.mxu0 0
      %824 = vmatpush2.bf16.msra.mxu0 0
      %825 = vmatprep.subr.bf16.mxu0 0
      %826 = vmatpush2.bf16.msra.mxu0 0
      %827 = vmatprep.subr.bf16.mxu0 0
      %828 = vmatpush2.bf16.msra.mxu0 0
      %829 = vmatprep.subr.bf16.mxu0 0
      %830 = vmatpush2.bf16.msra.mxu0 0
      %831 = vmatprep.subr.bf16.mxu0 0
      %832 = vmatpush2.bf16.msra.mxu0 0
      %833 = vmatprep.subr.bf16.mxu0 0
      %834 = vmatpush2.bf16.msra.mxu0 0
      %835 = vmatprep.subr.bf16.mxu0 0
      %836 = vmatpush2.bf16.msra.mxu0 0
      %837 = vmatprep.subr.bf16.mxu0 0
      %838 = vmatpush2.bf16.msra.mxu0 0
      %839 = vmatprep.mubr.bf16.mxu0 0
      %840 = vmatmul.mubr.bf16.gmra.mxu0 %v805
      %v841 = vpop.f32.mrf.mxu0
      %v842 = vadd.f32 0.0, %v841
      %v843 = vpop.f32.mrf.mxu0
      %v844 = vadd.f32 0.0, %v843
      %v845 = vpop.f32.mrf.mxu0
      %v846 = vpop.f32.mrf.mxu0
      %847 = vdwg.mxu0
      %v848 = vsel %vm259, %v842, 0.0
      %v849 = vsel %vm260, %v844, 0.0
      %v850 = vadd.f32 %v708, %v848
      %v851 = vadd.f32 %v709, %v849
      %v852 = vld [vmem:[#allocation4 + $0x4] sm:$0xff]
      %v853 = vld [vmem:[#allocation4 + $0x14] sm:$0xff]
      %v854 = vld [vmem:[#allocation4 + $0x24] sm:$0xff]
      %v855 = vld [vmem:[#allocation4 + $0x34] sm:$0xff]
      %s856 = scalar_lea.vmem %s3, 8
      %v857 = vld [vmem:[%s856] sm:$0x3]
      %v862 = vunpack.c.l.b16 %v852
      %v863 = vunpack.c.h.b16 %v852
      %v864 = vunpack.c.l.b16 %v853
      %v865 = vunpack.c.h.b16 %v853
      %v866 = vunpack.c.l.b16 %v854
      %v867 = vunpack.c.h.b16 %v854
      %v868 = vunpack.c.l.b16 %v855
      %v869 = vunpack.c.h.b16 %v855
      %v870 = vpack.c.b16 %v864, %v862
      %v871 = vpack.c.b16 %v865, %v863
      %v872 = vpack.c.b16 %v868, %v866
      %v873 = vpack.c.b16 %v869, %v867
      %v879 = vsel %vm663, %v857, 0
      %881 = vmatprep.subr.bf16.mxu0 0
      %882 = vmatpush1.bf16.msra.mxu0 0
      %883 = vmatprep.subr.bf16.mxu0 0
      %884 = vmatpush1.bf16.msra.mxu0 0
      %885 = vmatprep.subr.bf16.mxu0 0
      %886 = vmatpush1.bf16.msra.mxu0 0
      %887 = vmatprep.subr.bf16.mxu0 0
      %888 = vmatpush1.bf16.msra.mxu0 0
      %889 = vmatprep.subr.bf16.mxu0 0
      %890 = vmatpush1.bf16.msra.mxu0 0
      %891 = vmatprep.subr.bf16.mxu0 0
      %892 = vmatpush1.bf16.msra.mxu0 0
      %893 = vmatprep.subr.bf16.mxu0 %v873
      %894 = vmatpush1.bf16.msra.mxu0 %v872
      %895 = vmatprep.subr.bf16.mxu0 %v871
      %896 = vmatpush1.bf16.msra.mxu0 %v870
      %897 = vmatprep.subr.bf16.mxu0 0
      %898 = vmatpush2.bf16.msra.mxu0 0
      %899 = vmatprep.subr.bf16.mxu0 0
      %900 = vmatpush2.bf16.msra.mxu0 0
      %901 = vmatprep.subr.bf16.mxu0 0
      %902 = vmatpush2.bf16.msra.mxu0 0
      %903 = vmatprep.subr.bf16.mxu0 0
      %904 = vmatpush2.bf16.msra.mxu0 0
      %905 = vmatprep.subr.bf16.mxu0 0
      %906 = vmatpush2.bf16.msra.mxu0 0
      %907 = vmatprep.subr.bf16.mxu0 0
      %908 = vmatpush2.bf16.msra.mxu0 0
      %909 = vmatprep.subr.bf16.mxu0 0
      %910 = vmatpush2.bf16.msra.mxu0 0
      %911 = vmatprep.subr.bf16.mxu0 0
      %912 = vmatpush2.bf16.msra.mxu0 0
      %913 = vmatprep.mubr.bf16.mxu0 0
      %914 = vmatmul.mubr.bf16.gmra.mxu0 %v879
      %v915 = vpop.f32.mrf.mxu0
      %v916 = vadd.f32 0.0, %v915
      %v917 = vpop.f32.mrf.mxu0
      %v918 = vadd.f32 0.0, %v917
      %v919 = vpop.f32.mrf.mxu0
      %v920 = vpop.f32.mrf.mxu0
      %921 = vdwg.mxu0
      %922 = vrot.lane.b32.xlu0 %v636, 16
      %v923 = vpop.permute.xlu0 %922
      %924 = vrot.lane.b32.xlu0 %v637, 16
      %v925 = vpop.permute.xlu0 %924
      %926 = vrot.lane.b32.xlu0 %v638, 16
      %v927 = vpop.permute.xlu0 %926
      %928 = vrot.lane.b32.xlu0 %v639, 16
      %v929 = vpop.permute.xlu0 %928
      %930 = vrot.lane.b32.xlu0 %v640, 16
      %v931 = vpop.permute.xlu0 %930
      %932 = vrot.lane.b32.xlu0 %v641, 16
      %v933 = vpop.permute.xlu0 %932
      %vm934 = vcmask 130048
      %v935 = vsel %vm934, %v923, %v925
      %v936 = vsel %vm934, %v925, %v927
      %v937 = vsel %vm934, %v929, %v931
      %v938 = vsel %vm934, %v931, %v933
      %v944 = vsel %vm663, %v711, 0
      %946 = vmatprep.subr.bf16.mxu0 0
      %947 = vmatpush1.bf16.msra.mxu0 0
      %948 = vmatprep.subr.bf16.mxu0 0
      %949 = vmatpush1.bf16.msra.mxu0 0
      %950 = vmatprep.subr.bf16.mxu0 0
      %951 = vmatpush1.bf16.msra.mxu0 0
      %952 = vmatprep.subr.bf16.mxu0 0
      %953 = vmatpush1.bf16.msra.mxu0 0
      %954 = vmatprep.subr.bf16.mxu0 0
      %955 = vmatpush1.bf16.msra.mxu0 0
      %956 = vmatprep.subr.bf16.mxu0 0
      %957 = vmatpush1.bf16.msra.mxu0 0
      %958 = vmatprep.subr.bf16.mxu0 %v938
      %959 = vmatpush1.bf16.msra.mxu0 %v937
      %960 = vmatprep.subr.bf16.mxu0 %v936
      %961 = vmatpush1.bf16.msra.mxu0 %v935
      %962 = vmatprep.subr.bf16.mxu0 0
      %963 = vmatpush2.bf16.msra.mxu0 0
      %964 = vmatprep.subr.bf16.mxu0 0
      %965 = vmatpush2.bf16.msra.mxu0 0
      %966 = vmatprep.subr.bf16.mxu0 0
      %967 = vmatpush2.bf16.msra.mxu0 0
      %968 = vmatprep.subr.bf16.mxu0 0
      %969 = vmatpush2.bf16.msra.mxu0 0
      %970 = vmatprep.subr.bf16.mxu0 0
      %971 = vmatpush2.bf16.msra.mxu0 0
      %972 = vmatprep.subr.bf16.mxu0 0
      %973 = vmatpush2.bf16.msra.mxu0 0
      %974 = vmatprep.subr.bf16.mxu0 0
      %975 = vmatpush2.bf16.msra.mxu0 0
      %976 = vmatprep.subr.bf16.mxu0 0
      %977 = vmatpush2.bf16.msra.mxu0 0
      %978 = vmatprep.mubr.bf16.mxu0 0
      %979 = vmatmul.mubr.bf16.gmra.mxu0 %v944
      %v980 = vpop.f32.mrf.mxu0
      %v981 = vadd.f32 %v916, %v980
      %v982 = vpop.f32.mrf.mxu0
      %v983 = vadd.f32 %v918, %v982
      %v984 = vpop.f32.mrf.mxu0
      %v985 = vpop.f32.mrf.mxu0
      %986 = vdwg.mxu0
      %v987 = vld [vmem:[#allocation4 + $0x4] sm:$0xff]
      %v988 = vld [vmem:[#allocation4 + $0xc] sm:$0xf]
      %v989 = vld [vmem:[#allocation4 + $0x14] sm:$0xff]
      %v990 = vld [vmem:[#allocation4 + $0x1c] sm:$0xf]
      %v991 = vld [vmem:[#allocation4 + $0x24] sm:$0xff]
      %v992 = vld [vmem:[#allocation4 + $0x2c] sm:$0xf]
      %v993 = vld [vmem:[#allocation4 + $0x34] sm:$0xff]
      %v994 = vld [vmem:[#allocation4 + $0x3c] sm:$0xf]
      %s995 = scalar_lea.vmem %s3, 10
      %v996 = vld [vmem:[%s995] sm:$0x3]
      %v1005 = vunpack.c.l.b16 %v987
      %v1006 = vunpack.c.h.b16 %v987
      %v1007 = vunpack.c.l.b16 %v988
      %v1008 = vunpack.c.l.b16 %v989
      %v1009 = vunpack.c.h.b16 %v989
      %v1010 = vunpack.c.l.b16 %v990
      %v1011 = vunpack.c.l.b16 %v991
      %v1012 = vunpack.c.h.b16 %v991
      %v1013 = vunpack.c.l.b16 %v992
      %v1014 = vunpack.c.l.b16 %v993
      %v1015 = vunpack.c.h.b16 %v993
      %v1016 = vunpack.c.l.b16 %v994
      %v1017 = vpack.c.b16 %v1008, %v1005
      %v1018 = vpack.c.b16 %v1009, %v1006
      %v1019 = vpack.c.b16 %v1010, %v1007
      %v1020 = vpack.c.b16 %v1014, %v1011
      %v1021 = vpack.c.b16 %v1015, %v1012
      %v1022 = vpack.c.b16 %v1016, %v1013
      %1023 = vrot.lane.b32.xlu0 %v1017, 127
      %v1024 = vpop.permute.xlu0 %1023
      %1025 = vrot.lane.b32.xlu0 %v1018, 127
      %v1026 = vpop.permute.xlu0 %1025
      %1027 = vrot.lane.b32.xlu0 %v1019, 127
      %v1028 = vpop.permute.xlu0 %1027
      %1029 = vrot.lane.b32.xlu0 %v1020, 127
      %v1030 = vpop.permute.xlu0 %1029
      %1031 = vrot.lane.b32.xlu0 %v1021, 127
      %v1032 = vpop.permute.xlu0 %1031
      %1033 = vrot.lane.b32.xlu0 %v1022, 127
      %v1034 = vpop.permute.xlu0 %1033
      %vm1035 = vcmask 1039360
      %v1036 = vsel %vm1035, %v1024, %v1026
      %v1037 = vsel %vm1035, %v1026, %v1028
      %v1038 = vsel %vm1035, %v1030, %v1032
      %v1039 = vsel %vm1035, %v1032, %v1034
      %v1045 = vsel %vm663, %v996, 0
      %1047 = vmatprep.subr.bf16.mxu0 0
      %1048 = vmatpush1.bf16.msra.mxu0 0
      %1049 = vmatprep.subr.bf16.mxu0 0
      %1050 = vmatpush1.bf16.msra.mxu0 0
      %1051 = vmatprep.subr.bf16.mxu0 0
      %1052 = vmatpush1.bf16.msra.mxu0 0
      %1053 = vmatprep.subr.bf16.mxu0 0
      %1054 = vmatpush1.bf16.msra.mxu0 0
      %1055 = vmatprep.subr.bf16.mxu0 0
      %1056 = vmatpush1.bf16.msra.mxu0 0
      %1057 = vmatprep.subr.bf16.mxu0 0
      %1058 = vmatpush1.bf16.msra.mxu0 0
      %1059 = vmatprep.subr.bf16.mxu0 %v1039
      %1060 = vmatpush1.bf16.msra.mxu0 %v1038
      %1061 = vmatprep.subr.bf16.mxu0 %v1037
      %1062 = vmatpush1.bf16.msra.mxu0 %v1036
      %1063 = vmatprep.subr.bf16.mxu0 0
      %1064 = vmatpush2.bf16.msra.mxu0 0
      %1065 = vmatprep.subr.bf16.mxu0 0
      %1066 = vmatpush2.bf16.msra.mxu0 0
      %1067 = vmatprep.subr.bf16.mxu0 0
      %1068 = vmatpush2.bf16.msra.mxu0 0
      %1069 = vmatprep.subr.bf16.mxu0 0
      %1070 = vmatpush2.bf16.msra.mxu0 0
      %1071 = vmatprep.subr.bf16.mxu0 0
      %1072 = vmatpush2.bf16.msra.mxu0 0
      %1073 = vmatprep.subr.bf16.mxu0 0
      %1074 = vmatpush2.bf16.msra.mxu0 0
      %1075 = vmatprep.subr.bf16.mxu0 0
      %1076 = vmatpush2.bf16.msra.mxu0 0
      %1077 = vmatprep.subr.bf16.mxu0 0
      %1078 = vmatpush2.bf16.msra.mxu0 0
      %1079 = vmatprep.mubr.bf16.mxu0 0
      %1080 = vmatmul.mubr.bf16.gmra.mxu0 %v1045
      %v1081 = vpop.f32.mrf.mxu0
      %v1082 = vadd.f32 0.0, %v1081
      %v1083 = vpop.f32.mrf.mxu0
      %v1084 = vadd.f32 0.0, %v1083
      %v1085 = vpop.f32.mrf.mxu0
      %v1086 = vpop.f32.mrf.mxu0
      %1087 = vdwg.mxu0
      %v1088 = vsel %vm304, %v1082, 0.0
      %v1089 = vsel %vm305, %v1084, 0.0
      %v1090 = vadd.f32 %v779, %v1088
      %v1091 = vadd.f32 %v780, %v1089
      %s1092 = scalar_lea.vmem %s3, 12
      %v1093 = vld [vmem:[%s1092] sm:$0x3]
      %1094 = vrot.lane.b32.xlu0 %v1017, 113
      %v1095 = vpop.permute.xlu0 %1094
      %1096 = vrot.lane.b32.xlu0 %v1018, 113
      %v1097 = vpop.permute.xlu0 %1096
      %1098 = vrot.lane.b32.xlu0 %v1019, 113
      %v1099 = vpop.permute.xlu0 %1098
      %1100 = vrot.lane.b32.xlu0 %v1020, 113
      %v1101 = vpop.permute.xlu0 %1100
      %1102 = vrot.lane.b32.xlu0 %v1021, 113
      %v1103 = vpop.permute.xlu0 %1102
      %1104 = vrot.lane.b32.xlu0 %v1022, 113
      %v1105 = vpop.permute.xlu0 %1104
      %vm1106 = vcmask 924672
      %v1107 = vsel %vm1106, %v1095, %v1097
      %v1108 = vsel %vm1106, %v1097, %v1099
      %v1109 = vsel %vm1106, %v1101, %v1103
      %v1110 = vsel %vm1106, %v1103, %v1105
      %v1116 = vsel %vm663, %v1093, 0
      %1118 = vmatprep.subr.bf16.mxu0 0
      %1119 = vmatpush1.bf16.msra.mxu0 0
      %1120 = vmatprep.subr.bf16.mxu0 0
      %1121 = vmatpush1.bf16.msra.mxu0 0
      %1122 = vmatprep.subr.bf16.mxu0 0
      %1123 = vmatpush1.bf16.msra.mxu0 0
      %1124 = vmatprep.subr.bf16.mxu0 0
      %1125 = vmatpush1.bf16.msra.mxu0 0
      %1126 = vmatprep.subr.bf16.mxu0 0
      %1127 = vmatpush1.bf16.msra.mxu0 0
      %1128 = vmatprep.subr.bf16.mxu0 0
      %1129 = vmatpush1.bf16.msra.mxu0 0
      %1130 = vmatprep.subr.bf16.mxu0 %v1110
      %1131 = vmatpush1.bf16.msra.mxu0 %v1109
      %1132 = vmatprep.subr.bf16.mxu0 %v1108
      %1133 = vmatpush1.bf16.msra.mxu0 %v1107
      %1134 = vmatprep.subr.bf16.mxu0 0
      %1135 = vmatpush2.bf16.msra.mxu0 0
      %1136 = vmatprep.subr.bf16.mxu0 0
      %1137 = vmatpush2.bf16.msra.mxu0 0
      %1138 = vmatprep.subr.bf16.mxu0 0
      %1139 = vmatpush2.bf16.msra.mxu0 0
      %1140 = vmatprep.subr.bf16.mxu0 0
      %1141 = vmatpush2.bf16.msra.mxu0 0
      %1142 = vmatprep.subr.bf16.mxu0 0
      %1143 = vmatpush2.bf16.msra.mxu0 0
      %1144 = vmatprep.subr.bf16.mxu0 0
      %1145 = vmatpush2.bf16.msra.mxu0 0
      %1146 = vmatprep.subr.bf16.mxu0 0
      %1147 = vmatpush2.bf16.msra.mxu0 0
      %1148 = vmatprep.subr.bf16.mxu0 0
      %1149 = vmatpush2.bf16.msra.mxu0 0
      %1150 = vmatprep.mubr.bf16.mxu0 0
      %1151 = vmatmul.mubr.bf16.gmra.mxu0 %v1116
      %v1152 = vpop.f32.mrf.mxu0
      %v1153 = vadd.f32 0.0, %v1152
      %v1154 = vpop.f32.mrf.mxu0
      %v1155 = vadd.f32 0.0, %v1154
      %v1156 = vpop.f32.mrf.mxu0
      %v1157 = vpop.f32.mrf.mxu0
      %1158 = vdwg.mxu0
      %v1159 = vsel %vm259, %v1153, 0.0
      %v1160 = vsel %vm260, %v1155, 0.0
      %v1161 = vadd.f32 %v850, %v1159
      %v1162 = vadd.f32 %v851, %v1160
      %s1163 = scalar_lea.vmem %s3, 14
      %v1164 = vld [vmem:[%s1163] sm:$0x3]
      %1165 = vrot.lane.b32.xlu0 %v1017, 112
      %v1166 = vpop.permute.xlu0 %1165
      %1167 = vrot.lane.b32.xlu0 %v1018, 112
      %v1168 = vpop.permute.xlu0 %1167
      %1169 = vrot.lane.b32.xlu0 %v1019, 112
      %v1170 = vpop.permute.xlu0 %1169
      %1171 = vrot.lane.b32.xlu0 %v1020, 112
      %v1172 = vpop.permute.xlu0 %1171
      %1173 = vrot.lane.b32.xlu0 %v1021, 112
      %v1174 = vpop.permute.xlu0 %1173
      %1175 = vrot.lane.b32.xlu0 %v1022, 112
      %v1176 = vpop.permute.xlu0 %1175
      %vm1177 = vcmask 916480
      %v1178 = vsel %vm1177, %v1166, %v1168
      %v1179 = vsel %vm1177, %v1168, %v1170
      %v1180 = vsel %vm1177, %v1172, %v1174
      %v1181 = vsel %vm1177, %v1174, %v1176
      %v1187 = vsel %vm663, %v1164, 0
      %1189 = vmatprep.subr.bf16.mxu0 0
      %1190 = vmatpush1.bf16.msra.mxu0 0
      %1191 = vmatprep.subr.bf16.mxu0 0
      %1192 = vmatpush1.bf16.msra.mxu0 0
      %1193 = vmatprep.subr.bf16.mxu0 0
      %1194 = vmatpush1.bf16.msra.mxu0 0
      %1195 = vmatprep.subr.bf16.mxu0 0
      %1196 = vmatpush1.bf16.msra.mxu0 0
      %1197 = vmatprep.subr.bf16.mxu0 0
      %1198 = vmatpush1.bf16.msra.mxu0 0
      %1199 = vmatprep.subr.bf16.mxu0 0
      %1200 = vmatpush1.bf16.msra.mxu0 0
      %1201 = vmatprep.subr.bf16.mxu0 %v1181
      %1202 = vmatpush1.bf16.msra.mxu0 %v1180
      %1203 = vmatprep.subr.bf16.mxu0 %v1179
      %1204 = vmatpush1.bf16.msra.mxu0 %v1178
      %1205 = vmatprep.subr.bf16.mxu0 0
      %1206 = vmatpush2.bf16.msra.mxu0 0
      %1207 = vmatprep.subr.bf16.mxu0 0
      %1208 = vmatpush2.bf16.msra.mxu0 0
      %1209 = vmatprep.subr.bf16.mxu0 0
      %1210 = vmatpush2.bf16.msra.mxu0 0
      %1211 = vmatprep.subr.bf16.mxu0 0
      %1212 = vmatpush2.bf16.msra.mxu0 0
      %1213 = vmatprep.subr.bf16.mxu0 0
      %1214 = vmatpush2.bf16.msra.mxu0 0
      %1215 = vmatprep.subr.bf16.mxu0 0
      %1216 = vmatpush2.bf16.msra.mxu0 0
      %1217 = vmatprep.subr.bf16.mxu0 0
      %1218 = vmatpush2.bf16.msra.mxu0 0
      %1219 = vmatprep.subr.bf16.mxu0 0
      %1220 = vmatpush2.bf16.msra.mxu0 0
      %1221 = vmatprep.mubr.bf16.mxu0 0
      %1222 = vmatmul.mubr.bf16.gmra.mxu0 %v1187
      %v1223 = vpop.f32.mrf.mxu0
      %v1224 = vadd.f32 0.0, %v1223
      %v1225 = vpop.f32.mrf.mxu0
      %v1226 = vadd.f32 0.0, %v1225
      %v1227 = vpop.f32.mrf.mxu0
      %v1228 = vpop.f32.mrf.mxu0
      %1229 = vdwg.mxu0
      %v1230 = vadd.f32 %v981, %v1224
      %v1231 = vadd.f32 %v983, %v1226
      %s1232 = scalar_lea.vmem %s3, 16
      %v1233 = vld [vmem:[%s1232] sm:$0x3]
      %1234 = vrot.lane.b32.xlu0 %v1017, 111
      %v1235 = vpop.permute.xlu0 %1234
      %1236 = vrot.lane.b32.xlu0 %v1018, 111
      %v1237 = vpop.permute.xlu0 %1236
      %1238 = vrot.lane.b32.xlu0 %v1019, 111
      %v1239 = vpop.permute.xlu0 %1238
      %1240 = vrot.lane.b32.xlu0 %v1020, 111
      %v1241 = vpop.permute.xlu0 %1240
      %1242 = vrot.lane.b32.xlu0 %v1021, 111
      %v1243 = vpop.permute.xlu0 %1242
      %1244 = vrot.lane.b32.xlu0 %v1022, 111
      %v1245 = vpop.permute.xlu0 %1244
      %vm1246 = vcmask 908288
      %v1247 = vsel %vm1246, %v1235, %v1237
      %v1248 = vsel %vm1246, %v1237, %v1239
      %v1249 = vsel %vm1246, %v1241, %v1243
      %v1250 = vsel %vm1246, %v1243, %v1245
      %v1256 = vsel %vm663, %v1233, 0
      %1258 = vmatprep.subr.bf16.mxu0 0
      %1259 = vmatpush1.bf16.msra.mxu0 0
      %1260 = vmatprep.subr.bf16.mxu0 0
      %1261 = vmatpush1.bf16.msra.mxu0 0
      %1262 = vmatprep.subr.bf16.mxu0 0
      %1263 = vmatpush1.bf16.msra.mxu0 0
      %1264 = vmatprep.subr.bf16.mxu0 0
      %1265 = vmatpush1.bf16.msra.mxu0 0
      %1266 = vmatprep.subr.bf16.mxu0 0
      %1267 = vmatpush1.bf16.msra.mxu0 0
      %1268 = vmatprep.subr.bf16.mxu0 0
      %1269 = vmatpush1.bf16.msra.mxu0 0
      %1270 = vmatprep.subr.bf16.mxu0 %v1250
      %1271 = vmatpush1.bf16.msra.mxu0 %v1249
      %1272 = vmatprep.subr.bf16.mxu0 %v1248
      %1273 = vmatpush1.bf16.msra.mxu0 %v1247
      %1274 = vmatprep.subr.bf16.mxu0 0
      %1275 = vmatpush2.bf16.msra.mxu0 0
      %1276 = vmatprep.subr.bf16.mxu0 0
      %1277 = vmatpush2.bf16.msra.mxu0 0
      %1278 = vmatprep.subr.bf16.mxu0 0
      %1279 = vmatpush2.bf16.msra.mxu0 0
      %1280 = vmatprep.subr.bf16.mxu0 0
      %1281 = vmatpush2.bf16.msra.mxu0 0
      %1282 = vmatprep.subr.bf16.mxu0 0
      %1283 = vmatpush2.bf16.msra.mxu0 0
      %1284 = vmatprep.subr.bf16.mxu0 0
      %1285 = vmatpush2.bf16.msra.mxu0 0
      %1286 = vmatprep.subr.bf16.mxu0 0
      %1287 = vmatpush2.bf16.msra.mxu0 0
      %1288 = vmatprep.subr.bf16.mxu0 0
      %1289 = vmatpush2.bf16.msra.mxu0 0
      %1290 = vmatprep.mubr.bf16.mxu0 0
      %1291 = vmatmul.mubr.bf16.gmra.mxu0 %v1256
      %v1292 = vpop.f32.mrf.mxu0
      %v1293 = vadd.f32 0.0, %v1292
      %v1294 = vpop.f32.mrf.mxu0
      %v1295 = vadd.f32 0.0, %v1294
      %v1296 = vpop.f32.mrf.mxu0
      %v1297 = vpop.f32.mrf.mxu0
      %1298 = vdwg.mxu0
      %v1299 = vsel %vm304, %v1293, 0.0
      %v1300 = vsel %vm305, %v1295, 0.0
      %v1301 = vadd.f32 %v1090, %v1299
      %v1302 = vadd.f32 %v1091, %v1300
      %v1303 = vadd.f32 %v1161, %v1230
      %v1304 = vadd.f32 %v1162, %v1231
      %v1305 = vadd.f32 %v1303, %v1301
      %v1306 = vadd.f32 %v1304, %v1302
      %v1307 = vld [vmem:[%s4] sm:$0x7]
      %1309 = vset.pattern.permute.xlu0 0
      %1310 = vperm.xlu0 %1309, %v1307
      %v1311 = vpop.permute.xlu0 %1310
      %v1313 = vadd.f32 %v1305, %v1311
      %v1314 = vadd.f32 %v1306, %v1311
      %v1317 = vcombine.low %v1313, %v1314
      %1319 = vst [vmem:[%s231] sm:$0x77] %v1317
      %s1320 = scalar_lea.vmem %s224, 8
      %v1321 = vld [vmem:[%s1320] sm:$0x77]
      %1322 = vst [vmem:[#allocation2 + $0x4] sm:$0x77] %v1321
      %v1323 = vld [vmem:[#allocation2] sm:$0x77]
      %v1324 = vld [vmem:[#allocation2 + $0x8] sm:$0x7]
      %v1327 = vcombine.high %v1323, %v1323
      %1328 = vrot.lane.b32.xlu0 %v1323, 17
      %v1329 = vpop.permute.xlu0 %1328
      %1330 = vrot.lane.b32.xlu0 %v1327, 17
      %v1331 = vpop.permute.xlu0 %1330
      %1332 = vrot.lane.b32.xlu0 %v1324, 17
      %v1333 = vpop.permute.xlu0 %1332
      %v1334 = vsel %vm270, %v1329, %v1331
      %v1335 = vsel %vm270, %v1331, %v1333
      %v1338 = vsel %vm259, %v1334, 0.0
      %v1339 = vsel %vm260, %v1335, 0.0
      %1340 = vst [vmem:[#allocation3] sm:$0x7] %v1338
      %1341 = vst [vmem:[#allocation3 + $0x8] sm:$0x7] %v1339
      %v1342 = vld [vmem:[#allocation2] sm:$0x77]
      %v1343 = vld [vmem:[#allocation2 + $0x8] sm:$0x7]
      %v1346 = vcombine.high %v1342, %v1342
      %v1347 = vrot.slane %v1342, 5
      %v1348 = vrot.slane %v1346, 5
      %v1349 = vrot.slane %v1343, 5
      %1350 = vrot.lane.b32.xlu0 %v1347, 16
      %v1351 = vpop.permute.xlu0 %1350
      %1352 = vrot.lane.b32.xlu0 %v1348, 16
      %v1353 = vpop.permute.xlu0 %1352
      %1354 = vrot.lane.b32.xlu0 %v1349, 16
      %v1355 = vpop.permute.xlu0 %1354
      %v1356 = vsel %vm293, %v1351, %v1353
      %v1357 = vsel %vm293, %v1353, %v1355
      %1360 = vst [vmem:[#allocation3] sm:$0x38] %v1356
      %1361 = vst [vmem:[#allocation3 + $0x8] sm:$0x38] %v1357
      %v1362 = vld [vmem:[#allocation2] sm:$0x77]
      %v1363 = vld [vmem:[#allocation2 + $0x8] sm:$0x7]
      %v1366 = vcombine.high %v1362, %v1362
      %1367 = vrot.lane.b32.xlu0 %v1362, 15
      %v1368 = vpop.permute.xlu0 %1367
      %1369 = vrot.lane.b32.xlu0 %v1366, 15
      %v1370 = vpop.permute.xlu0 %1369
      %1371 = vrot.lane.b32.xlu0 %v1363, 15
      %v1372 = vpop.permute.xlu0 %1371
      %v1373 = vsel %vm315, %v1368, %v1370
      %v1374 = vsel %vm315, %v1370, %v1372
      %v1377 = vsel %vm304, %v1373, 0.0
      %v1378 = vsel %vm305, %v1374, 0.0
      %v1381 = vrot.slane %v1377, 2
      %v1382 = vrot.slane %v1378, 2
      %1385 = vst [vmem:[#allocation3] sm:$0xc0] %v1381
      %1386 = vst [vmem:[#allocation3 + $0x8] sm:$0xc0] %v1382
      %1387 = vst [vmem:[#allocation3 + $0x10] sm:$0x1] %v1381
      %1388 = vst [vmem:[#allocation3 + $0x18] sm:$0x1] %v1382
      %v1389 = vld [vmem:[#allocation2] sm:$0x77]
      %v1390 = vld [vmem:[#allocation2 + $0x8] sm:$0x7]
      %v1393 = vcombine.high %v1389, %v1389
      %1394 = vrot.lane.b32.xlu0 %v1389, 1
      %v1395 = vpop.permute.xlu0 %1394
      %1396 = vrot.lane.b32.xlu0 %v1393, 1
      %v1397 = vpop.permute.xlu0 %1396
      %1398 = vrot.lane.b32.xlu0 %v1390, 1
      %v1399 = vpop.permute.xlu0 %1398
      %v1400 = vsel %vm343, %v1395, %v1397
      %v1401 = vsel %vm343, %v1397, %v1399
      %v1404 = vsel %vm259, %v1400, 0.0
      %v1405 = vsel %vm260, %v1401, 0.0
      %v1408 = vrot.slane %v1404, 7
      %v1409 = vrot.slane %v1405, 7
      %1412 = vst [vmem:[#allocation3 + $0x10] sm:$0xe] %v1408
      %1413 = vst [vmem:[#allocation3 + $0x18] sm:$0xe] %v1409
      %v1414 = vld [vmem:[#allocation2 + $0x4] sm:$0x77]
      %v1416 = vcombine.low %v1414, %v1414
      %1418 = vst [vmem:[#allocation3 + $0x10] sm:$0x70] %v1416
      %1419 = vst [vmem:[#allocation3 + $0x18] sm:$0x70] %v1414
      %v1420 = vld [vmem:[#allocation2 + $0x4] sm:$0x77]
      %v1421 = vld [vmem:[#allocation2 + $0xc] sm:$0x7]
      %v1424 = vcombine.high %v1420, %v1420
      %1425 = vrot.lane.b32.xlu0 %v1420, 127
      %v1426 = vpop.permute.xlu0 %1425
      %1427 = vrot.lane.b32.xlu0 %v1424, 127
      %v1428 = vpop.permute.xlu0 %1427
      %1429 = vrot.lane.b32.xlu0 %v1421, 127
      %v1430 = vpop.permute.xlu0 %1429
      %v1431 = vsel %vm375, %v1426, %v1428
      %v1432 = vsel %vm375, %v1428, %v1430
      %v1435 = vsel %vm304, %v1431, 0.0
      %v1436 = vsel %vm305, %v1432, 0.0
      %v1439 = vrot.slane %v1435, 1
      %v1440 = vrot.slane %v1436, 1
      %1443 = vst [vmem:[#allocation3 + $0x10] sm:$0x80] %v1439
      %1444 = vst [vmem:[#allocation3 + $0x18] sm:$0x80] %v1440
      %1445 = vst [vmem:[#allocation3 + $0x20] sm:$0x3] %v1439
      %1446 = vst [vmem:[#allocation3 + $0x28] sm:$0x3] %v1440
      %v1447 = vld [vmem:[#allocation2 + $0x4] sm:$0x77]
      %v1448 = vld [vmem:[#allocation2 + $0xc] sm:$0x7]
      %v1451 = vcombine.high %v1447, %v1447
      %1452 = vrot.lane.b32.xlu0 %v1447, 113
      %v1453 = vpop.permute.xlu0 %1452
      %1454 = vrot.lane.b32.xlu0 %v1451, 113
      %v1455 = vpop.permute.xlu0 %1454
      %1456 = vrot.lane.b32.xlu0 %v1448, 113
      %v1457 = vpop.permute.xlu0 %1456
      %v1458 = vsel %vm403, %v1453, %v1455
      %v1459 = vsel %vm403, %v1455, %v1457
      %v1462 = vsel %vm259, %v1458, 0.0
      %v1463 = vsel %vm260, %v1459, 0.0
      %v1466 = vrot.slane %v1462, 6
      %v1467 = vrot.slane %v1463, 6
      %1470 = vst [vmem:[#allocation3 + $0x20] sm:$0x1c] %v1466
      %1471 = vst [vmem:[#allocation3 + $0x28] sm:$0x1c] %v1467
      %v1472 = vld [vmem:[#allocation2 + $0x4] sm:$0x77]
      %v1473 = vld [vmem:[#allocation2 + $0xc] sm:$0x7]
      %v1476 = vcombine.high %v1472, %v1472
      %v1477 = vrot.slane %v1472, 3
      %v1478 = vrot.slane %v1476, 3
      %v1479 = vrot.slane %v1473, 3
      %1480 = vrot.lane.b32.xlu0 %v1477, 112
      %v1481 = vpop.permute.xlu0 %1480
      %1482 = vrot.lane.b32.xlu0 %v1478, 112
      %v1483 = vpop.permute.xlu0 %1482
      %1484 = vrot.lane.b32.xlu0 %v1479, 112
      %v1485 = vpop.permute.xlu0 %1484
      %v1486 = vsel %vm432, %v1481, %v1483
      %v1487 = vsel %vm432, %v1483, %v1485
      %1490 = vst [vmem:[#allocation3 + $0x20] sm:$0xe0] %v1486
      %1491 = vst [vmem:[#allocation3 + $0x28] sm:$0xe0] %v1487
      %v1492 = vld [vmem:[#allocation2 + $0x4] sm:$0x77]
      %v1493 = vld [vmem:[#allocation2 + $0xc] sm:$0x7]
      %v1496 = vcombine.high %v1492, %v1492
      %1497 = vrot.lane.b32.xlu0 %v1492, 111
      %v1498 = vpop.permute.xlu0 %1497
      %1499 = vrot.lane.b32.xlu0 %v1496, 111
      %v1500 = vpop.permute.xlu0 %1499
      %1501 = vrot.lane.b32.xlu0 %v1493, 111
      %v1502 = vpop.permute.xlu0 %1501
      %v1503 = vsel %vm450, %v1498, %v1500
      %v1504 = vsel %vm450, %v1500, %v1502
      %v1507 = vsel %vm304, %v1503, 0.0
      %v1508 = vsel %vm305, %v1504, 0.0
      %1509 = vst [vmem:[#allocation3 + $0x30] sm:$0x7] %v1507
      %1510 = vst [vmem:[#allocation3 + $0x38] sm:$0x7] %v1508
      %v1511 = vld [vmem:[%s1] sm:$0xf]
      %v1512 = vld [vmem:[%s1 + $0x4] sm:$0xf]
      %v1513 = vld [vmem:[%s1 + $0x8] sm:$0xf]
      %v1514 = vld [vmem:[%s1 + $0xc] sm:$0xf]
      %v1515 = vld [vmem:[#allocation3] sm:$0xff]
      %v1516 = vld [vmem:[#allocation3 + $0x8] sm:$0xff]
      %v1517 = vld [vmem:[#allocation3 + $0x10] sm:$0xff]
      %v1518 = vld [vmem:[#allocation3 + $0x18] sm:$0xff]
      %v1519 = vld [vmem:[#allocation3 + $0x20] sm:$0xff]
      %v1520 = vld [vmem:[#allocation3 + $0x28] sm:$0xff]
      %v1521 = vld [vmem:[#allocation3 + $0x30] sm:$0x7]
      %v1522 = vld [vmem:[#allocation3 + $0x38] sm:$0x7]
      %v1523 = vpack.c.bf16 %v1517, %v1515
      %v1524 = vpack.c.bf16 %v1518, %v1516
      %v1525 = vpack.c.bf16 %v1521, %v1519
      %v1526 = vpack.c.bf16 %v1522, %v1520
      %v1527 = vld [vmem:[%s2] sm:$0xff]
      %v1528 = vld [vmem:[%s2 + $0x8] sm:$0xff]
      %v1529 = vld [vmem:[%s2 + $0x10] sm:$0xff]
      %v1530 = vld [vmem:[%s2 + $0x18] sm:$0xff]
      %1532 = vset.pattern.permute.xlu0 0
      %1533 = vperm.xlu0 %1532, %v1527
      %v1534 = vpop.permute.xlu0 %1533
      %1537 = vset.pattern.permute.xlu0 0
      %1538 = vperm.xlu0 %1537, %v1528
      %v1539 = vpop.permute.xlu0 %1538
      %1542 = vset.pattern.permute.xlu0 0
      %1543 = vperm.xlu0 %1542, %v1529
      %v1544 = vpop.permute.xlu0 %1543
      %1547 = vset.pattern.permute.xlu0 0
      %1548 = vperm.xlu0 %1547, %v1530
      %v1549 = vpop.permute.xlu0 %1548
      %v1555 = vunpack.c.l.b16 %v1511
      %v1556 = vunpack.c.l.b16 %v1512
      %v1557 = vunpack.c.l.b16 %v1513
      %v1558 = vunpack.c.l.b16 %v1514
      %v1559 = vpack.c.b16 %v1556, %v1555
      %v1560 = vpack.c.b16 %v1558, %v1557
      %v1562 = vsel %vm509, %v1559, 0
      %v1565 = vsel %vm509, %v1560, 0
      %v1568 = vand.u32 %v1525, %v519
      %v1571 = vand.u32 %v1526, %v519
      %1573 = vmatprep.subr.bf16.mxu0 0
      %1574 = vmatpush1.bf16.msra.mxu0 0
      %1575 = vmatprep.subr.bf16.mxu0 0
      %1576 = vmatpush1.bf16.msra.mxu0 0
      %1577 = vmatprep.subr.bf16.mxu0 0
      %1578 = vmatpush1.bf16.msra.mxu0 0
      %1579 = vmatprep.subr.bf16.mxu0 0
      %1580 = vmatpush1.bf16.msra.mxu0 0
      %1581 = vmatprep.subr.bf16.mxu0 0
      %1582 = vmatpush1.bf16.msra.mxu0 0
      %1583 = vmatprep.subr.bf16.mxu0 0
      %1584 = vmatpush1.bf16.msra.mxu0 0
      %1585 = vmatprep.subr.bf16.mxu0 %v1571
      %1586 = vmatpush1.bf16.msra.mxu0 %v1568
      %1587 = vmatprep.subr.bf16.mxu0 %v1524
      %1588 = vmatpush1.bf16.msra.mxu0 %v1523
      %1589 = vmatprep.subr.bf16.mxu0 0
      %1590 = vmatpush2.bf16.msra.mxu0 0
      %1591 = vmatprep.subr.bf16.mxu0 0
      %1592 = vmatpush2.bf16.msra.mxu0 0
      %1593 = vmatprep.subr.bf16.mxu0 0
      %1594 = vmatpush2.bf16.msra.mxu0 0
      %1595 = vmatprep.subr.bf16.mxu0 0
      %1596 = vmatpush2.bf16.msra.mxu0 0
      %1597 = vmatprep.subr.bf16.mxu0 0
      %1598 = vmatpush2.bf16.msra.mxu0 0
      %1599 = vmatprep.subr.bf16.mxu0 0
      %1600 = vmatpush2.bf16.msra.mxu0 0
      %1601 = vmatprep.subr.bf16.mxu0 0
      %1602 = vmatpush2.bf16.msra.mxu0 0
      %1603 = vmatprep.subr.bf16.mxu0 0
      %1604 = vmatpush2.bf16.msra.mxu0 0
      %1605 = vmatprep.mubr.bf16.mxu0 0
      %1606 = vmatmul.mubr.bf16.gmra.mxu0 %v1562
      %v1607 = vpop.f32.mrf.mxu0
      %v1608 = vadd.f32 %v1534, %v1607
      %v1609 = vpop.f32.mrf.mxu0
      %v1610 = vadd.f32 %v1534, %v1609
      %v1611 = vpop.f32.mrf.mxu0
      %v1612 = vadd.f32 %v1539, %v1611
      %v1613 = vpop.f32.mrf.mxu0
      %v1614 = vadd.f32 %v1539, %v1613
      %1615 = vmatprep.mubr.bf16.mxu0 0
      %1616 = vmatmul.mubr.bf16.gmra.mxu0 %v1565
      %v1617 = vpop.f32.mrf.mxu0
      %v1618 = vadd.f32 %v1544, %v1617
      %v1619 = vpop.f32.mrf.mxu0
      %v1620 = vadd.f32 %v1544, %v1619
      %v1621 = vpop.f32.mrf.mxu0
      %v1622 = vadd.f32 %v1549, %v1621
      %v1623 = vpop.f32.mrf.mxu0
      %v1624 = vadd.f32 %v1549, %v1623
      %1625 = vdwg.mxu0
      %v1626 = vpack.c.bf16 %v1612, %v1608
      %v1627 = vpack.c.bf16 %v1614, %v1610
      %v1628 = vpack.c.bf16 %v1622, %v1618
      %v1629 = vpack.c.bf16 %v1624, %v1620
      %v1634 = vunpack.c.l.b16 %v1626
      %v1635 = vunpack.c.l.b16 %v1627
      %v1636 = vunpack.c.h.b16 %v1626
      %v1637 = vunpack.c.h.b16 %v1627
      %v1638 = vunpack.c.l.b16 %v1628
      %v1639 = vunpack.c.l.b16 %v1629
      %v1640 = vunpack.c.h.b16 %v1628
      %v1641 = vunpack.c.h.b16 %v1629
      %v1642 = vpack.c.b16 %v1635, %v1634
      %v1643 = vpack.c.b16 %v1637, %v1636
      %v1644 = vpack.c.b16 %v1639, %v1638
      %v1645 = vpack.c.b16 %v1641, %v1640
      %1650 = vst [vmem:[#allocation4 + $0x4] sm:$0xff] %v1642
      %1651 = vst [vmem:[#allocation4 + $0x14] sm:$0xff] %v1643
      %1652 = vst [vmem:[#allocation4 + $0x24] sm:$0xff] %v1644
      %1653 = vst [vmem:[#allocation4 + $0x34] sm:$0xff] %v1645
      %v1654 = vld [vmem:[#allocation4] sm:$0xff]
      %v1655 = vld [vmem:[#allocation4 + $0x8] sm:$0xf]
      %v1656 = vld [vmem:[#allocation4 + $0x10] sm:$0xff]
      %v1657 = vld [vmem:[#allocation4 + $0x18] sm:$0xf]
      %v1658 = vld [vmem:[#allocation4 + $0x20] sm:$0xff]
      %v1659 = vld [vmem:[#allocation4 + $0x28] sm:$0xf]
      %v1660 = vld [vmem:[#allocation4 + $0x30] sm:$0xff]
      %v1661 = vld [vmem:[#allocation4 + $0x38] sm:$0xf]
      %v1662 = vld [vmem:[%s3] sm:$0x3]
      %v1671 = vunpack.c.l.b16 %v1654
      %v1672 = vunpack.c.h.b16 %v1654
      %v1673 = vunpack.c.l.b16 %v1655
      %v1674 = vunpack.c.l.b16 %v1656
      %v1675 = vunpack.c.h.b16 %v1656
      %v1676 = vunpack.c.l.b16 %v1657
      %v1677 = vunpack.c.l.b16 %v1658
      %v1678 = vunpack.c.h.b16 %v1658
      %v1679 = vunpack.c.l.b16 %v1659
      %v1680 = vunpack.c.l.b16 %v1660
      %v1681 = vunpack.c.h.b16 %v1660
      %v1682 = vunpack.c.l.b16 %v1661
      %v1683 = vpack.c.b16 %v1674, %v1671
      %v1684 = vpack.c.b16 %v1675, %v1672
      %v1685 = vpack.c.b16 %v1676, %v1673
      %v1686 = vpack.c.b16 %v1680, %v1677
      %v1687 = vpack.c.b16 %v1681, %v1678
      %v1688 = vpack.c.b16 %v1682, %v1679
      %1689 = vrot.lane.b32.xlu0 %v1683, 17
      %v1690 = vpop.permute.xlu0 %1689
      %1691 = vrot.lane.b32.xlu0 %v1684, 17
      %v1692 = vpop.permute.xlu0 %1691
      %1693 = vrot.lane.b32.xlu0 %v1685, 17
      %v1694 = vpop.permute.xlu0 %1693
      %1695 = vrot.lane.b32.xlu0 %v1686, 17
      %v1696 = vpop.permute.xlu0 %1695
      %1697 = vrot.lane.b32.xlu0 %v1687, 17
      %v1698 = vpop.permute.xlu0 %1697
      %1699 = vrot.lane.b32.xlu0 %v1688, 17
      %v1700 = vpop.permute.xlu0 %1699
      %v1701 = vsel %vm654, %v1690, %v1692
      %v1702 = vsel %vm654, %v1692, %v1694
      %v1703 = vsel %vm654, %v1696, %v1698
      %v1704 = vsel %vm654, %v1698, %v1700
      %v1710 = vsel %vm663, %v1662, 0
      %1712 = vmatprep.subr.bf16.mxu0 0
      %1713 = vmatpush1.bf16.msra.mxu0 0
      %1714 = vmatprep.subr.bf16.mxu0 0
      %1715 = vmatpush1.bf16.msra.mxu0 0
      %1716 = vmatprep.subr.bf16.mxu0 0
      %1717 = vmatpush1.bf16.msra.mxu0 0
      %1718 = vmatprep.subr.bf16.mxu0 0
      %1719 = vmatpush1.bf16.msra.mxu0 0
      %1720 = vmatprep.subr.bf16.mxu0 0
      %1721 = vmatpush1.bf16.msra.mxu0 0
      %1722 = vmatprep.subr.bf16.mxu0 0
      %1723 = vmatpush1.bf16.msra.mxu0 0
      %1724 = vmatprep.subr.bf16.mxu0 %v1704
      %1725 = vmatpush1.bf16.msra.mxu0 %v1703
      %1726 = vmatprep.subr.bf16.mxu0 %v1702
      %1727 = vmatpush1.bf16.msra.mxu0 %v1701
      %1728 = vmatprep.subr.bf16.mxu0 0
      %1729 = vmatpush2.bf16.msra.mxu0 0
      %1730 = vmatprep.subr.bf16.mxu0 0
      %1731 = vmatpush2.bf16.msra.mxu0 0
      %1732 = vmatprep.subr.bf16.mxu0 0
      %1733 = vmatpush2.bf16.msra.mxu0 0
      %1734 = vmatprep.subr.bf16.mxu0 0
      %1735 = vmatpush2.bf16.msra.mxu0 0
      %1736 = vmatprep.subr.bf16.mxu0 0
      %1737 = vmatpush2.bf16.msra.mxu0 0
      %1738 = vmatprep.subr.bf16.mxu0 0
      %1739 = vmatpush2.bf16.msra.mxu0 0
      %1740 = vmatprep.subr.bf16.mxu0 0
      %1741 = vmatpush2.bf16.msra.mxu0 0
      %1742 = vmatprep.subr.bf16.mxu0 0
      %1743 = vmatpush2.bf16.msra.mxu0 0
      %1744 = vmatprep.mubr.bf16.mxu0 0
      %1745 = vmatmul.mubr.bf16.gmra.mxu0 %v1710
      %v1746 = vpop.f32.mrf.mxu0
      %v1747 = vadd.f32 0.0, %v1746
      %v1748 = vpop.f32.mrf.mxu0
      %v1749 = vadd.f32 0.0, %v1748
      %v1750 = vpop.f32.mrf.mxu0
      %v1751 = vpop.f32.mrf.mxu0
      %1752 = vdwg.mxu0
      %v1753 = vsel %vm259, %v1747, 0.0
      %v1754 = vsel %vm260, %v1749, 0.0
      %v1755 = vld [vmem:[%s710] sm:$0x3]
      %v1756 = vld [vmem:[%s712] sm:$0x3]
      %1757 = vrot.lane.b32.xlu0 %v1683, 15
      %v1758 = vpop.permute.xlu0 %1757
      %1759 = vrot.lane.b32.xlu0 %v1684, 15
      %v1760 = vpop.permute.xlu0 %1759
      %1761 = vrot.lane.b32.xlu0 %v1685, 15
      %v1762 = vpop.permute.xlu0 %1761
      %1763 = vrot.lane.b32.xlu0 %v1686, 15
      %v1764 = vpop.permute.xlu0 %1763
      %1765 = vrot.lane.b32.xlu0 %v1687, 15
      %v1766 = vpop.permute.xlu0 %1765
      %1767 = vrot.lane.b32.xlu0 %v1688, 15
      %v1768 = vpop.permute.xlu0 %1767
      %v1769 = vsel %vm726, %v1758, %v1760
      %v1770 = vsel %vm726, %v1760, %v1762
      %v1771 = vsel %vm726, %v1764, %v1766
      %v1772 = vsel %vm726, %v1766, %v1768
      %v1778 = vsel %vm663, %v1756, 0
      %1780 = vmatprep.subr.bf16.mxu0 0
      %1781 = vmatpush1.bf16.msra.mxu0 0
      %1782 = vmatprep.subr.bf16.mxu0 0
      %1783 = vmatpush1.bf16.msra.mxu0 0
      %1784 = vmatprep.subr.bf16.mxu0 0
      %1785 = vmatpush1.bf16.msra.mxu0 0
      %1786 = vmatprep.subr.bf16.mxu0 0
      %1787 = vmatpush1.bf16.msra.mxu0 0
      %1788 = vmatprep.subr.bf16.mxu0 0
      %1789 = vmatpush1.bf16.msra.mxu0 0
      %1790 = vmatprep.subr.bf16.mxu0 0
      %1791 = vmatpush1.bf16.msra.mxu0 0
      %1792 = vmatprep.subr.bf16.mxu0 %v1772
      %1793 = vmatpush1.bf16.msra.mxu0 %v1771
      %1794 = vmatprep.subr.bf16.mxu0 %v1770
      %1795 = vmatpush1.bf16.msra.mxu0 %v1769
      %1796 = vmatprep.subr.bf16.mxu0 0
      %1797 = vmatpush2.bf16.msra.mxu0 0
      %1798 = vmatprep.subr.bf16.mxu0 0
      %1799 = vmatpush2.bf16.msra.mxu0 0
      %1800 = vmatprep.subr.bf16.mxu0 0
      %1801 = vmatpush2.bf16.msra.mxu0 0
      %1802 = vmatprep.subr.bf16.mxu0 0
      %1803 = vmatpush2.bf16.msra.mxu0 0
      %1804 = vmatprep.subr.bf16.mxu0 0
      %1805 = vmatpush2.bf16.msra.mxu0 0
      %1806 = vmatprep.subr.bf16.mxu0 0
      %1807 = vmatpush2.bf16.msra.mxu0 0
      %1808 = vmatprep.subr.bf16.mxu0 0
      %1809 = vmatpush2.bf16.msra.mxu0 0
      %1810 = vmatprep.subr.bf16.mxu0 0
      %1811 = vmatpush2.bf16.msra.mxu0 0
      %1812 = vmatprep.mubr.bf16.mxu0 0
      %1813 = vmatmul.mubr.bf16.gmra.mxu0 %v1778
      %v1814 = vpop.f32.mrf.mxu0
      %v1815 = vadd.f32 0.0, %v1814
      %v1816 = vpop.f32.mrf.mxu0
      %v1817 = vadd.f32 0.0, %v1816
      %v1818 = vpop.f32.mrf.mxu0
      %v1819 = vpop.f32.mrf.mxu0
      %1820 = vdwg.mxu0
      %v1821 = vsel %vm304, %v1815, 0.0
      %v1822 = vsel %vm305, %v1817, 0.0
      %v1823 = vld [vmem:[%s781] sm:$0x3]
      %1824 = vrot.lane.b32.xlu0 %v1683, 1
      %v1825 = vpop.permute.xlu0 %1824
      %1826 = vrot.lane.b32.xlu0 %v1684, 1
      %v1827 = vpop.permute.xlu0 %1826
      %1828 = vrot.lane.b32.xlu0 %v1685, 1
      %v1829 = vpop.permute.xlu0 %1828
      %1830 = vrot.lane.b32.xlu0 %v1686, 1
      %v1831 = vpop.permute.xlu0 %1830
      %1832 = vrot.lane.b32.xlu0 %v1687, 1
      %v1833 = vpop.permute.xlu0 %1832
      %1834 = vrot.lane.b32.xlu0 %v1688, 1
      %v1835 = vpop.permute.xlu0 %1834
      %v1836 = vsel %vm795, %v1825, %v1827
      %v1837 = vsel %vm795, %v1827, %v1829
      %v1838 = vsel %vm795, %v1831, %v1833
      %v1839 = vsel %vm795, %v1833, %v1835
      %v1845 = vsel %vm663, %v1823, 0
      %1847 = vmatprep.subr.bf16.mxu0 0
      %1848 = vmatpush1.bf16.msra.mxu0 0
      %1849 = vmatprep.subr.bf16.mxu0 0
      %1850 = vmatpush1.bf16.msra.mxu0 0
      %1851 = vmatprep.subr.bf16.mxu0 0
      %1852 = vmatpush1.bf16.msra.mxu0 0
      %1853 = vmatprep.subr.bf16.mxu0 0
      %1854 = vmatpush1.bf16.msra.mxu0 0
      %1855 = vmatprep.subr.bf16.mxu0 0
      %1856 = vmatpush1.bf16.msra.mxu0 0
      %1857 = vmatprep.subr.bf16.mxu0 0
      %1858 = vmatpush1.bf16.msra.mxu0 0
      %1859 = vmatprep.subr.bf16.mxu0 %v1839
      %1860 = vmatpush1.bf16.msra.mxu0 %v1838
      %1861 = vmatprep.subr.bf16.mxu0 %v1837
      %1862 = vmatpush1.bf16.msra.mxu0 %v1836
      %1863 = vmatprep.subr.bf16.mxu0 0
      %1864 = vmatpush2.bf16.msra.mxu0 0
      %1865 = vmatprep.subr.bf16.mxu0 0
      %1866 = vmatpush2.bf16.msra.mxu0 0
      %1867 = vmatprep.subr.bf16.mxu0 0
      %1868 = vmatpush2.bf16.msra.mxu0 0
      %1869 = vmatprep.subr.bf16.mxu0 0
      %1870 = vmatpush2.bf16.msra.mxu0 0
      %1871 = vmatprep.subr.bf16.mxu0 0
      %1872 = vmatpush2.bf16.msra.mxu0 0
      %1873 = vmatprep.subr.bf16.mxu0 0
      %1874 = vmatpush2.bf16.msra.mxu0 0
      %1875 = vmatprep.subr.bf16.mxu0 0
      %1876 = vmatpush2.bf16.msra.mxu0 0
      %1877 = vmatprep.subr.bf16.mxu0 0
      %1878 = vmatpush2.bf16.msra.mxu0 0
      %1879 = vmatprep.mubr.bf16.mxu0 0
      %1880 = vmatmul.mubr.bf16.gmra.mxu0 %v1845
      %v1881 = vpop.f32.mrf.mxu0
      %v1882 = vadd.f32 0.0, %v1881
      %v1883 = vpop.f32.mrf.mxu0
      %v1884 = vadd.f32 0.0, %v1883
      %v1885 = vpop.f32.mrf.mxu0
      %v1886 = vpop.f32.mrf.mxu0
      %1887 = vdwg.mxu0
      %v1888 = vsel %vm259, %v1882, 0.0
      %v1889 = vsel %vm260, %v1884, 0.0
      %v1890 = vadd.f32 %v1753, %v1888
      %v1891 = vadd.f32 %v1754, %v1889
      %v1892 = vld [vmem:[#allocation4 + $0x4] sm:$0xff]
      %v1893 = vld [vmem:[#allocation4 + $0x14] sm:$0xff]
      %v1894 = vld [vmem:[#allocation4 + $0x24] sm:$0xff]
      %v1895 = vld [vmem:[#allocation4 + $0x34] sm:$0xff]
      %v1896 = vld [vmem:[%s856] sm:$0x3]
      %v1901 = vunpack.c.l.b16 %v1892
      %v1902 = vunpack.c.h.b16 %v1892
      %v1903 = vunpack.c.l.b16 %v1893
      %v1904 = vunpack.c.h.b16 %v1893
      %v1905 = vunpack.c.l.b16 %v1894
      %v1906 = vunpack.c.h.b16 %v1894
      %v1907 = vunpack.c.l.b16 %v1895
      %v1908 = vunpack.c.h.b16 %v1895
      %v1909 = vpack.c.b16 %v1903, %v1901
      %v1910 = vpack.c.b16 %v1904, %v1902
      %v1911 = vpack.c.b16 %v1907, %v1905
      %v1912 = vpack.c.b16 %v1908, %v1906
      %v1918 = vsel %vm663, %v1896, 0
      %1920 = vmatprep.subr.bf16.mxu0 0
      %1921 = vmatpush1.bf16.msra.mxu0 0
      %1922 = vmatprep.subr.bf16.mxu0 0
      %1923 = vmatpush1.bf16.msra.mxu0 0
      %1924 = vmatprep.subr.bf16.mxu0 0
      %1925 = vmatpush1.bf16.msra.mxu0 0
      %1926 = vmatprep.subr.bf16.mxu0 0
      %1927 = vmatpush1.bf16.msra.mxu0 0
      %1928 = vmatprep.subr.bf16.mxu0 0
      %1929 = vmatpush1.bf16.msra.mxu0 0
      %1930 = vmatprep.subr.bf16.mxu0 0
      %1931 = vmatpush1.bf16.msra.mxu0 0
      %1932 = vmatprep.subr.bf16.mxu0 %v1912
      %1933 = vmatpush1.bf16.msra.mxu0 %v1911
      %1934 = vmatprep.subr.bf16.mxu0 %v1910
      %1935 = vmatpush1.bf16.msra.mxu0 %v1909
      %1936 = vmatprep.subr.bf16.mxu0 0
      %1937 = vmatpush2.bf16.msra.mxu0 0
      %1938 = vmatprep.subr.bf16.mxu0 0
      %1939 = vmatpush2.bf16.msra.mxu0 0
      %1940 = vmatprep.subr.bf16.mxu0 0
      %1941 = vmatpush2.bf16.msra.mxu0 0
      %1942 = vmatprep.subr.bf16.mxu0 0
      %1943 = vmatpush2.bf16.msra.mxu0 0
      %1944 = vmatprep.subr.bf16.mxu0 0
      %1945 = vmatpush2.bf16.msra.mxu0 0
      %1946 = vmatprep.subr.bf16.mxu0 0
      %1947 = vmatpush2.bf16.msra.mxu0 0
      %1948 = vmatprep.subr.bf16.mxu0 0
      %1949 = vmatpush2.bf16.msra.mxu0 0
      %1950 = vmatprep.subr.bf16.mxu0 0
      %1951 = vmatpush2.bf16.msra.mxu0 0
      %1952 = vmatprep.mubr.bf16.mxu0 0
      %1953 = vmatmul.mubr.bf16.gmra.mxu0 %v1918
      %v1954 = vpop.f32.mrf.mxu0
      %v1955 = vadd.f32 0.0, %v1954
      %v1956 = vpop.f32.mrf.mxu0
      %v1957 = vadd.f32 0.0, %v1956
      %v1958 = vpop.f32.mrf.mxu0
      %v1959 = vpop.f32.mrf.mxu0
      %1960 = vdwg.mxu0
      %1961 = vrot.lane.b32.xlu0 %v1683, 16
      %v1962 = vpop.permute.xlu0 %1961
      %1963 = vrot.lane.b32.xlu0 %v1684, 16
      %v1964 = vpop.permute.xlu0 %1963
      %1965 = vrot.lane.b32.xlu0 %v1685, 16
      %v1966 = vpop.permute.xlu0 %1965
      %1967 = vrot.lane.b32.xlu0 %v1686, 16
      %v1968 = vpop.permute.xlu0 %1967
      %1969 = vrot.lane.b32.xlu0 %v1687, 16
      %v1970 = vpop.permute.xlu0 %1969
      %1971 = vrot.lane.b32.xlu0 %v1688, 16
      %v1972 = vpop.permute.xlu0 %1971
      %v1973 = vsel %vm934, %v1962, %v1964
      %v1974 = vsel %vm934, %v1964, %v1966
      %v1975 = vsel %vm934, %v1968, %v1970
      %v1976 = vsel %vm934, %v1970, %v1972
      %v1982 = vsel %vm663, %v1755, 0
      %1984 = vmatprep.subr.bf16.mxu0 0
      %1985 = vmatpush1.bf16.msra.mxu0 0
      %1986 = vmatprep.subr.bf16.mxu0 0
      %1987 = vmatpush1.bf16.msra.mxu0 0
      %1988 = vmatprep.subr.bf16.mxu0 0
      %1989 = vmatpush1.bf16.msra.mxu0 0
      %1990 = vmatprep.subr.bf16.mxu0 0
      %1991 = vmatpush1.bf16.msra.mxu0 0
      %1992 = vmatprep.subr.bf16.mxu0 0
      %1993 = vmatpush1.bf16.msra.mxu0 0
      %1994 = vmatprep.subr.bf16.mxu0 0
      %1995 = vmatpush1.bf16.msra.mxu0 0
      %1996 = vmatprep.subr.bf16.mxu0 %v1976
      %1997 = vmatpush1.bf16.msra.mxu0 %v1975
      %1998 = vmatprep.subr.bf16.mxu0 %v1974
      %1999 = vmatpush1.bf16.msra.mxu0 %v1973
      %2000 = vmatprep.subr.bf16.mxu0 0
      %2001 = vmatpush2.bf16.msra.mxu0 0
      %2002 = vmatprep.subr.bf16.mxu0 0
      %2003 = vmatpush2.bf16.msra.mxu0 0
      %2004 = vmatprep.subr.bf16.mxu0 0
      %2005 = vmatpush2.bf16.msra.mxu0 0
      %2006 = vmatprep.subr.bf16.mxu0 0
      %2007 = vmatpush2.bf16.msra.mxu0 0
      %2008 = vmatprep.subr.bf16.mxu0 0
      %2009 = vmatpush2.bf16.msra.mxu0 0
      %2010 = vmatprep.subr.bf16.mxu0 0
      %2011 = vmatpush2.bf16.msra.mxu0 0
      %2012 = vmatprep.subr.bf16.mxu0 0
      %2013 = vmatpush2.bf16.msra.mxu0 0
      %2014 = vmatprep.subr.bf16.mxu0 0
      %2015 = vmatpush2.bf16.msra.mxu0 0
      %2016 = vmatprep.mubr.bf16.mxu0 0
      %2017 = vmatmul.mubr.bf16.gmra.mxu0 %v1982
      %v2018 = vpop.f32.mrf.mxu0
      %v2019 = vadd.f32 %v1955, %v2018
      %v2020 = vpop.f32.mrf.mxu0
      %v2021 = vadd.f32 %v1957, %v2020
      %v2022 = vpop.f32.mrf.mxu0
      %v2023 = vpop.f32.mrf.mxu0
      %2024 = vdwg.mxu0
      %v2025 = vld [vmem:[#allocation4 + $0x4] sm:$0xff]
      %v2026 = vld [vmem:[#allocation4 + $0xc] sm:$0xf]
      %v2027 = vld [vmem:[#allocation4 + $0x14] sm:$0xff]
      %v2028 = vld [vmem:[#allocation4 + $0x1c] sm:$0xf]
      %v2029 = vld [vmem:[#allocation4 + $0x24] sm:$0xff]
      %v2030 = vld [vmem:[#allocation4 + $0x2c] sm:$0xf]
      %v2031 = vld [vmem:[#allocation4 + $0x34] sm:$0xff]
      %v2032 = vld [vmem:[#allocation4 + $0x3c] sm:$0xf]
      %v2033 = vld [vmem:[%s995] sm:$0x3]
      %v2042 = vunpack.c.l.b16 %v2025
      %v2043 = vunpack.c.h.b16 %v2025
      %v2044 = vunpack.c.l.b16 %v2026
      %v2045 = vunpack.c.l.b16 %v2027
      %v2046 = vunpack.c.h.b16 %v2027
      %v2047 = vunpack.c.l.b16 %v2028
      %v2048 = vunpack.c.l.b16 %v2029
      %v2049 = vunpack.c.h.b16 %v2029
      %v2050 = vunpack.c.l.b16 %v2030
      %v2051 = vunpack.c.l.b16 %v2031
      %v2052 = vunpack.c.h.b16 %v2031
      %v2053 = vunpack.c.l.b16 %v2032
      %v2054 = vpack.c.b16 %v2045, %v2042
      %v2055 = vpack.c.b16 %v2046, %v2043
      %v2056 = vpack.c.b16 %v2047, %v2044
      %v2057 = vpack.c.b16 %v2051, %v2048
      %v2058 = vpack.c.b16 %v2052, %v2049
      %v2059 = vpack.c.b16 %v2053, %v2050
      %2060 = vrot.lane.b32.xlu0 %v2054, 127
      %v2061 = vpop.permute.xlu0 %2060
      %2062 = vrot.lane.b32.xlu0 %v2055, 127
      %v2063 = vpop.permute.xlu0 %2062
      %2064 = vrot.lane.b32.xlu0 %v2056, 127
      %v2065 = vpop.permute.xlu0 %2064
      %2066 = vrot.lane.b32.xlu0 %v2057, 127
      %v2067 = vpop.permute.xlu0 %2066
      %2068 = vrot.lane.b32.xlu0 %v2058, 127
      %v2069 = vpop.permute.xlu0 %2068
      %2070 = vrot.lane.b32.xlu0 %v2059, 127
      %v2071 = vpop.permute.xlu0 %2070
      %v2072 = vsel %vm1035, %v2061, %v2063
      %v2073 = vsel %vm1035, %v2063, %v2065
      %v2074 = vsel %vm1035, %v2067, %v2069
      %v2075 = vsel %vm1035, %v2069, %v2071
      %v2081 = vsel %vm663, %v2033, 0
      %2083 = vmatprep.subr.bf16.mxu0 0
      %2084 = vmatpush1.bf16.msra.mxu0 0
      %2085 = vmatprep.subr.bf16.mxu0 0
      %2086 = vmatpush1.bf16.msra.mxu0 0
      %2087 = vmatprep.subr.bf16.mxu0 0
      %2088 = vmatpush1.bf16.msra.mxu0 0
      %2089 = vmatprep.subr.bf16.mxu0 0
      %2090 = vmatpush1.bf16.msra.mxu0 0
      %2091 = vmatprep.subr.bf16.mxu0 0
      %2092 = vmatpush1.bf16.msra.mxu0 0
      %2093 = vmatprep.subr.bf16.mxu0 0
      %2094 = vmatpush1.bf16.msra.mxu0 0
      %2095 = vmatprep.subr.bf16.mxu0 %v2075
      %2096 = vmatpush1.bf16.msra.mxu0 %v2074
      %2097 = vmatprep.subr.bf16.mxu0 %v2073
      %2098 = vmatpush1.bf16.msra.mxu0 %v2072
      %2099 = vmatprep.subr.bf16.mxu0 0
      %2100 = vmatpush2.bf16.msra.mxu0 0
      %2101 = vmatprep.subr.bf16.mxu0 0
      %2102 = vmatpush2.bf16.msra.mxu0 0
      %2103 = vmatprep.subr.bf16.mxu0 0
      %2104 = vmatpush2.bf16.msra.mxu0 0
      %2105 = vmatprep.subr.bf16.mxu0 0
      %2106 = vmatpush2.bf16.msra.mxu0 0
      %2107 = vmatprep.subr.bf16.mxu0 0
      %2108 = vmatpush2.bf16.msra.mxu0 0
      %2109 = vmatprep.subr.bf16.mxu0 0
      %2110 = vmatpush2.bf16.msra.mxu0 0
      %2111 = vmatprep.subr.bf16.mxu0 0
      %2112 = vmatpush2.bf16.msra.mxu0 0
      %2113 = vmatprep.subr.bf16.mxu0 0
      %2114 = vmatpush2.bf16.msra.mxu0 0
      %2115 = vmatprep.mubr.bf16.mxu0 0
      %2116 = vmatmul.mubr.bf16.gmra.mxu0 %v2081
      %v2117 = vpop.f32.mrf.mxu0
      %v2118 = vadd.f32 0.0, %v2117
      %v2119 = vpop.f32.mrf.mxu0
      %v2120 = vadd.f32 0.0, %v2119
      %v2121 = vpop.f32.mrf.mxu0
      %v2122 = vpop.f32.mrf.mxu0
      %2123 = vdwg.mxu0
      %v2124 = vsel %vm304, %v2118, 0.0
      %v2125 = vsel %vm305, %v2120, 0.0
      %v2126 = vadd.f32 %v1821, %v2124
      %v2127 = vadd.f32 %v1822, %v2125
      %v2128 = vld [vmem:[%s1092] sm:$0x3]
      %2129 = vrot.lane.b32.xlu0 %v2054, 113
      %v2130 = vpop.permute.xlu0 %2129
      %2131 = vrot.lane.b32.xlu0 %v2055, 113
      %v2132 = vpop.permute.xlu0 %2131
      %2133 = vrot.lane.b32.xlu0 %v2056, 113
      %v2134 = vpop.permute.xlu0 %2133
      %2135 = vrot.lane.b32.xlu0 %v2057, 113
      %v2136 = vpop.permute.xlu0 %2135
      %2137 = vrot.lane.b32.xlu0 %v2058, 113
      %v2138 = vpop.permute.xlu0 %2137
      %2139 = vrot.lane.b32.xlu0 %v2059, 113
      %v2140 = vpop.permute.xlu0 %2139
      %v2141 = vsel %vm1106, %v2130, %v2132
      %v2142 = vsel %vm1106, %v2132, %v2134
      %v2143 = vsel %vm1106, %v2136, %v2138
      %v2144 = vsel %vm1106, %v2138, %v2140
      %v2150 = vsel %vm663, %v2128, 0
      %2152 = vmatprep.subr.bf16.mxu0 0
      %2153 = vmatpush1.bf16.msra.mxu0 0
      %2154 = vmatprep.subr.bf16.mxu0 0
      %2155 = vmatpush1.bf16.msra.mxu0 0
      %2156 = vmatprep.subr.bf16.mxu0 0
      %2157 = vmatpush1.bf16.msra.mxu0 0
      %2158 = vmatprep.subr.bf16.mxu0 0
      %2159 = vmatpush1.bf16.msra.mxu0 0
      %2160 = vmatprep.subr.bf16.mxu0 0
      %2161 = vmatpush1.bf16.msra.mxu0 0
      %2162 = vmatprep.subr.bf16.mxu0 0
      %2163 = vmatpush1.bf16.msra.mxu0 0
      %2164 = vmatprep.subr.bf16.mxu0 %v2144
      %2165 = vmatpush1.bf16.msra.mxu0 %v2143
      %2166 = vmatprep.subr.bf16.mxu0 %v2142
      %2167 = vmatpush1.bf16.msra.mxu0 %v2141
      %2168 = vmatprep.subr.bf16.mxu0 0
      %2169 = vmatpush2.bf16.msra.mxu0 0
      %2170 = vmatprep.subr.bf16.mxu0 0
      %2171 = vmatpush2.bf16.msra.mxu0 0
      %2172 = vmatprep.subr.bf16.mxu0 0
      %2173 = vmatpush2.bf16.msra.mxu0 0
      %2174 = vmatprep.subr.bf16.mxu0 0
      %2175 = vmatpush2.bf16.msra.mxu0 0
      %2176 = vmatprep.subr.bf16.mxu0 0
      %2177 = vmatpush2.bf16.msra.mxu0 0
      %2178 = vmatprep.subr.bf16.mxu0 0
      %2179 = vmatpush2.bf16.msra.mxu0 0
      %2180 = vmatprep.subr.bf16.mxu0 0
      %2181 = vmatpush2.bf16.msra.mxu0 0
      %2182 = vmatprep.subr.bf16.mxu0 0
      %2183 = vmatpush2.bf16.msra.mxu0 0
      %2184 = vmatprep.mubr.bf16.mxu0 0
      %2185 = vmatmul.mubr.bf16.gmra.mxu0 %v2150
      %v2186 = vpop.f32.mrf.mxu0
      %v2187 = vadd.f32 0.0, %v2186
      %v2188 = vpop.f32.mrf.mxu0
      %v2189 = vadd.f32 0.0, %v2188
      %v2190 = vpop.f32.mrf.mxu0
      %v2191 = vpop.f32.mrf.mxu0
      %2192 = vdwg.mxu0
      %v2193 = vsel %vm259, %v2187, 0.0
      %v2194 = vsel %vm260, %v2189, 0.0
      %v2195 = vadd.f32 %v1890, %v2193
      %v2196 = vadd.f32 %v1891, %v2194
      %v2197 = vld [vmem:[%s1163] sm:$0x3]
      %2198 = vrot.lane.b32.xlu0 %v2054, 112
      %v2199 = vpop.permute.xlu0 %2198
      %2200 = vrot.lane.b32.xlu0 %v2055, 112
      %v2201 = vpop.permute.xlu0 %2200
      %2202 = vrot.lane.b32.xlu0 %v2056, 112
      %v2203 = vpop.permute.xlu0 %2202
      %2204 = vrot.lane.b32.xlu0 %v2057, 112
      %v2205 = vpop.permute.xlu0 %2204
      %2206 = vrot.lane.b32.xlu0 %v2058, 112
      %v2207 = vpop.permute.xlu0 %2206
      %2208 = vrot.lane.b32.xlu0 %v2059, 112
      %v2209 = vpop.permute.xlu0 %2208
      %v2210 = vsel %vm1177, %v2199, %v2201
      %v2211 = vsel %vm1177, %v2201, %v2203
      %v2212 = vsel %vm1177, %v2205, %v2207
      %v2213 = vsel %vm1177, %v2207, %v2209
      %v2219 = vsel %vm663, %v2197, 0
      %2221 = vmatprep.subr.bf16.mxu0 0
      %2222 = vmatpush1.bf16.msra.mxu0 0
      %2223 = vmatprep.subr.bf16.mxu0 0
      %2224 = vmatpush1.bf16.msra.mxu0 0
      %2225 = vmatprep.subr.bf16.mxu0 0
      %2226 = vmatpush1.bf16.msra.mxu0 0
      %2227 = vmatprep.subr.bf16.mxu0 0
      %2228 = vmatpush1.bf16.msra.mxu0 0
      %2229 = vmatprep.subr.bf16.mxu0 0
      %2230 = vmatpush1.bf16.msra.mxu0 0
      %2231 = vmatprep.subr.bf16.mxu0 0
      %2232 = vmatpush1.bf16.msra.mxu0 0
      %2233 = vmatprep.subr.bf16.mxu0 %v2213
      %2234 = vmatpush1.bf16.msra.mxu0 %v2212
      %2235 = vmatprep.subr.bf16.mxu0 %v2211
      %2236 = vmatpush1.bf16.msra.mxu0 %v2210
      %2237 = vmatprep.subr.bf16.mxu0 0
      %2238 = vmatpush2.bf16.msra.mxu0 0
      %2239 = vmatprep.subr.bf16.mxu0 0
      %2240 = vmatpush2.bf16.msra.mxu0 0
      %2241 = vmatprep.subr.bf16.mxu0 0
      %2242 = vmatpush2.bf16.msra.mxu0 0
      %2243 = vmatprep.subr.bf16.mxu0 0
      %2244 = vmatpush2.bf16.msra.mxu0 0
      %2245 = vmatprep.subr.bf16.mxu0 0
      %2246 = vmatpush2.bf16.msra.mxu0 0
      %2247 = vmatprep.subr.bf16.mxu0 0
      %2248 = vmatpush2.bf16.msra.mxu0 0
      %2249 = vmatprep.subr.bf16.mxu0 0
      %2250 = vmatpush2.bf16.msra.mxu0 0
      %2251 = vmatprep.subr.bf16.mxu0 0
      %2252 = vmatpush2.bf16.msra.mxu0 0
      %2253 = vmatprep.mubr.bf16.mxu0 0
      %2254 = vmatmul.mubr.bf16.gmra.mxu0 %v2219
      %v2255 = vpop.f32.mrf.mxu0
      %v2256 = vadd.f32 0.0, %v2255
      %v2257 = vpop.f32.mrf.mxu0
      %v2258 = vadd.f32 0.0, %v2257
      %v2259 = vpop.f32.mrf.mxu0
      %v2260 = vpop.f32.mrf.mxu0
      %2261 = vdwg.mxu0
      %v2262 = vadd.f32 %v2019, %v2256
      %v2263 = vadd.f32 %v2021, %v2258
      %v2264 = vld [vmem:[%s1232] sm:$0x3]
      %2265 = vrot.lane.b32.xlu0 %v2054, 111
      %v2266 = vpop.permute.xlu0 %2265
      %2267 = vrot.lane.b32.xlu0 %v2055, 111
      %v2268 = vpop.permute.xlu0 %2267
      %2269 = vrot.lane.b32.xlu0 %v2056, 111
      %v2270 = vpop.permute.xlu0 %2269
      %2271 = vrot.lane.b32.xlu0 %v2057, 111
      %v2272 = vpop.permute.xlu0 %2271
      %2273 = vrot.lane.b32.xlu0 %v2058, 111
      %v2274 = vpop.permute.xlu0 %2273
      %2275 = vrot.lane.b32.xlu0 %v2059, 111
      %v2276 = vpop.permute.xlu0 %2275
      %v2277 = vsel %vm1246, %v2266, %v2268
      %v2278 = vsel %vm1246, %v2268, %v2270
      %v2279 = vsel %vm1246, %v2272, %v2274
      %v2280 = vsel %vm1246, %v2274, %v2276
      %v2286 = vsel %vm663, %v2264, 0
      %2288 = vmatprep.subr.bf16.mxu0 0
      %2289 = vmatpush1.bf16.msra.mxu0 0
      %2290 = vmatprep.subr.bf16.mxu0 0
      %2291 = vmatpush1.bf16.msra.mxu0 0
      %2292 = vmatprep.subr.bf16.mxu0 0
      %2293 = vmatpush1.bf16.msra.mxu0 0
      %2294 = vmatprep.subr.bf16.mxu0 0
      %2295 = vmatpush1.bf16.msra.mxu0 0
      %2296 = vmatprep.subr.bf16.mxu0 0
      %2297 = vmatpush1.bf16.msra.mxu0 0
      %2298 = vmatprep.subr.bf16.mxu0 0
      %2299 = vmatpush1.bf16.msra.mxu0 0
      %2300 = vmatprep.subr.bf16.mxu0 %v2280
      %2301 = vmatpush1.bf16.msra.mxu0 %v2279
      %2302 = vmatprep.subr.bf16.mxu0 %v2278
      %2303 = vmatpush1.bf16.msra.mxu0 %v2277
      %2304 = vmatprep.subr.bf16.mxu0 0
      %2305 = vmatpush2.bf16.msra.mxu0 0
      %2306 = vmatprep.subr.bf16.mxu0 0
      %2307 = vmatpush2.bf16.msra.mxu0 0
      %2308 = vmatprep.subr.bf16.mxu0 0
      %2309 = vmatpush2.bf16.msra.mxu0 0
      %2310 = vmatprep.subr.bf16.mxu0 0
      %2311 = vmatpush2.bf16.msra.mxu0 0
      %2312 = vmatprep.subr.bf16.mxu0 0
      %2313 = vmatpush2.bf16.msra.mxu0 0
      %2314 = vmatprep.subr.bf16.mxu0 0
      %2315 = vmatpush2.bf16.msra.mxu0 0
      %2316 = vmatprep.subr.bf16.mxu0 0
      %2317 = vmatpush2.bf16.msra.mxu0 0
      %2318 = vmatprep.subr.bf16.mxu0 0
      %2319 = vmatpush2.bf16.msra.mxu0 0
      %2320 = vmatprep.mubr.bf16.mxu0 0
      %2321 = vmatmul.mubr.bf16.gmra.mxu0 %v2286
      %v2322 = vpop.f32.mrf.mxu0
      %v2323 = vadd.f32 0.0, %v2322
      %v2324 = vpop.f32.mrf.mxu0
      %v2325 = vadd.f32 0.0, %v2324
      %v2326 = vpop.f32.mrf.mxu0
      %v2327 = vpop.f32.mrf.mxu0
      %2328 = vdwg.mxu0
      %v2329 = vsel %vm304, %v2323, 0.0
      %v2330 = vsel %vm305, %v2325, 0.0
      %v2331 = vadd.f32 %v2126, %v2329
      %v2332 = vadd.f32 %v2127, %v2330
      %v2333 = vadd.f32 %v2195, %v2262
      %v2334 = vadd.f32 %v2196, %v2263
      %v2335 = vadd.f32 %v2333, %v2331
      %v2336 = vadd.f32 %v2334, %v2332
      %v2337 = vld [vmem:[%s4] sm:$0x7]
      %2339 = vset.pattern.permute.xlu0 0
      %2340 = vperm.xlu0 %2339, %v2337
      %v2341 = vpop.permute.xlu0 %2340
      %v2343 = vadd.f32 %v2335, %v2341
      %v2344 = vadd.f32 %v2336, %v2341
      %v2347 = vcombine.low %v2343, %v2344
      %s2349 = scalar_lea.vmem %s231, 8
      %2350 = vst [vmem:[%s2349] sm:$0x77] %v2347
      %s2351 = scalar_lea.vmem %s224, 16
      %v2352 = vld [vmem:[%s2351] sm:$0x77]
      %2353 = vst [vmem:[#allocation2 + $0x4] sm:$0x77] %v2352
      %v2354 = vld [vmem:[#allocation2] sm:$0x77]
      %v2355 = vld [vmem:[#allocation2 + $0x8] sm:$0x7]
      %v2358 = vcombine.high %v2354, %v2354
      %2359 = vrot.lane.b32.xlu0 %v2354, 17
      %v2360 = vpop.permute.xlu0 %2359
      %2361 = vrot.lane.b32.xlu0 %v2358, 17
      %v2362 = vpop.permute.xlu0 %2361
      %2363 = vrot.lane.b32.xlu0 %v2355, 17
      %v2364 = vpop.permute.xlu0 %2363
      %v2365 = vsel %vm270, %v2360, %v2362
      %v2366 = vsel %vm270, %v2362, %v2364
      %v2369 = vsel %vm259, %v2365, 0.0
      %v2370 = vsel %vm260, %v2366, 0.0
      %2371 = vst [vmem:[#allocation3] sm:$0x7] %v2369
      %2372 = vst [vmem:[#allocation3 + $0x8] sm:$0x7] %v2370
      %v2373 = vld [vmem:[#allocation2] sm:$0x77]
      %v2374 = vld [vmem:[#allocation2 + $0x8] sm:$0x7]
      %v2377 = vcombine.high %v2373, %v2373
      %v2378 = vrot.slane %v2373, 5
      %v2379 = vrot.slane %v2377, 5
      %v2380 = vrot.slane %v2374, 5
      %2381 = vrot.lane.b32.xlu0 %v2378, 16
      %v2382 = vpop.permute.xlu0 %2381
      %2383 = vrot.lane.b32.xlu0 %v2379, 16
      %v2384 = vpop.permute.xlu0 %2383
      %2385 = vrot.lane.b32.xlu0 %v2380, 16
      %v2386 = vpop.permute.xlu0 %2385
      %v2387 = vsel %vm293, %v2382, %v2384
      %v2388 = vsel %vm293, %v2384, %v2386
      %2391 = vst [vmem:[#allocation3] sm:$0x38] %v2387
      %2392 = vst [vmem:[#allocation3 + $0x8] sm:$0x38] %v2388
      %v2393 = vld [vmem:[#allocation2] sm:$0x77]
      %v2394 = vld [vmem:[#allocation2 + $0x8] sm:$0x7]
      %v2397 = vcombine.high %v2393, %v2393
      %2398 = vrot.lane.b32.xlu0 %v2393, 15
      %v2399 = vpop.permute.xlu0 %2398
      %2400 = vrot.lane.b32.xlu0 %v2397, 15
      %v2401 = vpop.permute.xlu0 %2400
      %2402 = vrot.lane.b32.xlu0 %v2394, 15
      %v2403 = vpop.permute.xlu0 %2402
      %v2404 = vsel %vm315, %v2399, %v2401
      %v2405 = vsel %vm315, %v2401, %v2403
      %v2408 = vsel %vm304, %v2404, 0.0
      %v2409 = vsel %vm305, %v2405, 0.0
      %v2412 = vrot.slane %v2408, 2
      %v2413 = vrot.slane %v2409, 2
      %2416 = vst [vmem:[#allocation3] sm:$0xc0] %v2412
      %2417 = vst [vmem:[#allocation3 + $0x8] sm:$0xc0] %v2413
      %2418 = vst [vmem:[#allocation3 + $0x10] sm:$0x1] %v2412
      %2419 = vst [vmem:[#allocation3 + $0x18] sm:$0x1] %v2413
      %v2420 = vld [vmem:[#allocation2] sm:$0x77]
      %v2421 = vld [vmem:[#allocation2 + $0x8] sm:$0x7]
      %v2424 = vcombine.high %v2420, %v2420
      %2425 = vrot.lane.b32.xlu0 %v2420, 1
      %v2426 = vpop.permute.xlu0 %2425
      %2427 = vrot.lane.b32.xlu0 %v2424, 1
      %v2428 = vpop.permute.xlu0 %2427
      %2429 = vrot.lane.b32.xlu0 %v2421, 1
      %v2430 = vpop.permute.xlu0 %2429
      %v2431 = vsel %vm343, %v2426, %v2428
      %v2432 = vsel %vm343, %v2428, %v2430
      %v2435 = vsel %vm259, %v2431, 0.0
      %v2436 = vsel %vm260, %v2432, 0.0
      %v2439 = vrot.slane %v2435, 7
      %v2440 = vrot.slane %v2436, 7
      %2443 = vst [vmem:[#allocation3 + $0x10] sm:$0xe] %v2439
      %2444 = vst [vmem:[#allocation3 + $0x18] sm:$0xe] %v2440
      %v2445 = vld [vmem:[#allocation2 + $0x4] sm:$0x77]
      %v2447 = vcombine.low %v2445, %v2445
      %2449 = vst [vmem:[#allocation3 + $0x10] sm:$0x70] %v2447
      %2450 = vst [vmem:[#allocation3 + $0x18] sm:$0x70] %v2445
      %v2451 = vld [vmem:[#allocation2 + $0x4] sm:$0x77]
      %v2452 = vld [vmem:[#allocation2 + $0xc] sm:$0x7]
      %v2455 = vcombine.high %v2451, %v2451
      %2456 = vrot.lane.b32.xlu0 %v2451, 127
      %v2457 = vpop.permute.xlu0 %2456
      %2458 = vrot.lane.b32.xlu0 %v2455, 127
      %v2459 = vpop.permute.xlu0 %2458
      %2460 = vrot.lane.b32.xlu0 %v2452, 127
      %v2461 = vpop.permute.xlu0 %2460
      %v2462 = vsel %vm375, %v2457, %v2459
      %v2463 = vsel %vm375, %v2459, %v2461
      %v2466 = vsel %vm304, %v2462, 0.0
      %v2467 = vsel %vm305, %v2463, 0.0
      %v2470 = vrot.slane %v2466, 1
      %v2471 = vrot.slane %v2467, 1
      %2474 = vst [vmem:[#allocation3 + $0x10] sm:$0x80] %v2470
      %2475 = vst [vmem:[#allocation3 + $0x18] sm:$0x80] %v2471
      %2476 = vst [vmem:[#allocation3 + $0x20] sm:$0x3] %v2470
      %2477 = vst [vmem:[#allocation3 + $0x28] sm:$0x3] %v2471
      %v2478 = vld [vmem:[#allocation2 + $0x4] sm:$0x77]
      %v2479 = vld [vmem:[#allocation2 + $0xc] sm:$0x7]
      %v2482 = vcombine.high %v2478, %v2478
      %2483 = vrot.lane.b32.xlu0 %v2478, 113
      %v2484 = vpop.permute.xlu0 %2483
      %2485 = vrot.lane.b32.xlu0 %v2482, 113
      %v2486 = vpop.permute.xlu0 %2485
      %2487 = vrot.lane.b32.xlu0 %v2479, 113
      %v2488 = vpop.permute.xlu0 %2487
      %v2489 = vsel %vm403, %v2484, %v2486
      %v2490 = vsel %vm403, %v2486, %v2488
      %v2493 = vsel %vm259, %v2489, 0.0
      %v2494 = vsel %vm260, %v2490, 0.0
      %v2497 = vrot.slane %v2493, 6
      %v2498 = vrot.slane %v2494, 6
      %2501 = vst [vmem:[#allocation3 + $0x20] sm:$0x1c] %v2497
      %2502 = vst [vmem:[#allocation3 + $0x28] sm:$0x1c] %v2498
      %v2503 = vld [vmem:[#allocation2 + $0x4] sm:$0x77]
      %v2504 = vld [vmem:[#allocation2 + $0xc] sm:$0x7]
      %v2507 = vcombine.high %v2503, %v2503
      %v2508 = vrot.slane %v2503, 3
      %v2509 = vrot.slane %v2507, 3
      %v2510 = vrot.slane %v2504, 3
      %2511 = vrot.lane.b32.xlu0 %v2508, 112
      %v2512 = vpop.permute.xlu0 %2511
      %2513 = vrot.lane.b32.xlu0 %v2509, 112
      %v2514 = vpop.permute.xlu0 %2513
      %2515 = vrot.lane.b32.xlu0 %v2510, 112
      %v2516 = vpop.permute.xlu0 %2515
      %v2517 = vsel %vm432, %v2512, %v2514
      %v2518 = vsel %vm432, %v2514, %v2516
      %2521 = vst [vmem:[#allocation3 + $0x20] sm:$0xe0] %v2517
      %2522 = vst [vmem:[#allocation3 + $0x28] sm:$0xe0] %v2518
      %v2523 = vld [vmem:[#allocation2 + $0x4] sm:$0x77]
      %v2524 = vld [vmem:[#allocation2 + $0xc] sm:$0x7]
      %v2527 = vcombine.high %v2523, %v2523
      %2528 = vrot.lane.b32.xlu0 %v2523, 111
      %v2529 = vpop.permute.xlu0 %2528
      %2530 = vrot.lane.b32.xlu0 %v2527, 111
      %v2531 = vpop.permute.xlu0 %2530
      %2532 = vrot.lane.b32.xlu0 %v2524, 111
      %v2533 = vpop.permute.xlu0 %2532
      %v2534 = vsel %vm450, %v2529, %v2531
      %v2535 = vsel %vm450, %v2531, %v2533
      %v2538 = vsel %vm304, %v2534, 0.0
      %v2539 = vsel %vm305, %v2535, 0.0
      %2540 = vst [vmem:[#allocation3 + $0x30] sm:$0x7] %v2538
      %2541 = vst [vmem:[#allocation3 + $0x38] sm:$0x7] %v2539
      %v2542 = vld [vmem:[%s1] sm:$0xf]
      %v2543 = vld [vmem:[%s1 + $0x4] sm:$0xf]
      %v2544 = vld [vmem:[%s1 + $0x8] sm:$0xf]
      %v2545 = vld [vmem:[%s1 + $0xc] sm:$0xf]
      %v2546 = vld [vmem:[#allocation3] sm:$0xff]
      %v2547 = vld [vmem:[#allocation3 + $0x8] sm:$0xff]
      %v2548 = vld [vmem:[#allocation3 + $0x10] sm:$0xff]
      %v2549 = vld [vmem:[#allocation3 + $0x18] sm:$0xff]
      %v2550 = vld [vmem:[#allocation3 + $0x20] sm:$0xff]
      %v2551 = vld [vmem:[#allocation3 + $0x28] sm:$0xff]
      %v2552 = vld [vmem:[#allocation3 + $0x30] sm:$0x7]
      %v2553 = vld [vmem:[#allocation3 + $0x38] sm:$0x7]
      %v2554 = vpack.c.bf16 %v2548, %v2546
      %v2555 = vpack.c.bf16 %v2549, %v2547
      %v2556 = vpack.c.bf16 %v2552, %v2550
      %v2557 = vpack.c.bf16 %v2553, %v2551
      %v2558 = vld [vmem:[%s2] sm:$0xff]
      %v2559 = vld [vmem:[%s2 + $0x8] sm:$0xff]
      %v2560 = vld [vmem:[%s2 + $0x10] sm:$0xff]
      %v2561 = vld [vmem:[%s2 + $0x18] sm:$0xff]
      %2563 = vset.pattern.permute.xlu0 0
      %2564 = vperm.xlu0 %2563, %v2558
      %v2565 = vpop.permute.xlu0 %2564
      %2568 = vset.pattern.permute.xlu0 0
      %2569 = vperm.xlu0 %2568, %v2559
      %v2570 = vpop.permute.xlu0 %2569
      %2573 = vset.pattern.permute.xlu0 0
      %2574 = vperm.xlu0 %2573, %v2560
      %v2575 = vpop.permute.xlu0 %2574
      %2578 = vset.pattern.permute.xlu0 0
      %2579 = vperm.xlu0 %2578, %v2561
      %v2580 = vpop.permute.xlu0 %2579
      %v2586 = vunpack.c.l.b16 %v2542
      %v2587 = vunpack.c.l.b16 %v2543
      %v2588 = vunpack.c.l.b16 %v2544
      %v2589 = vunpack.c.l.b16 %v2545
      %v2590 = vpack.c.b16 %v2587, %v2586
      %v2591 = vpack.c.b16 %v2589, %v2588
      %v2593 = vsel %vm509, %v2590, 0
      %v2596 = vsel %vm509, %v2591, 0
      %v2599 = vand.u32 %v2556, %v519
      %v2602 = vand.u32 %v2557, %v519
      %2604 = vmatprep.subr.bf16.mxu0 0
      %2605 = vmatpush1.bf16.msra.mxu0 0
      %2606 = vmatprep.subr.bf16.mxu0 0
      %2607 = vmatpush1.bf16.msra.mxu0 0
      %2608 = vmatprep.subr.bf16.mxu0 0
      %2609 = vmatpush1.bf16.msra.mxu0 0
      %2610 = vmatprep.subr.bf16.mxu0 0
      %2611 = vmatpush1.bf16.msra.mxu0 0
      %2612 = vmatprep.subr.bf16.mxu0 0
      %2613 = vmatpush1.bf16.msra.mxu0 0
      %2614 = vmatprep.subr.bf16.mxu0 0
      %2615 = vmatpush1.bf16.msra.mxu0 0
      %2616 = vmatprep.subr.bf16.mxu0 %v2602
      %2617 = vmatpush1.bf16.msra.mxu0 %v2599
      %2618 = vmatprep.subr.bf16.mxu0 %v2555
      %2619 = vmatpush1.bf16.msra.mxu0 %v2554
      %2620 = vmatprep.subr.bf16.mxu0 0
      %2621 = vmatpush2.bf16.msra.mxu0 0
      %2622 = vmatprep.subr.bf16.mxu0 0
      %2623 = vmatpush2.bf16.msra.mxu0 0
      %2624 = vmatprep.subr.bf16.mxu0 0
      %2625 = vmatpush2.bf16.msra.mxu0 0
      %2626 = vmatprep.subr.bf16.mxu0 0
      %2627 = vmatpush2.bf16.msra.mxu0 0
      %2628 = vmatprep.subr.bf16.mxu0 0
      %2629 = vmatpush2.bf16.msra.mxu0 0
      %2630 = vmatprep.subr.bf16.mxu0 0
      %2631 = vmatpush2.bf16.msra.mxu0 0
      %2632 = vmatprep.subr.bf16.mxu0 0
      %2633 = vmatpush2.bf16.msra.mxu0 0
      %2634 = vmatprep.subr.bf16.mxu0 0
      %2635 = vmatpush2.bf16.msra.mxu0 0
      %2636 = vmatprep.mubr.bf16.mxu0 0
      %2637 = vmatmul.mubr.bf16.gmra.mxu0 %v2593
      %v2638 = vpop.f32.mrf.mxu0
      %v2639 = vadd.f32 %v2565, %v2638
      %v2640 = vpop.f32.mrf.mxu0
      %v2641 = vadd.f32 %v2565, %v2640
      %v2642 = vpop.f32.mrf.mxu0
      %v2643 = vadd.f32 %v2570, %v2642
      %v2644 = vpop.f32.mrf.mxu0
      %v2645 = vadd.f32 %v2570, %v2644
      %2646 = vmatprep.mubr.bf16.mxu0 0
      %2647 = vmatmul.mubr.bf16.gmra.mxu0 %v2596
      %v2648 = vpop.f32.mrf.mxu0
      %v2649 = vadd.f32 %v2575, %v2648
      %v2650 = vpop.f32.mrf.mxu0
      %v2651 = vadd.f32 %v2575, %v2650
      %v2652 = vpop.f32.mrf.mxu0
      %v2653 = vadd.f32 %v2580, %v2652
      %v2654 = vpop.f32.mrf.mxu0
      %v2655 = vadd.f32 %v2580, %v2654
      %2656 = vdwg.mxu0
      %v2657 = vpack.c.bf16 %v2643, %v2639
      %v2658 = vpack.c.bf16 %v2645, %v2641
      %v2659 = vpack.c.bf16 %v2653, %v2649
      %v2660 = vpack.c.bf16 %v2655, %v2651
      %v2665 = vunpack.c.l.b16 %v2657
      %v2666 = vunpack.c.l.b16 %v2658
      %v2667 = vunpack.c.h.b16 %v2657
      %v2668 = vunpack.c.h.b16 %v2658
      %v2669 = vunpack.c.l.b16 %v2659
      %v2670 = vunpack.c.l.b16 %v2660
      %v2671 = vunpack.c.h.b16 %v2659
      %v2672 = vunpack.c.h.b16 %v2660
      %v2673 = vpack.c.b16 %v2666, %v2665
      %v2674 = vpack.c.b16 %v2668, %v2667
      %v2675 = vpack.c.b16 %v2670, %v2669
      %v2676 = vpack.c.b16 %v2672, %v2671
      %2681 = vst [vmem:[#allocation4 + $0x4] sm:$0xff] %v2673
      %2682 = vst [vmem:[#allocation4 + $0x14] sm:$0xff] %v2674
      %2683 = vst [vmem:[#allocation4 + $0x24] sm:$0xff] %v2675
      %2684 = vst [vmem:[#allocation4 + $0x34] sm:$0xff] %v2676
      %v2685 = vld [vmem:[#allocation4] sm:$0xff]
      %v2686 = vld [vmem:[#allocation4 + $0x8] sm:$0xf]
      %v2687 = vld [vmem:[#allocation4 + $0x10] sm:$0xff]
      %v2688 = vld [vmem:[#allocation4 + $0x18] sm:$0xf]
      %v2689 = vld [vmem:[#allocation4 + $0x20] sm:$0xff]
      %v2690 = vld [vmem:[#allocation4 + $0x28] sm:$0xf]
      %v2691 = vld [vmem:[#allocation4 + $0x30] sm:$0xff]
      %v2692 = vld [vmem:[#allocation4 + $0x38] sm:$0xf]
      %v2693 = vld [vmem:[%s3] sm:$0x3]
      %v2702 = vunpack.c.l.b16 %v2685
      %v2703 = vunpack.c.h.b16 %v2685
      %v2704 = vunpack.c.l.b16 %v2686
      %v2705 = vunpack.c.l.b16 %v2687
      %v2706 = vunpack.c.h.b16 %v2687
      %v2707 = vunpack.c.l.b16 %v2688
      %v2708 = vunpack.c.l.b16 %v2689
      %v2709 = vunpack.c.h.b16 %v2689
      %v2710 = vunpack.c.l.b16 %v2690
      %v2711 = vunpack.c.l.b16 %v2691
      %v2712 = vunpack.c.h.b16 %v2691
      %v2713 = vunpack.c.l.b16 %v2692
      %v2714 = vpack.c.b16 %v2705, %v2702
      %v2715 = vpack.c.b16 %v2706, %v2703
      %v2716 = vpack.c.b16 %v2707, %v2704
      %v2717 = vpack.c.b16 %v2711, %v2708
      %v2718 = vpack.c.b16 %v2712, %v2709
      %v2719 = vpack.c.b16 %v2713, %v2710
      %2720 = vrot.lane.b32.xlu0 %v2714, 17
      %v2721 = vpop.permute.xlu0 %2720
      %2722 = vrot.lane.b32.xlu0 %v2715, 17
      %v2723 = vpop.permute.xlu0 %2722
      %2724 = vrot.lane.b32.xlu0 %v2716, 17
      %v2725 = vpop.permute.xlu0 %2724
      %2726 = vrot.lane.b32.xlu0 %v2717, 17
      %v2727 = vpop.permute.xlu0 %2726
      %2728 = vrot.lane.b32.xlu0 %v2718, 17
      %v2729 = vpop.permute.xlu0 %2728
      %2730 = vrot.lane.b32.xlu0 %v2719, 17
      %v2731 = vpop.permute.xlu0 %2730
      %v2732 = vsel %vm654, %v2721, %v2723
      %v2733 = vsel %vm654, %v2723, %v2725
      %v2734 = vsel %vm654, %v2727, %v2729
      %v2735 = vsel %vm654, %v2729, %v2731
      %v2741 = vsel %vm663, %v2693, 0
      %2743 = vmatprep.subr.bf16.mxu0 0
      %2744 = vmatpush1.bf16.msra.mxu0 0
      %2745 = vmatprep.subr.bf16.mxu0 0
      %2746 = vmatpush1.bf16.msra.mxu0 0
      %2747 = vmatprep.subr.bf16.mxu0 0
      %2748 = vmatpush1.bf16.msra.mxu0 0
      %2749 = vmatprep.subr.bf16.mxu0 0
      %2750 = vmatpush1.bf16.msra.mxu0 0
      %2751 = vmatprep.subr.bf16.mxu0 0
      %2752 = vmatpush1.bf16.msra.mxu0 0
      %2753 = vmatprep.subr.bf16.mxu0 0
      %2754 = vmatpush1.bf16.msra.mxu0 0
      %2755 = vmatprep.subr.bf16.mxu0 %v2735
      %2756 = vmatpush1.bf16.msra.mxu0 %v2734
      %2757 = vmatprep.subr.bf16.mxu0 %v2733
      %2758 = vmatpush1.bf16.msra.mxu0 %v2732
      %2759 = vmatprep.subr.bf16.mxu0 0
      %2760 = vmatpush2.bf16.msra.mxu0 0
      %2761 = vmatprep.subr.bf16.mxu0 0
      %2762 = vmatpush2.bf16.msra.mxu0 0
      %2763 = vmatprep.subr.bf16.mxu0 0
      %2764 = vmatpush2.bf16.msra.mxu0 0
      %2765 = vmatprep.subr.bf16.mxu0 0
      %2766 = vmatpush2.bf16.msra.mxu0 0
      %2767 = vmatprep.subr.bf16.mxu0 0
      %2768 = vmatpush2.bf16.msra.mxu0 0
      %2769 = vmatprep.subr.bf16.mxu0 0
      %2770 = vmatpush2.bf16.msra.mxu0 0
      %2771 = vmatprep.subr.bf16.mxu0 0
      %2772 = vmatpush2.bf16.msra.mxu0 0
      %2773 = vmatprep.subr.bf16.mxu0 0
      %2774 = vmatpush2.bf16.msra.mxu0 0
      %2775 = vmatprep.mubr.bf16.mxu0 0
      %2776 = vmatmul.mubr.bf16.gmra.mxu0 %v2741
      %v2777 = vpop.f32.mrf.mxu0
      %v2778 = vadd.f32 0.0, %v2777
      %v2779 = vpop.f32.mrf.mxu0
      %v2780 = vadd.f32 0.0, %v2779
      %v2781 = vpop.f32.mrf.mxu0
      %v2782 = vpop.f32.mrf.mxu0
      %2783 = vdwg.mxu0
      %v2784 = vsel %vm259, %v2778, 0.0
      %v2785 = vsel %vm260, %v2780, 0.0
      %v2786 = vld [vmem:[%s710] sm:$0x3]
      %v2787 = vld [vmem:[%s712] sm:$0x3]
      %2788 = vrot.lane.b32.xlu0 %v2714, 15
      %v2789 = vpop.permute.xlu0 %2788
      %2790 = vrot.lane.b32.xlu0 %v2715, 15
      %v2791 = vpop.permute.xlu0 %2790
      %2792 = vrot.lane.b32.xlu0 %v2716, 15
      %v2793 = vpop.permute.xlu0 %2792
      %2794 = vrot.lane.b32.xlu0 %v2717, 15
      %v2795 = vpop.permute.xlu0 %2794
      %2796 = vrot.lane.b32.xlu0 %v2718, 15
      %v2797 = vpop.permute.xlu0 %2796
      %2798 = vrot.lane.b32.xlu0 %v2719, 15
      %v2799 = vpop.permute.xlu0 %2798
      %v2800 = vsel %vm726, %v2789, %v2791
      %v2801 = vsel %vm726, %v2791, %v2793
      %v2802 = vsel %vm726, %v2795, %v2797
      %v2803 = vsel %vm726, %v2797, %v2799
      %v2809 = vsel %vm663, %v2787, 0
      %2811 = vmatprep.subr.bf16.mxu0 0
      %2812 = vmatpush1.bf16.msra.mxu0 0
      %2813 = vmatprep.subr.bf16.mxu0 0
      %2814 = vmatpush1.bf16.msra.mxu0 0
      %2815 = vmatprep.subr.bf16.mxu0 0
      %2816 = vmatpush1.bf16.msra.mxu0 0
      %2817 = vmatprep.subr.bf16.mxu0 0
      %2818 = vmatpush1.bf16.msra.mxu0 0
      %2819 = vmatprep.subr.bf16.mxu0 0
      %2820 = vmatpush1.bf16.msra.mxu0 0
      %2821 = vmatprep.subr.bf16.mxu0 0
      %2822 = vmatpush1.bf16.msra.mxu0 0
      %2823 = vmatprep.subr.bf16.mxu0 %v2803
      %2824 = vmatpush1.bf16.msra.mxu0 %v2802
      %2825 = vmatprep.subr.bf16.mxu0 %v2801
      %2826 = vmatpush1.bf16.msra.mxu0 %v2800
      %2827 = vmatprep.subr.bf16.mxu0 0
      %2828 = vmatpush2.bf16.msra.mxu0 0
      %2829 = vmatprep.subr.bf16.mxu0 0
      %2830 = vmatpush2.bf16.msra.mxu0 0
      %2831 = vmatprep.subr.bf16.mxu0 0
      %2832 = vmatpush2.bf16.msra.mxu0 0
      %2833 = vmatprep.subr.bf16.mxu0 0
      %2834 = vmatpush2.bf16.msra.mxu0 0
      %2835 = vmatprep.subr.bf16.mxu0 0
      %2836 = vmatpush2.bf16.msra.mxu0 0
      %2837 = vmatprep.subr.bf16.mxu0 0
      %2838 = vmatpush2.bf16.msra.mxu0 0
      %2839 = vmatprep.subr.bf16.mxu0 0
      %2840 = vmatpush2.bf16.msra.mxu0 0
      %2841 = vmatprep.subr.bf16.mxu0 0
      %2842 = vmatpush2.bf16.msra.mxu0 0
      %2843 = vmatprep.mubr.bf16.mxu0 0
      %2844 = vmatmul.mubr.bf16.gmra.mxu0 %v2809
      %v2845 = vpop.f32.mrf.mxu0
      %v2846 = vadd.f32 0.0, %v2845
      %v2847 = vpop.f32.mrf.mxu0
      %v2848 = vadd.f32 0.0, %v2847
      %v2849 = vpop.f32.mrf.mxu0
      %v2850 = vpop.f32.mrf.mxu0
      %2851 = vdwg.mxu0
      %v2852 = vsel %vm304, %v2846, 0.0
      %v2853 = vsel %vm305, %v2848, 0.0
      %v2854 = vld [vmem:[%s781] sm:$0x3]
      %2855 = vrot.lane.b32.xlu0 %v2714, 1
      %v2856 = vpop.permute.xlu0 %2855
      %2857 = vrot.lane.b32.xlu0 %v2715, 1
      %v2858 = vpop.permute.xlu0 %2857
      %2859 = vrot.lane.b32.xlu0 %v2716, 1
      %v2860 = vpop.permute.xlu0 %2859
      %2861 = vrot.lane.b32.xlu0 %v2717, 1
      %v2862 = vpop.permute.xlu0 %2861
      %2863 = vrot.lane.b32.xlu0 %v2718, 1
      %v2864 = vpop.permute.xlu0 %2863
      %2865 = vrot.lane.b32.xlu0 %v2719, 1
      %v2866 = vpop.permute.xlu0 %2865
      %v2867 = vsel %vm795, %v2856, %v2858
      %v2868 = vsel %vm795, %v2858, %v2860
      %v2869 = vsel %vm795, %v2862, %v2864
      %v2870 = vsel %vm795, %v2864, %v2866
      %v2876 = vsel %vm663, %v2854, 0
      %2878 = vmatprep.subr.bf16.mxu0 0
      %2879 = vmatpush1.bf16.msra.mxu0 0
      %2880 = vmatprep.subr.bf16.mxu0 0
      %2881 = vmatpush1.bf16.msra.mxu0 0
      %2882 = vmatprep.subr.bf16.mxu0 0
      %2883 = vmatpush1.bf16.msra.mxu0 0
      %2884 = vmatprep.subr.bf16.mxu0 0
      %2885 = vmatpush1.bf16.msra.mxu0 0
      %2886 = vmatprep.subr.bf16.mxu0 0
      %2887 = vmatpush1.bf16.msra.mxu0 0
      %2888 = vmatprep.subr.bf16.mxu0 0
      %2889 = vmatpush1.bf16.msra.mxu0 0
      %2890 = vmatprep.subr.bf16.mxu0 %v2870
      %2891 = vmatpush1.bf16.msra.mxu0 %v2869
      %2892 = vmatprep.subr.bf16.mxu0 %v2868
      %2893 = vmatpush1.bf16.msra.mxu0 %v2867
      %2894 = vmatprep.subr.bf16.mxu0 0
      %2895 = vmatpush2.bf16.msra.mxu0 0
      %2896 = vmatprep.subr.bf16.mxu0 0
      %2897 = vmatpush2.bf16.msra.mxu0 0
      %2898 = vmatprep.subr.bf16.mxu0 0
      %2899 = vmatpush2.bf16.msra.mxu0 0
      %2900 = vmatprep.subr.bf16.mxu0 0
      %2901 = vmatpush2.bf16.msra.mxu0 0
      %2902 = vmatprep.subr.bf16.mxu0 0
      %2903 = vmatpush2.bf16.msra.mxu0 0
      %2904 = vmatprep.subr.bf16.mxu0 0
      %2905 = vmatpush2.bf16.msra.mxu0 0
      %2906 = vmatprep.subr.bf16.mxu0 0
      %2907 = vmatpush2.bf16.msra.mxu0 0
      %2908 = vmatprep.subr.bf16.mxu0 0
      %2909 = vmatpush2.bf16.msra.mxu0 0
      %2910 = vmatprep.mubr.bf16.mxu0 0
      %2911 = vmatmul.mubr.bf16.gmra.mxu0 %v2876
      %v2912 = vpop.f32.mrf.mxu0
      %v2913 = vadd.f32 0.0, %v2912
      %v2914 = vpop.f32.mrf.mxu0
      %v2915 = vadd.f32 0.0, %v2914
      %v2916 = vpop.f32.mrf.mxu0
      %v2917 = vpop.f32.mrf.mxu0
      %2918 = vdwg.mxu0
      %v2919 = vsel %vm259, %v2913, 0.0
      %v2920 = vsel %vm260, %v2915, 0.0
      %v2921 = vadd.f32 %v2784, %v2919
      %v2922 = vadd.f32 %v2785, %v2920
      %v2923 = vld [vmem:[#allocation4 + $0x4] sm:$0xff]
      %v2924 = vld [vmem:[#allocation4 + $0x14] sm:$0xff]
      %v2925 = vld [vmem:[#allocation4 + $0x24] sm:$0xff]
      %v2926 = vld [vmem:[#allocation4 + $0x34] sm:$0xff]
      %v2927 = vld [vmem:[%s856] sm:$0x3]
      %v2932 = vunpack.c.l.b16 %v2923
      %v2933 = vunpack.c.h.b16 %v2923
      %v2934 = vunpack.c.l.b16 %v2924
      %v2935 = vunpack.c.h.b16 %v2924
      %v2936 = vunpack.c.l.b16 %v2925
      %v2937 = vunpack.c.h.b16 %v2925
      %v2938 = vunpack.c.l.b16 %v2926
      %v2939 = vunpack.c.h.b16 %v2926
      %v2940 = vpack.c.b16 %v2934, %v2932
      %v2941 = vpack.c.b16 %v2935, %v2933
      %v2942 = vpack.c.b16 %v2938, %v2936
      %v2943 = vpack.c.b16 %v2939, %v2937
      %v2949 = vsel %vm663, %v2927, 0
      %2951 = vmatprep.subr.bf16.mxu0 0
      %2952 = vmatpush1.bf16.msra.mxu0 0
      %2953 = vmatprep.subr.bf16.mxu0 0
      %2954 = vmatpush1.bf16.msra.mxu0 0
      %2955 = vmatprep.subr.bf16.mxu0 0
      %2956 = vmatpush1.bf16.msra.mxu0 0
      %2957 = vmatprep.subr.bf16.mxu0 0
      %2958 = vmatpush1.bf16.msra.mxu0 0
      %2959 = vmatprep.subr.bf16.mxu0 0
      %2960 = vmatpush1.bf16.msra.mxu0 0
      %2961 = vmatprep.subr.bf16.mxu0 0
      %2962 = vmatpush1.bf16.msra.mxu0 0
      %2963 = vmatprep.subr.bf16.mxu0 %v2943
      %2964 = vmatpush1.bf16.msra.mxu0 %v2942
      %2965 = vmatprep.subr.bf16.mxu0 %v2941
      %2966 = vmatpush1.bf16.msra.mxu0 %v2940
      %2967 = vmatprep.subr.bf16.mxu0 0
      %2968 = vmatpush2.bf16.msra.mxu0 0
      %2969 = vmatprep.subr.bf16.mxu0 0
      %2970 = vmatpush2.bf16.msra.mxu0 0
      %2971 = vmatprep.subr.bf16.mxu0 0
      %2972 = vmatpush2.bf16.msra.mxu0 0
      %2973 = vmatprep.subr.bf16.mxu0 0
      %2974 = vmatpush2.bf16.msra.mxu0 0
      %2975 = vmatprep.subr.bf16.mxu0 0
      %2976 = vmatpush2.bf16.msra.mxu0 0
      %2977 = vmatprep.subr.bf16.mxu0 0
      %2978 = vmatpush2.bf16.msra.mxu0 0
      %2979 = vmatprep.subr.bf16.mxu0 0
      %2980 = vmatpush2.bf16.msra.mxu0 0
      %2981 = vmatprep.subr.bf16.mxu0 0
      %2982 = vmatpush2.bf16.msra.mxu0 0
      %2983 = vmatprep.mubr.bf16.mxu0 0
      %2984 = vmatmul.mubr.bf16.gmra.mxu0 %v2949
      %v2985 = vpop.f32.mrf.mxu0
      %v2986 = vadd.f32 0.0, %v2985
      %v2987 = vpop.f32.mrf.mxu0
      %v2988 = vadd.f32 0.0, %v2987
      %v2989 = vpop.f32.mrf.mxu0
      %v2990 = vpop.f32.mrf.mxu0
      %2991 = vdwg.mxu0
      %2992 = vrot.lane.b32.xlu0 %v2714, 16
      %v2993 = vpop.permute.xlu0 %2992
      %2994 = vrot.lane.b32.xlu0 %v2715, 16
      %v2995 = vpop.permute.xlu0 %2994
      %2996 = vrot.lane.b32.xlu0 %v2716, 16
      %v2997 = vpop.permute.xlu0 %2996
      %2998 = vrot.lane.b32.xlu0 %v2717, 16
      %v2999 = vpop.permute.xlu0 %2998
      %3000 = vrot.lane.b32.xlu0 %v2718, 16
      %v3001 = vpop.permute.xlu0 %3000
      %3002 = vrot.lane.b32.xlu0 %v2719, 16
      %v3003 = vpop.permute.xlu0 %3002
      %v3004 = vsel %vm934, %v2993, %v2995
      %v3005 = vsel %vm934, %v2995, %v2997
      %v3006 = vsel %vm934, %v2999, %v3001
      %v3007 = vsel %vm934, %v3001, %v3003
      %v3013 = vsel %vm663, %v2786, 0
      %3015 = vmatprep.subr.bf16.mxu0 0
      %3016 = vmatpush1.bf16.msra.mxu0 0
      %3017 = vmatprep.subr.bf16.mxu0 0
      %3018 = vmatpush1.bf16.msra.mxu0 0
      %3019 = vmatprep.subr.bf16.mxu0 0
      %3020 = vmatpush1.bf16.msra.mxu0 0
      %3021 = vmatprep.subr.bf16.mxu0 0
      %3022 = vmatpush1.bf16.msra.mxu0 0
      %3023 = vmatprep.subr.bf16.mxu0 0
      %3024 = vmatpush1.bf16.msra.mxu0 0
      %3025 = vmatprep.subr.bf16.mxu0 0
      %3026 = vmatpush1.bf16.msra.mxu0 0
      %3027 = vmatprep.subr.bf16.mxu0 %v3007
      %3028 = vmatpush1.bf16.msra.mxu0 %v3006
      %3029 = vmatprep.subr.bf16.mxu0 %v3005
      %3030 = vmatpush1.bf16.msra.mxu0 %v3004
      %3031 = vmatprep.subr.bf16.mxu0 0
      %3032 = vmatpush2.bf16.msra.mxu0 0
      %3033 = vmatprep.subr.bf16.mxu0 0
      %3034 = vmatpush2.bf16.msra.mxu0 0
      %3035 = vmatprep.subr.bf16.mxu0 0
      %3036 = vmatpush2.bf16.msra.mxu0 0
      %3037 = vmatprep.subr.bf16.mxu0 0
      %3038 = vmatpush2.bf16.msra.mxu0 0
      %3039 = vmatprep.subr.bf16.mxu0 0
      %3040 = vmatpush2.bf16.msra.mxu0 0
      %3041 = vmatprep.subr.bf16.mxu0 0
      %3042 = vmatpush2.bf16.msra.mxu0 0
      %3043 = vmatprep.subr.bf16.mxu0 0
      %3044 = vmatpush2.bf16.msra.mxu0 0
      %3045 = vmatprep.subr.bf16.mxu0 0
      %3046 = vmatpush2.bf16.msra.mxu0 0
      %3047 = vmatprep.mubr.bf16.mxu0 0
      %3048 = vmatmul.mubr.bf16.gmra.mxu0 %v3013
      %v3049 = vpop.f32.mrf.mxu0
      %v3050 = vadd.f32 %v2986, %v3049
      %v3051 = vpop.f32.mrf.mxu0
      %v3052 = vadd.f32 %v2988, %v3051
      %v3053 = vpop.f32.mrf.mxu0
      %v3054 = vpop.f32.mrf.mxu0
      %3055 = vdwg.mxu0
      %v3056 = vld [vmem:[#allocation4 + $0x4] sm:$0xff]
      %v3057 = vld [vmem:[#allocation4 + $0xc] sm:$0xf]
      %v3058 = vld [vmem:[#allocation4 + $0x14] sm:$0xff]
      %v3059 = vld [vmem:[#allocation4 + $0x1c] sm:$0xf]
      %v3060 = vld [vmem:[#allocation4 + $0x24] sm:$0xff]
      %v3061 = vld [vmem:[#allocation4 + $0x2c] sm:$0xf]
      %v3062 = vld [vmem:[#allocation4 + $0x34] sm:$0xff]
      %v3063 = vld [vmem:[#allocation4 + $0x3c] sm:$0xf]
      %v3064 = vld [vmem:[%s995] sm:$0x3]
      %v3073 = vunpack.c.l.b16 %v3056
      %v3074 = vunpack.c.h.b16 %v3056
      %v3075 = vunpack.c.l.b16 %v3057
      %v3076 = vunpack.c.l.b16 %v3058
      %v3077 = vunpack.c.h.b16 %v3058
      %v3078 = vunpack.c.l.b16 %v3059
      %v3079 = vunpack.c.l.b16 %v3060
      %v3080 = vunpack.c.h.b16 %v3060
      %v3081 = vunpack.c.l.b16 %v3061
      %v3082 = vunpack.c.l.b16 %v3062
      %v3083 = vunpack.c.h.b16 %v3062
      %v3084 = vunpack.c.l.b16 %v3063
      %v3085 = vpack.c.b16 %v3076, %v3073
      %v3086 = vpack.c.b16 %v3077, %v3074
      %v3087 = vpack.c.b16 %v3078, %v3075
      %v3088 = vpack.c.b16 %v3082, %v3079
      %v3089 = vpack.c.b16 %v3083, %v3080
      %v3090 = vpack.c.b16 %v3084, %v3081
      %3091 = vrot.lane.b32.xlu0 %v3085, 127
      %v3092 = vpop.permute.xlu0 %3091
      %3093 = vrot.lane.b32.xlu0 %v3086, 127
      %v3094 = vpop.permute.xlu0 %3093
      %3095 = vrot.lane.b32.xlu0 %v3087, 127
      %v3096 = vpop.permute.xlu0 %3095
      %3097 = vrot.lane.b32.xlu0 %v3088, 127
      %v3098 = vpop.permute.xlu0 %3097
      %3099 = vrot.lane.b32.xlu0 %v3089, 127
      %v3100 = vpop.permute.xlu0 %3099
      %3101 = vrot.lane.b32.xlu0 %v3090, 127
      %v3102 = vpop.permute.xlu0 %3101
      %v3103 = vsel %vm1035, %v3092, %v3094
      %v3104 = vsel %vm1035, %v3094, %v3096
      %v3105 = vsel %vm1035, %v3098, %v3100
      %v3106 = vsel %vm1035, %v3100, %v3102
      %v3112 = vsel %vm663, %v3064, 0
      %3114 = vmatprep.subr.bf16.mxu0 0
      %3115 = vmatpush1.bf16.msra.mxu0 0
      %3116 = vmatprep.subr.bf16.mxu0 0
      %3117 = vmatpush1.bf16.msra.mxu0 0
      %3118 = vmatprep.subr.bf16.mxu0 0
      %3119 = vmatpush1.bf16.msra.mxu0 0
      %3120 = vmatprep.subr.bf16.mxu0 0
      %3121 = vmatpush1.bf16.msra.mxu0 0
      %3122 = vmatprep.subr.bf16.mxu0 0
      %3123 = vmatpush1.bf16.msra.mxu0 0
      %3124 = vmatprep.subr.bf16.mxu0 0
      %3125 = vmatpush1.bf16.msra.mxu0 0
      %3126 = vmatprep.subr.bf16.mxu0 %v3106
      %3127 = vmatpush1.bf16.msra.mxu0 %v3105
      %3128 = vmatprep.subr.bf16.mxu0 %v3104
      %3129 = vmatpush1.bf16.msra.mxu0 %v3103
      %3130 = vmatprep.subr.bf16.mxu0 0
      %3131 = vmatpush2.bf16.msra.mxu0 0
      %3132 = vmatprep.subr.bf16.mxu0 0
      %3133 = vmatpush2.bf16.msra.mxu0 0
      %3134 = vmatprep.subr.bf16.mxu0 0
      %3135 = vmatpush2.bf16.msra.mxu0 0
      %3136 = vmatprep.subr.bf16.mxu0 0
      %3137 = vmatpush2.bf16.msra.mxu0 0
      %3138 = vmatprep.subr.bf16.mxu0 0
      %3139 = vmatpush2.bf16.msra.mxu0 0
      %3140 = vmatprep.subr.bf16.mxu0 0
      %3141 = vmatpush2.bf16.msra.mxu0 0
      %3142 = vmatprep.subr.bf16.mxu0 0
      %3143 = vmatpush2.bf16.msra.mxu0 0
      %3144 = vmatprep.subr.bf16.mxu0 0
      %3145 = vmatpush2.bf16.msra.mxu0 0
      %3146 = vmatprep.mubr.bf16.mxu0 0
      %3147 = vmatmul.mubr.bf16.gmra.mxu0 %v3112
      %v3148 = vpop.f32.mrf.mxu0
      %v3149 = vadd.f32 0.0, %v3148
      %v3150 = vpop.f32.mrf.mxu0
      %v3151 = vadd.f32 0.0, %v3150
      %v3152 = vpop.f32.mrf.mxu0
      %v3153 = vpop.f32.mrf.mxu0
      %3154 = vdwg.mxu0
      %v3155 = vsel %vm304, %v3149, 0.0
      %v3156 = vsel %vm305, %v3151, 0.0
      %v3157 = vadd.f32 %v2852, %v3155
      %v3158 = vadd.f32 %v2853, %v3156
      %v3159 = vld [vmem:[%s1092] sm:$0x3]
      %3160 = vrot.lane.b32.xlu0 %v3085, 113
      %v3161 = vpop.permute.xlu0 %3160
      %3162 = vrot.lane.b32.xlu0 %v3086, 113
      %v3163 = vpop.permute.xlu0 %3162
      %3164 = vrot.lane.b32.xlu0 %v3087, 113
      %v3165 = vpop.permute.xlu0 %3164
      %3166 = vrot.lane.b32.xlu0 %v3088, 113
      %v3167 = vpop.permute.xlu0 %3166
      %3168 = vrot.lane.b32.xlu0 %v3089, 113
      %v3169 = vpop.permute.xlu0 %3168
      %3170 = vrot.lane.b32.xlu0 %v3090, 113
      %v3171 = vpop.permute.xlu0 %3170
      %v3172 = vsel %vm1106, %v3161, %v3163
      %v3173 = vsel %vm1106, %v3163, %v3165
      %v3174 = vsel %vm1106, %v3167, %v3169
      %v3175 = vsel %vm1106, %v3169, %v3171
      %v3181 = vsel %vm663, %v3159, 0
      %3183 = vmatprep.subr.bf16.mxu0 0
      %3184 = vmatpush1.bf16.msra.mxu0 0
      %3185 = vmatprep.subr.bf16.mxu0 0
      %3186 = vmatpush1.bf16.msra.mxu0 0
      %3187 = vmatprep.subr.bf16.mxu0 0
      %3188 = vmatpush1.bf16.msra.mxu0 0
      %3189 = vmatprep.subr.bf16.mxu0 0
      %3190 = vmatpush1.bf16.msra.mxu0 0
      %3191 = vmatprep.subr.bf16.mxu0 0
      %3192 = vmatpush1.bf16.msra.mxu0 0
      %3193 = vmatprep.subr.bf16.mxu0 0
      %3194 = vmatpush1.bf16.msra.mxu0 0
      %3195 = vmatprep.subr.bf16.mxu0 %v3175
      %3196 = vmatpush1.bf16.msra.mxu0 %v3174
      %3197 = vmatprep.subr.bf16.mxu0 %v3173
      %3198 = vmatpush1.bf16.msra.mxu0 %v3172
      %3199 = vmatprep.subr.bf16.mxu0 0
      %3200 = vmatpush2.bf16.msra.mxu0 0
      %3201 = vmatprep.subr.bf16.mxu0 0
      %3202 = vmatpush2.bf16.msra.mxu0 0
      %3203 = vmatprep.subr.bf16.mxu0 0
      %3204 = vmatpush2.bf16.msra.mxu0 0
      %3205 = vmatprep.subr.bf16.mxu0 0
      %3206 = vmatpush2.bf16.msra.mxu0 0
      %3207 = vmatprep.subr.bf16.mxu0 0
      %3208 = vmatpush2.bf16.msra.mxu0 0
      %3209 = vmatprep.subr.bf16.mxu0 0
      %3210 = vmatpush2.bf16.msra.mxu0 0
      %3211 = vmatprep.subr.bf16.mxu0 0
      %3212 = vmatpush2.bf16.msra.mxu0 0
      %3213 = vmatprep.subr.bf16.mxu0 0
      %3214 = vmatpush2.bf16.msra.mxu0 0
      %3215 = vmatprep.mubr.bf16.mxu0 0
      %3216 = vmatmul.mubr.bf16.gmra.mxu0 %v3181
      %v3217 = vpop.f32.mrf.mxu0
      %v3218 = vadd.f32 0.0, %v3217
      %v3219 = vpop.f32.mrf.mxu0
      %v3220 = vadd.f32 0.0, %v3219
      %v3221 = vpop.f32.mrf.mxu0
      %v3222 = vpop.f32.mrf.mxu0
      %3223 = vdwg.mxu0
      %v3224 = vsel %vm259, %v3218, 0.0
      %v3225 = vsel %vm260, %v3220, 0.0
      %v3226 = vadd.f32 %v2921, %v3224
      %v3227 = vadd.f32 %v2922, %v3225
      %v3228 = vld [vmem:[%s1163] sm:$0x3]
      %3229 = vrot.lane.b32.xlu0 %v3085, 112
      %v3230 = vpop.permute.xlu0 %3229
      %3231 = vrot.lane.b32.xlu0 %v3086, 112
      %v3232 = vpop.permute.xlu0 %3231
      %3233 = vrot.lane.b32.xlu0 %v3087, 112
      %v3234 = vpop.permute.xlu0 %3233
      %3235 = vrot.lane.b32.xlu0 %v3088, 112
      %v3236 = vpop.permute.xlu0 %3235
      %3237 = vrot.lane.b32.xlu0 %v3089, 112
      %v3238 = vpop.permute.xlu0 %3237
      %3239 = vrot.lane.b32.xlu0 %v3090, 112
      %v3240 = vpop.permute.xlu0 %3239
      %v3241 = vsel %vm1177, %v3230, %v3232
      %v3242 = vsel %vm1177, %v3232, %v3234
      %v3243 = vsel %vm1177, %v3236, %v3238
      %v3244 = vsel %vm1177, %v3238, %v3240
      %v3250 = vsel %vm663, %v3228, 0
      %3252 = vmatprep.subr.bf16.mxu0 0
      %3253 = vmatpush1.bf16.msra.mxu0 0
      %3254 = vmatprep.subr.bf16.mxu0 0
      %3255 = vmatpush1.bf16.msra.mxu0 0
      %3256 = vmatprep.subr.bf16.mxu0 0
      %3257 = vmatpush1.bf16.msra.mxu0 0
      %3258 = vmatprep.subr.bf16.mxu0 0
      %3259 = vmatpush1.bf16.msra.mxu0 0
      %3260 = vmatprep.subr.bf16.mxu0 0
      %3261 = vmatpush1.bf16.msra.mxu0 0
      %3262 = vmatprep.subr.bf16.mxu0 0
      %3263 = vmatpush1.bf16.msra.mxu0 0
      %3264 = vmatprep.subr.bf16.mxu0 %v3244
      %3265 = vmatpush1.bf16.msra.mxu0 %v3243
      %3266 = vmatprep.subr.bf16.mxu0 %v3242
      %3267 = vmatpush1.bf16.msra.mxu0 %v3241
      %3268 = vmatprep.subr.bf16.mxu0 0
      %3269 = vmatpush2.bf16.msra.mxu0 0
      %3270 = vmatprep.subr.bf16.mxu0 0
      %3271 = vmatpush2.bf16.msra.mxu0 0
      %3272 = vmatprep.subr.bf16.mxu0 0
      %3273 = vmatpush2.bf16.msra.mxu0 0
      %3274 = vmatprep.subr.bf16.mxu0 0
      %3275 = vmatpush2.bf16.msra.mxu0 0
      %3276 = vmatprep.subr.bf16.mxu0 0
      %3277 = vmatpush2.bf16.msra.mxu0 0
      %3278 = vmatprep.subr.bf16.mxu0 0
      %3279 = vmatpush2.bf16.msra.mxu0 0
      %3280 = vmatprep.subr.bf16.mxu0 0
      %3281 = vmatpush2.bf16.msra.mxu0 0
      %3282 = vmatprep.subr.bf16.mxu0 0
      %3283 = vmatpush2.bf16.msra.mxu0 0
      %3284 = vmatprep.mubr.bf16.mxu0 0
      %3285 = vmatmul.mubr.bf16.gmra.mxu0 %v3250
      %v3286 = vpop.f32.mrf.mxu0
      %v3287 = vadd.f32 0.0, %v3286
      %v3288 = vpop.f32.mrf.mxu0
      %v3289 = vadd.f32 0.0, %v3288
      %v3290 = vpop.f32.mrf.mxu0
      %v3291 = vpop.f32.mrf.mxu0
      %3292 = vdwg.mxu0
      %v3293 = vadd.f32 %v3050, %v3287
      %v3294 = vadd.f32 %v3052, %v3289
      %v3295 = vld [vmem:[%s1232] sm:$0x3]
      %3296 = vrot.lane.b32.xlu0 %v3085, 111
      %v3297 = vpop.permute.xlu0 %3296
      %3298 = vrot.lane.b32.xlu0 %v3086, 111
      %v3299 = vpop.permute.xlu0 %3298
      %3300 = vrot.lane.b32.xlu0 %v3087, 111
      %v3301 = vpop.permute.xlu0 %3300
      %3302 = vrot.lane.b32.xlu0 %v3088, 111
      %v3303 = vpop.permute.xlu0 %3302
      %3304 = vrot.lane.b32.xlu0 %v3089, 111
      %v3305 = vpop.permute.xlu0 %3304
      %3306 = vrot.lane.b32.xlu0 %v3090, 111
      %v3307 = vpop.permute.xlu0 %3306
      %v3308 = vsel %vm1246, %v3297, %v3299
      %v3309 = vsel %vm1246, %v3299, %v3301
      %v3310 = vsel %vm1246, %v3303, %v3305
      %v3311 = vsel %vm1246, %v3305, %v3307
      %v3317 = vsel %vm663, %v3295, 0
      %3319 = vmatprep.subr.bf16.mxu0 0
      %3320 = vmatpush1.bf16.msra.mxu0 0
      %3321 = vmatprep.subr.bf16.mxu0 0
      %3322 = vmatpush1.bf16.msra.mxu0 0
      %3323 = vmatprep.subr.bf16.mxu0 0
      %3324 = vmatpush1.bf16.msra.mxu0 0
      %3325 = vmatprep.subr.bf16.mxu0 0
      %3326 = vmatpush1.bf16.msra.mxu0 0
      %3327 = vmatprep.subr.bf16.mxu0 0
      %3328 = vmatpush1.bf16.msra.mxu0 0
      %3329 = vmatprep.subr.bf16.mxu0 0
      %3330 = vmatpush1.bf16.msra.mxu0 0
      %3331 = vmatprep.subr.bf16.mxu0 %v3311
      %3332 = vmatpush1.bf16.msra.mxu0 %v3310
      %3333 = vmatprep.subr.bf16.mxu0 %v3309
      %3334 = vmatpush1.bf16.msra.mxu0 %v3308
      %3335 = vmatprep.subr.bf16.mxu0 0
      %3336 = vmatpush2.bf16.msra.mxu0 0
      %3337 = vmatprep.subr.bf16.mxu0 0
      %3338 = vmatpush2.bf16.msra.mxu0 0
      %3339 = vmatprep.subr.bf16.mxu0 0
      %3340 = vmatpush2.bf16.msra.mxu0 0
      %3341 = vmatprep.subr.bf16.mxu0 0
      %3342 = vmatpush2.bf16.msra.mxu0 0
      %3343 = vmatprep.subr.bf16.mxu0 0
      %3344 = vmatpush2.bf16.msra.mxu0 0
      %3345 = vmatprep.subr.bf16.mxu0 0
      %3346 = vmatpush2.bf16.msra.mxu0 0
      %3347 = vmatprep.subr.bf16.mxu0 0
      %3348 = vmatpush2.bf16.msra.mxu0 0
      %3349 = vmatprep.subr.bf16.mxu0 0
      %3350 = vmatpush2.bf16.msra.mxu0 0
      %3351 = vmatprep.mubr.bf16.mxu0 0
      %3352 = vmatmul.mubr.bf16.gmra.mxu0 %v3317
      %v3353 = vpop.f32.mrf.mxu0
      %v3354 = vadd.f32 0.0, %v3353
      %v3355 = vpop.f32.mrf.mxu0
      %v3356 = vadd.f32 0.0, %v3355
      %v3357 = vpop.f32.mrf.mxu0
      %v3358 = vpop.f32.mrf.mxu0
      %3359 = vdwg.mxu0
      %v3360 = vsel %vm304, %v3354, 0.0
      %v3361 = vsel %vm305, %v3356, 0.0
      %v3362 = vadd.f32 %v3157, %v3360
      %v3363 = vadd.f32 %v3158, %v3361
      %v3364 = vadd.f32 %v3226, %v3293
      %v3365 = vadd.f32 %v3227, %v3294
      %v3366 = vadd.f32 %v3364, %v3362
      %v3367 = vadd.f32 %v3365, %v3363
      %v3368 = vld [vmem:[%s4] sm:$0x7]
      %3370 = vset.pattern.permute.xlu0 0
      %3371 = vperm.xlu0 %3370, %v3368
      %v3372 = vpop.permute.xlu0 %3371
      %v3374 = vadd.f32 %v3366, %v3372
      %v3375 = vadd.f32 %v3367, %v3372
      %v3378 = vcombine.low %v3374, %v3375
      %s3380 = scalar_lea.vmem %s231, 16
      %3381 = vst [vmem:[%s3380] sm:$0x77] %v3378
      %s3382 = scalar_lea.vmem %s224, 24
      %v3383 = vld [vmem:[%s3382] sm:$0x77]
      %3384 = vst [vmem:[#allocation2 + $0x4] sm:$0x77] %v3383
      %v3385 = vld [vmem:[#allocation2] sm:$0x77]
      %v3386 = vld [vmem:[#allocation2 + $0x8] sm:$0x7]
      %v3389 = vcombine.high %v3385, %v3385
      %3390 = vrot.lane.b32.xlu0 %v3385, 17
      %v3391 = vpop.permute.xlu0 %3390
      %3392 = vrot.lane.b32.xlu0 %v3389, 17
      %v3393 = vpop.permute.xlu0 %3392
      %3394 = vrot.lane.b32.xlu0 %v3386, 17
      %v3395 = vpop.permute.xlu0 %3394
      %v3396 = vsel %vm270, %v3391, %v3393
      %v3397 = vsel %vm270, %v3393, %v3395
      %v3400 = vsel %vm259, %v3396, 0.0
      %v3401 = vsel %vm260, %v3397, 0.0
      %3402 = vst [vmem:[#allocation3] sm:$0x7] %v3400
      %3403 = vst [vmem:[#allocation3 + $0x8] sm:$0x7] %v3401
      %v3404 = vld [vmem:[#allocation2] sm:$0x77]
      %v3405 = vld [vmem:[#allocation2 + $0x8] sm:$0x7]
      %v3408 = vcombine.high %v3404, %v3404
      %v3409 = vrot.slane %v3404, 5
      %v3410 = vrot.slane %v3408, 5
      %v3411 = vrot.slane %v3405, 5
      %3412 = vrot.lane.b32.xlu0 %v3409, 16
      %v3413 = vpop.permute.xlu0 %3412
      %3414 = vrot.lane.b32.xlu0 %v3410, 16
      %v3415 = vpop.permute.xlu0 %3414
      %3416 = vrot.lane.b32.xlu0 %v3411, 16
      %v3417 = vpop.permute.xlu0 %3416
      %v3418 = vsel %vm293, %v3413, %v3415
      %v3419 = vsel %vm293, %v3415, %v3417
      %3422 = vst [vmem:[#allocation3] sm:$0x38] %v3418
      %3423 = vst [vmem:[#allocation3 + $0x8] sm:$0x38] %v3419
      %v3424 = vld [vmem:[#allocation2] sm:$0x77]
      %v3425 = vld [vmem:[#allocation2 + $0x8] sm:$0x7]
      %v3428 = vcombine.high %v3424, %v3424
      %3429 = vrot.lane.b32.xlu0 %v3424, 15
      %v3430 = vpop.permute.xlu0 %3429
      %3431 = vrot.lane.b32.xlu0 %v3428, 15
      %v3432 = vpop.permute.xlu0 %3431
      %3433 = vrot.lane.b32.xlu0 %v3425, 15
      %v3434 = vpop.permute.xlu0 %3433
      %v3435 = vsel %vm315, %v3430, %v3432
      %v3436 = vsel %vm315, %v3432, %v3434
      %v3439 = vsel %vm304, %v3435, 0.0
      %v3440 = vsel %vm305, %v3436, 0.0
      %v3443 = vrot.slane %v3439, 2
      %v3444 = vrot.slane %v3440, 2
      %3447 = vst [vmem:[#allocation3] sm:$0xc0] %v3443
      %3448 = vst [vmem:[#allocation3 + $0x8] sm:$0xc0] %v3444
      %3449 = vst [vmem:[#allocation3 + $0x10] sm:$0x1] %v3443
      %3450 = vst [vmem:[#allocation3 + $0x18] sm:$0x1] %v3444
      %v3451 = vld [vmem:[#allocation2] sm:$0x77]
      %v3452 = vld [vmem:[#allocation2 + $0x8] sm:$0x7]
      %v3455 = vcombine.high %v3451, %v3451
      %3456 = vrot.lane.b32.xlu0 %v3451, 1
      %v3457 = vpop.permute.xlu0 %3456
      %3458 = vrot.lane.b32.xlu0 %v3455, 1
      %v3459 = vpop.permute.xlu0 %3458
      %3460 = vrot.lane.b32.xlu0 %v3452, 1
      %v3461 = vpop.permute.xlu0 %3460
      %v3462 = vsel %vm343, %v3457, %v3459
      %v3463 = vsel %vm343, %v3459, %v3461
      %v3466 = vsel %vm259, %v3462, 0.0
      %v3467 = vsel %vm260, %v3463, 0.0
      %v3470 = vrot.slane %v3466, 7
      %v3471 = vrot.slane %v3467, 7
      %3474 = vst [vmem:[#allocation3 + $0x10] sm:$0xe] %v3470
      %3475 = vst [vmem:[#allocation3 + $0x18] sm:$0xe] %v3471
      %v3476 = vld [vmem:[#allocation2 + $0x4] sm:$0x77]
      %v3478 = vcombine.low %v3476, %v3476
      %3480 = vst [vmem:[#allocation3 + $0x10] sm:$0x70] %v3478
      %3481 = vst [vmem:[#allocation3 + $0x18] sm:$0x70] %v3476
      %v3482 = vld [vmem:[#allocation2 + $0x4] sm:$0x77]
      %v3483 = vld [vmem:[#allocation2 + $0xc] sm:$0x7]
      %v3486 = vcombine.high %v3482, %v3482
      %3487 = vrot.lane.b32.xlu0 %v3482, 127
      %v3488 = vpop.permute.xlu0 %3487
      %3489 = vrot.lane.b32.xlu0 %v3486, 127
      %v3490 = vpop.permute.xlu0 %3489
      %3491 = vrot.lane.b32.xlu0 %v3483, 127
      %v3492 = vpop.permute.xlu0 %3491
      %v3493 = vsel %vm375, %v3488, %v3490
      %v3494 = vsel %vm375, %v3490, %v3492
      %v3497 = vsel %vm304, %v3493, 0.0
      %v3498 = vsel %vm305, %v3494, 0.0
      %v3501 = vrot.slane %v3497, 1
      %v3502 = vrot.slane %v3498, 1
      %3505 = vst [vmem:[#allocation3 + $0x10] sm:$0x80] %v3501
      %3506 = vst [vmem:[#allocation3 + $0x18] sm:$0x80] %v3502
      %3507 = vst [vmem:[#allocation3 + $0x20] sm:$0x3] %v3501
      %3508 = vst [vmem:[#allocation3 + $0x28] sm:$0x3] %v3502
      %v3509 = vld [vmem:[#allocation2 + $0x4] sm:$0x77]
      %v3510 = vld [vmem:[#allocation2 + $0xc] sm:$0x7]
      %v3513 = vcombine.high %v3509, %v3509
      %3514 = vrot.lane.b32.xlu0 %v3509, 113
      %v3515 = vpop.permute.xlu0 %3514
      %3516 = vrot.lane.b32.xlu0 %v3513, 113
      %v3517 = vpop.permute.xlu0 %3516
      %3518 = vrot.lane.b32.xlu0 %v3510, 113
      %v3519 = vpop.permute.xlu0 %3518
      %v3520 = vsel %vm403, %v3515, %v3517
      %v3521 = vsel %vm403, %v3517, %v3519
      %v3524 = vsel %vm259, %v3520, 0.0
      %v3525 = vsel %vm260, %v3521, 0.0
      %v3528 = vrot.slane %v3524, 6
      %v3529 = vrot.slane %v3525, 6
      %3532 = vst [vmem:[#allocation3 + $0x20] sm:$0x1c] %v3528
      %3533 = vst [vmem:[#allocation3 + $0x28] sm:$0x1c] %v3529
      %v3534 = vld [vmem:[#allocation2 + $0x4] sm:$0x77]
      %v3535 = vld [vmem:[#allocation2 + $0xc] sm:$0x7]
      %v3538 = vcombine.high %v3534, %v3534
      %v3539 = vrot.slane %v3534, 3
      %v3540 = vrot.slane %v3538, 3
      %v3541 = vrot.slane %v3535, 3
      %3542 = vrot.lane.b32.xlu0 %v3539, 112
      %v3543 = vpop.permute.xlu0 %3542
      %3544 = vrot.lane.b32.xlu0 %v3540, 112
      %v3545 = vpop.permute.xlu0 %3544
      %3546 = vrot.lane.b32.xlu0 %v3541, 112
      %v3547 = vpop.permute.xlu0 %3546
      %v3548 = vsel %vm432, %v3543, %v3545
      %v3549 = vsel %vm432, %v3545, %v3547
      %3552 = vst [vmem:[#allocation3 + $0x20] sm:$0xe0] %v3548
      %3553 = vst [vmem:[#allocation3 + $0x28] sm:$0xe0] %v3549
      %v3554 = vld [vmem:[#allocation2 + $0x4] sm:$0x77]
      %v3555 = vld [vmem:[#allocation2 + $0xc] sm:$0x7]
      %v3558 = vcombine.high %v3554, %v3554
      %3559 = vrot.lane.b32.xlu0 %v3554, 111
      %v3560 = vpop.permute.xlu0 %3559
      %3561 = vrot.lane.b32.xlu0 %v3558, 111
      %v3562 = vpop.permute.xlu0 %3561
      %3563 = vrot.lane.b32.xlu0 %v3555, 111
      %v3564 = vpop.permute.xlu0 %3563
      %v3565 = vsel %vm450, %v3560, %v3562
      %v3566 = vsel %vm450, %v3562, %v3564
      %v3569 = vsel %vm304, %v3565, 0.0
      %v3570 = vsel %vm305, %v3566, 0.0
      %3571 = vst [vmem:[#allocation3 + $0x30] sm:$0x7] %v3569
      %3572 = vst [vmem:[#allocation3 + $0x38] sm:$0x7] %v3570
      %v3573 = vld [vmem:[%s1] sm:$0xf]
      %v3574 = vld [vmem:[%s1 + $0x4] sm:$0xf]
      %v3575 = vld [vmem:[%s1 + $0x8] sm:$0xf]
      %v3576 = vld [vmem:[%s1 + $0xc] sm:$0xf]
      %v3577 = vld [vmem:[#allocation3] sm:$0xff]
      %v3578 = vld [vmem:[#allocation3 + $0x8] sm:$0xff]
      %v3579 = vld [vmem:[#allocation3 + $0x10] sm:$0xff]
      %v3580 = vld [vmem:[#allocation3 + $0x18] sm:$0xff]
      %v3581 = vld [vmem:[#allocation3 + $0x20] sm:$0xff]
      %v3582 = vld [vmem:[#allocation3 + $0x28] sm:$0xff]
      %v3583 = vld [vmem:[#allocation3 + $0x30] sm:$0x7]
      %v3584 = vld [vmem:[#allocation3 + $0x38] sm:$0x7]
      %v3585 = vpack.c.bf16 %v3579, %v3577
      %v3586 = vpack.c.bf16 %v3580, %v3578
      %v3587 = vpack.c.bf16 %v3583, %v3581
      %v3588 = vpack.c.bf16 %v3584, %v3582
      %v3589 = vld [vmem:[%s2] sm:$0xff]
      %v3590 = vld [vmem:[%s2 + $0x8] sm:$0xff]
      %v3591 = vld [vmem:[%s2 + $0x10] sm:$0xff]
      %v3592 = vld [vmem:[%s2 + $0x18] sm:$0xff]
      %3594 = vset.pattern.permute.xlu0 0
      %3595 = vperm.xlu0 %3594, %v3589
      %v3596 = vpop.permute.xlu0 %3595
      %3599 = vset.pattern.permute.xlu0 0
      %3600 = vperm.xlu0 %3599, %v3590
      %v3601 = vpop.permute.xlu0 %3600
      %3604 = vset.pattern.permute.xlu0 0
      %3605 = vperm.xlu0 %3604, %v3591
      %v3606 = vpop.permute.xlu0 %3605
      %3609 = vset.pattern.permute.xlu0 0
      %3610 = vperm.xlu0 %3609, %v3592
      %v3611 = vpop.permute.xlu0 %3610
      %v3617 = vunpack.c.l.b16 %v3573
      %v3618 = vunpack.c.l.b16 %v3574
      %v3619 = vunpack.c.l.b16 %v3575
      %v3620 = vunpack.c.l.b16 %v3576
      %v3621 = vpack.c.b16 %v3618, %v3617
      %v3622 = vpack.c.b16 %v3620, %v3619
      %v3624 = vsel %vm509, %v3621, 0
      %v3627 = vsel %vm509, %v3622, 0
      %v3630 = vand.u32 %v3587, %v519
      %v3633 = vand.u32 %v3588, %v519
      %3635 = vmatprep.subr.bf16.mxu0 0
      %3636 = vmatpush1.bf16.msra.mxu0 0
      %3637 = vmatprep.subr.bf16.mxu0 0
      %3638 = vmatpush1.bf16.msra.mxu0 0
      %3639 = vmatprep.subr.bf16.mxu0 0
      %3640 = vmatpush1.bf16.msra.mxu0 0
      %3641 = vmatprep.subr.bf16.mxu0 0
      %3642 = vmatpush1.bf16.msra.mxu0 0
      %3643 = vmatprep.subr.bf16.mxu0 0
      %3644 = vmatpush1.bf16.msra.mxu0 0
      %3645 = vmatprep.subr.bf16.mxu0 0
      %3646 = vmatpush1.bf16.msra.mxu0 0
      %3647 = vmatprep.subr.bf16.mxu0 %v3633
      %3648 = vmatpush1.bf16.msra.mxu0 %v3630
      %3649 = vmatprep.subr.bf16.mxu0 %v3586
      %3650 = vmatpush1.bf16.msra.mxu0 %v3585
      %3651 = vmatprep.subr.bf16.mxu0 0
      %3652 = vmatpush2.bf16.msra.mxu0 0
      %3653 = vmatprep.subr.bf16.mxu0 0
      %3654 = vmatpush2.bf16.msra.mxu0 0
      %3655 = vmatprep.subr.bf16.mxu0 0
      %3656 = vmatpush2.bf16.msra.mxu0 0
      %3657 = vmatprep.subr.bf16.mxu0 0
      %3658 = vmatpush2.bf16.msra.mxu0 0
      %3659 = vmatprep.subr.bf16.mxu0 0
      %3660 = vmatpush2.bf16.msra.mxu0 0
      %3661 = vmatprep.subr.bf16.mxu0 0
      %3662 = vmatpush2.bf16.msra.mxu0 0
      %3663 = vmatprep.subr.bf16.mxu0 0
      %3664 = vmatpush2.bf16.msra.mxu0 0
      %3665 = vmatprep.subr.bf16.mxu0 0
      %3666 = vmatpush2.bf16.msra.mxu0 0
      %3667 = vmatprep.mubr.bf16.mxu0 0
      %3668 = vmatmul.mubr.bf16.gmra.mxu0 %v3624
      %v3669 = vpop.f32.mrf.mxu0
      %v3670 = vadd.f32 %v3596, %v3669
      %v3671 = vpop.f32.mrf.mxu0
      %v3672 = vadd.f32 %v3596, %v3671
      %v3673 = vpop.f32.mrf.mxu0
      %v3674 = vadd.f32 %v3601, %v3673
      %v3675 = vpop.f32.mrf.mxu0
      %v3676 = vadd.f32 %v3601, %v3675
      %3677 = vmatprep.mubr.bf16.mxu0 0
      %3678 = vmatmul.mubr.bf16.gmra.mxu0 %v3627
      %v3679 = vpop.f32.mrf.mxu0
      %v3680 = vadd.f32 %v3606, %v3679
      %v3681 = vpop.f32.mrf.mxu0
      %v3682 = vadd.f32 %v3606, %v3681
      %v3683 = vpop.f32.mrf.mxu0
      %v3684 = vadd.f32 %v3611, %v3683
      %v3685 = vpop.f32.mrf.mxu0
      %v3686 = vadd.f32 %v3611, %v3685
      %3687 = vdwg.mxu0
      %v3688 = vpack.c.bf16 %v3674, %v3670
      %v3689 = vpack.c.bf16 %v3676, %v3672
      %v3690 = vpack.c.bf16 %v3684, %v3680
      %v3691 = vpack.c.bf16 %v3686, %v3682
      %v3696 = vunpack.c.l.b16 %v3688
      %v3697 = vunpack.c.l.b16 %v3689
      %v3698 = vunpack.c.h.b16 %v3688
      %v3699 = vunpack.c.h.b16 %v3689
      %v3700 = vunpack.c.l.b16 %v3690
      %v3701 = vunpack.c.l.b16 %v3691
      %v3702 = vunpack.c.h.b16 %v3690
      %v3703 = vunpack.c.h.b16 %v3691
      %v3704 = vpack.c.b16 %v3697, %v3696
      %v3705 = vpack.c.b16 %v3699, %v3698
      %v3706 = vpack.c.b16 %v3701, %v3700
      %v3707 = vpack.c.b16 %v3703, %v3702
      %3712 = vst [vmem:[#allocation4 + $0x4] sm:$0xff] %v3704
      %3713 = vst [vmem:[#allocation4 + $0x14] sm:$0xff] %v3705
      %3714 = vst [vmem:[#allocation4 + $0x24] sm:$0xff] %v3706
      %3715 = vst [vmem:[#allocation4 + $0x34] sm:$0xff] %v3707
      %v3716 = vld [vmem:[#allocation4] sm:$0xff]
      %v3717 = vld [vmem:[#allocation4 + $0x8] sm:$0xf]
      %v3718 = vld [vmem:[#allocation4 + $0x10] sm:$0xff]
      %v3719 = vld [vmem:[#allocation4 + $0x18] sm:$0xf]
      %v3720 = vld [vmem:[#allocation4 + $0x20] sm:$0xff]
      %v3721 = vld [vmem:[#allocation4 + $0x28] sm:$0xf]
      %v3722 = vld [vmem:[#allocation4 + $0x30] sm:$0xff]
      %v3723 = vld [vmem:[#allocation4 + $0x38] sm:$0xf]
      %v3724 = vld [vmem:[%s3] sm:$0x3]
      %v3733 = vunpack.c.l.b16 %v3716
      %v3734 = vunpack.c.h.b16 %v3716
      %v3735 = vunpack.c.l.b16 %v3717
      %v3736 = vunpack.c.l.b16 %v3718
      %v3737 = vunpack.c.h.b16 %v3718
      %v3738 = vunpack.c.l.b16 %v3719
      %v3739 = vunpack.c.l.b16 %v3720
      %v3740 = vunpack.c.h.b16 %v3720
      %v3741 = vunpack.c.l.b16 %v3721
      %v3742 = vunpack.c.l.b16 %v3722
      %v3743 = vunpack.c.h.b16 %v3722
      %v3744 = vunpack.c.l.b16 %v3723
      %v3745 = vpack.c.b16 %v3736, %v3733
      %v3746 = vpack.c.b16 %v3737, %v3734
      %v3747 = vpack.c.b16 %v3738, %v3735
      %v3748 = vpack.c.b16 %v3742, %v3739
      %v3749 = vpack.c.b16 %v3743, %v3740
      %v3750 = vpack.c.b16 %v3744, %v3741
      %3751 = vrot.lane.b32.xlu0 %v3745, 17
      %v3752 = vpop.permute.xlu0 %3751
      %3753 = vrot.lane.b32.xlu0 %v3746, 17
      %v3754 = vpop.permute.xlu0 %3753
      %3755 = vrot.lane.b32.xlu0 %v3747, 17
      %v3756 = vpop.permute.xlu0 %3755
      %3757 = vrot.lane.b32.xlu0 %v3748, 17
      %v3758 = vpop.permute.xlu0 %3757
      %3759 = vrot.lane.b32.xlu0 %v3749, 17
      %v3760 = vpop.permute.xlu0 %3759
      %3761 = vrot.lane.b32.xlu0 %v3750, 17
      %v3762 = vpop.permute.xlu0 %3761
      %v3763 = vsel %vm654, %v3752, %v3754
      %v3764 = vsel %vm654, %v3754, %v3756
      %v3765 = vsel %vm654, %v3758, %v3760
      %v3766 = vsel %vm654, %v3760, %v3762
      %v3772 = vsel %vm663, %v3724, 0
      %3774 = vmatprep.subr.bf16.mxu0 0
      %3775 = vmatpush1.bf16.msra.mxu0 0
      %3776 = vmatprep.subr.bf16.mxu0 0
      %3777 = vmatpush1.bf16.msra.mxu0 0
      %3778 = vmatprep.subr.bf16.mxu0 0
      %3779 = vmatpush1.bf16.msra.mxu0 0
      %3780 = vmatprep.subr.bf16.mxu0 0
      %3781 = vmatpush1.bf16.msra.mxu0 0
      %3782 = vmatprep.subr.bf16.mxu0 0
      %3783 = vmatpush1.bf16.msra.mxu0 0
      %3784 = vmatprep.subr.bf16.mxu0 0
      %3785 = vmatpush1.bf16.msra.mxu0 0
      %3786 = vmatprep.subr.bf16.mxu0 %v3766
      %3787 = vmatpush1.bf16.msra.mxu0 %v3765
      %3788 = vmatprep.subr.bf16.mxu0 %v3764
      %3789 = vmatpush1.bf16.msra.mxu0 %v3763
      %3790 = vmatprep.subr.bf16.mxu0 0
      %3791 = vmatpush2.bf16.msra.mxu0 0
      %3792 = vmatprep.subr.bf16.mxu0 0
      %3793 = vmatpush2.bf16.msra.mxu0 0
      %3794 = vmatprep.subr.bf16.mxu0 0
      %3795 = vmatpush2.bf16.msra.mxu0 0
      %3796 = vmatprep.subr.bf16.mxu0 0
      %3797 = vmatpush2.bf16.msra.mxu0 0
      %3798 = vmatprep.subr.bf16.mxu0 0
      %3799 = vmatpush2.bf16.msra.mxu0 0
      %3800 = vmatprep.subr.bf16.mxu0 0
      %3801 = vmatpush2.bf16.msra.mxu0 0
      %3802 = vmatprep.subr.bf16.mxu0 0
      %3803 = vmatpush2.bf16.msra.mxu0 0
      %3804 = vmatprep.subr.bf16.mxu0 0
      %3805 = vmatpush2.bf16.msra.mxu0 0
      %3806 = vmatprep.mubr.bf16.mxu0 0
      %3807 = vmatmul.mubr.bf16.gmra.mxu0 %v3772
      %v3808 = vpop.f32.mrf.mxu0
      %v3809 = vadd.f32 0.0, %v3808
      %v3810 = vpop.f32.mrf.mxu0
      %v3811 = vadd.f32 0.0, %v3810
      %v3812 = vpop.f32.mrf.mxu0
      %v3813 = vpop.f32.mrf.mxu0
      %3814 = vdwg.mxu0
      %v3815 = vsel %vm259, %v3809, 0.0
      %v3816 = vsel %vm260, %v3811, 0.0
      %v3817 = vld [vmem:[%s710] sm:$0x3]
      %v3818 = vld [vmem:[%s712] sm:$0x3]
      %3819 = vrot.lane.b32.xlu0 %v3745, 15
      %v3820 = vpop.permute.xlu0 %3819
      %3821 = vrot.lane.b32.xlu0 %v3746, 15
      %v3822 = vpop.permute.xlu0 %3821
      %3823 = vrot.lane.b32.xlu0 %v3747, 15
      %v3824 = vpop.permute.xlu0 %3823
      %3825 = vrot.lane.b32.xlu0 %v3748, 15
      %v3826 = vpop.permute.xlu0 %3825
      %3827 = vrot.lane.b32.xlu0 %v3749, 15
      %v3828 = vpop.permute.xlu0 %3827
      %3829 = vrot.lane.b32.xlu0 %v3750, 15
      %v3830 = vpop.permute.xlu0 %3829
      %v3831 = vsel %vm726, %v3820, %v3822
      %v3832 = vsel %vm726, %v3822, %v3824
      %v3833 = vsel %vm726, %v3826, %v3828
      %v3834 = vsel %vm726, %v3828, %v3830
      %v3840 = vsel %vm663, %v3818, 0
      %3842 = vmatprep.subr.bf16.mxu0 0
      %3843 = vmatpush1.bf16.msra.mxu0 0
      %3844 = vmatprep.subr.bf16.mxu0 0
      %3845 = vmatpush1.bf16.msra.mxu0 0
      %3846 = vmatprep.subr.bf16.mxu0 0
      %3847 = vmatpush1.bf16.msra.mxu0 0
      %3848 = vmatprep.subr.bf16.mxu0 0
      %3849 = vmatpush1.bf16.msra.mxu0 0
      %3850 = vmatprep.subr.bf16.mxu0 0
      %3851 = vmatpush1.bf16.msra.mxu0 0
      %3852 = vmatprep.subr.bf16.mxu0 0
      %3853 = vmatpush1.bf16.msra.mxu0 0
      %3854 = vmatprep.subr.bf16.mxu0 %v3834
      %3855 = vmatpush1.bf16.msra.mxu0 %v3833
      %3856 = vmatprep.subr.bf16.mxu0 %v3832
      %3857 = vmatpush1.bf16.msra.mxu0 %v3831
      %3858 = vmatprep.subr.bf16.mxu0 0
      %3859 = vmatpush2.bf16.msra.mxu0 0
      %3860 = vmatprep.subr.bf16.mxu0 0
      %3861 = vmatpush2.bf16.msra.mxu0 0
      %3862 = vmatprep.subr.bf16.mxu0 0
      %3863 = vmatpush2.bf16.msra.mxu0 0
      %3864 = vmatprep.subr.bf16.mxu0 0
      %3865 = vmatpush2.bf16.msra.mxu0 0
      %3866 = vmatprep.subr.bf16.mxu0 0
      %3867 = vmatpush2.bf16.msra.mxu0 0
      %3868 = vmatprep.subr.bf16.mxu0 0
      %3869 = vmatpush2.bf16.msra.mxu0 0
      %3870 = vmatprep.subr.bf16.mxu0 0
      %3871 = vmatpush2.bf16.msra.mxu0 0
      %3872 = vmatprep.subr.bf16.mxu0 0
      %3873 = vmatpush2.bf16.msra.mxu0 0
      %3874 = vmatprep.mubr.bf16.mxu0 0
      %3875 = vmatmul.mubr.bf16.gmra.mxu0 %v3840
      %v3876 = vpop.f32.mrf.mxu0
      %v3877 = vadd.f32 0.0, %v3876
      %v3878 = vpop.f32.mrf.mxu0
      %v3879 = vadd.f32 0.0, %v3878
      %v3880 = vpop.f32.mrf.mxu0
      %v3881 = vpop.f32.mrf.mxu0
      %3882 = vdwg.mxu0
      %v3883 = vsel %vm304, %v3877, 0.0
      %v3884 = vsel %vm305, %v3879, 0.0
      %v3885 = vld [vmem:[%s781] sm:$0x3]
      %3886 = vrot.lane.b32.xlu0 %v3745, 1
      %v3887 = vpop.permute.xlu0 %3886
      %3888 = vrot.lane.b32.xlu0 %v3746, 1
      %v3889 = vpop.permute.xlu0 %3888
      %3890 = vrot.lane.b32.xlu0 %v3747, 1
      %v3891 = vpop.permute.xlu0 %3890
      %3892 = vrot.lane.b32.xlu0 %v3748, 1
      %v3893 = vpop.permute.xlu0 %3892
      %3894 = vrot.lane.b32.xlu0 %v3749, 1
      %v3895 = vpop.permute.xlu0 %3894
      %3896 = vrot.lane.b32.xlu0 %v3750, 1
      %v3897 = vpop.permute.xlu0 %3896
      %v3898 = vsel %vm795, %v3887, %v3889
      %v3899 = vsel %vm795, %v3889, %v3891
      %v3900 = vsel %vm795, %v3893, %v3895
      %v3901 = vsel %vm795, %v3895, %v3897
      %v3907 = vsel %vm663, %v3885, 0
      %3909 = vmatprep.subr.bf16.mxu0 0
      %3910 = vmatpush1.bf16.msra.mxu0 0
      %3911 = vmatprep.subr.bf16.mxu0 0
      %3912 = vmatpush1.bf16.msra.mxu0 0
      %3913 = vmatprep.subr.bf16.mxu0 0
      %3914 = vmatpush1.bf16.msra.mxu0 0
      %3915 = vmatprep.subr.bf16.mxu0 0
      %3916 = vmatpush1.bf16.msra.mxu0 0
      %3917 = vmatprep.subr.bf16.mxu0 0
      %3918 = vmatpush1.bf16.msra.mxu0 0
      %3919 = vmatprep.subr.bf16.mxu0 0
      %3920 = vmatpush1.bf16.msra.mxu0 0
      %3921 = vmatprep.subr.bf16.mxu0 %v3901
      %3922 = vmatpush1.bf16.msra.mxu0 %v3900
      %3923 = vmatprep.subr.bf16.mxu0 %v3899
      %3924 = vmatpush1.bf16.msra.mxu0 %v3898
      %3925 = vmatprep.subr.bf16.mxu0 0
      %3926 = vmatpush2.bf16.msra.mxu0 0
      %3927 = vmatprep.subr.bf16.mxu0 0
      %3928 = vmatpush2.bf16.msra.mxu0 0
      %3929 = vmatprep.subr.bf16.mxu0 0
      %3930 = vmatpush2.bf16.msra.mxu0 0
      %3931 = vmatprep.subr.bf16.mxu0 0
      %3932 = vmatpush2.bf16.msra.mxu0 0
      %3933 = vmatprep.subr.bf16.mxu0 0
      %3934 = vmatpush2.bf16.msra.mxu0 0
      %3935 = vmatprep.subr.bf16.mxu0 0
      %3936 = vmatpush2.bf16.msra.mxu0 0
      %3937 = vmatprep.subr.bf16.mxu0 0
      %3938 = vmatpush2.bf16.msra.mxu0 0
      %3939 = vmatprep.subr.bf16.mxu0 0
      %3940 = vmatpush2.bf16.msra.mxu0 0
      %3941 = vmatprep.mubr.bf16.mxu0 0
      %3942 = vmatmul.mubr.bf16.gmra.mxu0 %v3907
      %v3943 = vpop.f32.mrf.mxu0
      %v3944 = vadd.f32 0.0, %v3943
      %v3945 = vpop.f32.mrf.mxu0
      %v3946 = vadd.f32 0.0, %v3945
      %v3947 = vpop.f32.mrf.mxu0
      %v3948 = vpop.f32.mrf.mxu0
      %3949 = vdwg.mxu0
      %v3950 = vsel %vm259, %v3944, 0.0
      %v3951 = vsel %vm260, %v3946, 0.0
      %v3952 = vadd.f32 %v3815, %v3950
      %v3953 = vadd.f32 %v3816, %v3951
      %v3954 = vld [vmem:[#allocation4 + $0x4] sm:$0xff]
      %v3955 = vld [vmem:[#allocation4 + $0x14] sm:$0xff]
      %v3956 = vld [vmem:[#allocation4 + $0x24] sm:$0xff]
      %v3957 = vld [vmem:[#allocation4 + $0x34] sm:$0xff]
      %v3958 = vld [vmem:[%s856] sm:$0x3]
      %v3963 = vunpack.c.l.b16 %v3954
      %v3964 = vunpack.c.h.b16 %v3954
      %v3965 = vunpack.c.l.b16 %v3955
      %v3966 = vunpack.c.h.b16 %v3955
      %v3967 = vunpack.c.l.b16 %v3956
      %v3968 = vunpack.c.h.b16 %v3956
      %v3969 = vunpack.c.l.b16 %v3957
      %v3970 = vunpack.c.h.b16 %v3957
      %v3971 = vpack.c.b16 %v3965, %v3963
      %v3972 = vpack.c.b16 %v3966, %v3964
      %v3973 = vpack.c.b16 %v3969, %v3967
      %v3974 = vpack.c.b16 %v3970, %v3968
      %v3980 = vsel %vm663, %v3958, 0
      %3982 = vmatprep.subr.bf16.mxu0 0
      %3983 = vmatpush1.bf16.msra.mxu0 0
      %3984 = vmatprep.subr.bf16.mxu0 0
      %3985 = vmatpush1.bf16.msra.mxu0 0
      %3986 = vmatprep.subr.bf16.mxu0 0
      %3987 = vmatpush1.bf16.msra.mxu0 0
      %3988 = vmatprep.subr.bf16.mxu0 0
      %3989 = vmatpush1.bf16.msra.mxu0 0
      %3990 = vmatprep.subr.bf16.mxu0 0
      %3991 = vmatpush1.bf16.msra.mxu0 0
      %3992 = vmatprep.subr.bf16.mxu0 0
      %3993 = vmatpush1.bf16.msra.mxu0 0
      %3994 = vmatprep.subr.bf16.mxu0 %v3974
      %3995 = vmatpush1.bf16.msra.mxu0 %v3973
      %3996 = vmatprep.subr.bf16.mxu0 %v3972
      %3997 = vmatpush1.bf16.msra.mxu0 %v3971
      %3998 = vmatprep.subr.bf16.mxu0 0
      %3999 = vmatpush2.bf16.msra.mxu0 0
      %4000 = vmatprep.subr.bf16.mxu0 0
      %4001 = vmatpush2.bf16.msra.mxu0 0
      %4002 = vmatprep.subr.bf16.mxu0 0
      %4003 = vmatpush2.bf16.msra.mxu0 0
      %4004 = vmatprep.subr.bf16.mxu0 0
      %4005 = vmatpush2.bf16.msra.mxu0 0
      %4006 = vmatprep.subr.bf16.mxu0 0
      %4007 = vmatpush2.bf16.msra.mxu0 0
      %4008 = vmatprep.subr.bf16.mxu0 0
      %4009 = vmatpush2.bf16.msra.mxu0 0
      %4010 = vmatprep.subr.bf16.mxu0 0
      %4011 = vmatpush2.bf16.msra.mxu0 0
      %4012 = vmatprep.subr.bf16.mxu0 0
      %4013 = vmatpush2.bf16.msra.mxu0 0
      %4014 = vmatprep.mubr.bf16.mxu0 0
      %4015 = vmatmul.mubr.bf16.gmra.mxu0 %v3980
      %v4016 = vpop.f32.mrf.mxu0
      %v4017 = vadd.f32 0.0, %v4016
      %v4018 = vpop.f32.mrf.mxu0
      %v4019 = vadd.f32 0.0, %v4018
      %v4020 = vpop.f32.mrf.mxu0
      %v4021 = vpop.f32.mrf.mxu0
      %4022 = vdwg.mxu0
      %4023 = vrot.lane.b32.xlu0 %v3745, 16
      %v4024 = vpop.permute.xlu0 %4023
      %4025 = vrot.lane.b32.xlu0 %v3746, 16
      %v4026 = vpop.permute.xlu0 %4025
      %4027 = vrot.lane.b32.xlu0 %v3747, 16
      %v4028 = vpop.permute.xlu0 %4027
      %4029 = vrot.lane.b32.xlu0 %v3748, 16
      %v4030 = vpop.permute.xlu0 %4029
      %4031 = vrot.lane.b32.xlu0 %v3749, 16
      %v4032 = vpop.permute.xlu0 %4031
      %4033 = vrot.lane.b32.xlu0 %v3750, 16
      %v4034 = vpop.permute.xlu0 %4033
      %v4035 = vsel %vm934, %v4024, %v4026
      %v4036 = vsel %vm934, %v4026, %v4028
      %v4037 = vsel %vm934, %v4030, %v4032
      %v4038 = vsel %vm934, %v4032, %v4034
      %v4044 = vsel %vm663, %v3817, 0
      %4046 = vmatprep.subr.bf16.mxu0 0
      %4047 = vmatpush1.bf16.msra.mxu0 0
      %4048 = vmatprep.subr.bf16.mxu0 0
      %4049 = vmatpush1.bf16.msra.mxu0 0
      %4050 = vmatprep.subr.bf16.mxu0 0
      %4051 = vmatpush1.bf16.msra.mxu0 0
      %4052 = vmatprep.subr.bf16.mxu0 0
      %4053 = vmatpush1.bf16.msra.mxu0 0
      %4054 = vmatprep.subr.bf16.mxu0 0
      %4055 = vmatpush1.bf16.msra.mxu0 0
      %4056 = vmatprep.subr.bf16.mxu0 0
      %4057 = vmatpush1.bf16.msra.mxu0 0
      %4058 = vmatprep.subr.bf16.mxu0 %v4038
      %4059 = vmatpush1.bf16.msra.mxu0 %v4037
      %4060 = vmatprep.subr.bf16.mxu0 %v4036
      %4061 = vmatpush1.bf16.msra.mxu0 %v4035
      %4062 = vmatprep.subr.bf16.mxu0 0
      %4063 = vmatpush2.bf16.msra.mxu0 0
      %4064 = vmatprep.subr.bf16.mxu0 0
      %4065 = vmatpush2.bf16.msra.mxu0 0
      %4066 = vmatprep.subr.bf16.mxu0 0
      %4067 = vmatpush2.bf16.msra.mxu0 0
      %4068 = vmatprep.subr.bf16.mxu0 0
      %4069 = vmatpush2.bf16.msra.mxu0 0
      %4070 = vmatprep.subr.bf16.mxu0 0
      %4071 = vmatpush2.bf16.msra.mxu0 0
      %4072 = vmatprep.subr.bf16.mxu0 0
      %4073 = vmatpush2.bf16.msra.mxu0 0
      %4074 = vmatprep.subr.bf16.mxu0 0
      %4075 = vmatpush2.bf16.msra.mxu0 0
      %4076 = vmatprep.subr.bf16.mxu0 0
      %4077 = vmatpush2.bf16.msra.mxu0 0
      %4078 = vmatprep.mubr.bf16.mxu0 0
      %4079 = vmatmul.mubr.bf16.gmra.mxu0 %v4044
      %v4080 = vpop.f32.mrf.mxu0
      %v4081 = vadd.f32 %v4017, %v4080
      %v4082 = vpop.f32.mrf.mxu0
      %v4083 = vadd.f32 %v4019, %v4082
      %v4084 = vpop.f32.mrf.mxu0
      %v4085 = vpop.f32.mrf.mxu0
      %4086 = vdwg.mxu0
      %v4087 = vld [vmem:[#allocation4 + $0x4] sm:$0xff]
      %v4088 = vld [vmem:[#allocation4 + $0xc] sm:$0xf]
      %v4089 = vld [vmem:[#allocation4 + $0x14] sm:$0xff]
      %v4090 = vld [vmem:[#allocation4 + $0x1c] sm:$0xf]
      %v4091 = vld [vmem:[#allocation4 + $0x24] sm:$0xff]
      %v4092 = vld [vmem:[#allocation4 + $0x2c] sm:$0xf]
      %v4093 = vld [vmem:[#allocation4 + $0x34] sm:$0xff]
      %v4094 = vld [vmem:[#allocation4 + $0x3c] sm:$0xf]
      %v4095 = vld [vmem:[%s995] sm:$0x3]
      %v4104 = vunpack.c.l.b16 %v4087
      %v4105 = vunpack.c.h.b16 %v4087
      %v4106 = vunpack.c.l.b16 %v4088
      %v4107 = vunpack.c.l.b16 %v4089
      %v4108 = vunpack.c.h.b16 %v4089
      %v4109 = vunpack.c.l.b16 %v4090
      %v4110 = vunpack.c.l.b16 %v4091
      %v4111 = vunpack.c.h.b16 %v4091
      %v4112 = vunpack.c.l.b16 %v4092
      %v4113 = vunpack.c.l.b16 %v4093
      %v4114 = vunpack.c.h.b16 %v4093
      %v4115 = vunpack.c.l.b16 %v4094
      %v4116 = vpack.c.b16 %v4107, %v4104
      %v4117 = vpack.c.b16 %v4108, %v4105
      %v4118 = vpack.c.b16 %v4109, %v4106
      %v4119 = vpack.c.b16 %v4113, %v4110
      %v4120 = vpack.c.b16 %v4114, %v4111
      %v4121 = vpack.c.b16 %v4115, %v4112
      %4122 = vrot.lane.b32.xlu0 %v4116, 127
      %v4123 = vpop.permute.xlu0 %4122
      %4124 = vrot.lane.b32.xlu0 %v4117, 127
      %v4125 = vpop.permute.xlu0 %4124
      %4126 = vrot.lane.b32.xlu0 %v4118, 127
      %v4127 = vpop.permute.xlu0 %4126
      %4128 = vrot.lane.b32.xlu0 %v4119, 127
      %v4129 = vpop.permute.xlu0 %4128
      %4130 = vrot.lane.b32.xlu0 %v4120, 127
      %v4131 = vpop.permute.xlu0 %4130
      %4132 = vrot.lane.b32.xlu0 %v4121, 127
      %v4133 = vpop.permute.xlu0 %4132
      %v4134 = vsel %vm1035, %v4123, %v4125
      %v4135 = vsel %vm1035, %v4125, %v4127
      %v4136 = vsel %vm1035, %v4129, %v4131
      %v4137 = vsel %vm1035, %v4131, %v4133
      %v4143 = vsel %vm663, %v4095, 0
      %4145 = vmatprep.subr.bf16.mxu0 0
      %4146 = vmatpush1.bf16.msra.mxu0 0
      %4147 = vmatprep.subr.bf16.mxu0 0
      %4148 = vmatpush1.bf16.msra.mxu0 0
      %4149 = vmatprep.subr.bf16.mxu0 0
      %4150 = vmatpush1.bf16.msra.mxu0 0
      %4151 = vmatprep.subr.bf16.mxu0 0
      %4152 = vmatpush1.bf16.msra.mxu0 0
      %4153 = vmatprep.subr.bf16.mxu0 0
      %4154 = vmatpush1.bf16.msra.mxu0 0
      %4155 = vmatprep.subr.bf16.mxu0 0
      %4156 = vmatpush1.bf16.msra.mxu0 0
      %4157 = vmatprep.subr.bf16.mxu0 %v4137
      %4158 = vmatpush1.bf16.msra.mxu0 %v4136
      %4159 = vmatprep.subr.bf16.mxu0 %v4135
      %4160 = vmatpush1.bf16.msra.mxu0 %v4134
      %4161 = vmatprep.subr.bf16.mxu0 0
      %4162 = vmatpush2.bf16.msra.mxu0 0
      %4163 = vmatprep.subr.bf16.mxu0 0
      %4164 = vmatpush2.bf16.msra.mxu0 0
      %4165 = vmatprep.subr.bf16.mxu0 0
      %4166 = vmatpush2.bf16.msra.mxu0 0
      %4167 = vmatprep.subr.bf16.mxu0 0
      %4168 = vmatpush2.bf16.msra.mxu0 0
      %4169 = vmatprep.subr.bf16.mxu0 0
      %4170 = vmatpush2.bf16.msra.mxu0 0
      %4171 = vmatprep.subr.bf16.mxu0 0
      %4172 = vmatpush2.bf16.msra.mxu0 0
      %4173 = vmatprep.subr.bf16.mxu0 0
      %4174 = vmatpush2.bf16.msra.mxu0 0
      %4175 = vmatprep.subr.bf16.mxu0 0
      %4176 = vmatpush2.bf16.msra.mxu0 0
      %4177 = vmatprep.mubr.bf16.mxu0 0
      %4178 = vmatmul.mubr.bf16.gmra.mxu0 %v4143
      %v4179 = vpop.f32.mrf.mxu0
      %v4180 = vadd.f32 0.0, %v4179
      %v4181 = vpop.f32.mrf.mxu0
      %v4182 = vadd.f32 0.0, %v4181
      %v4183 = vpop.f32.mrf.mxu0
      %v4184 = vpop.f32.mrf.mxu0
      %4185 = vdwg.mxu0
      %v4186 = vsel %vm304, %v4180, 0.0
      %v4187 = vsel %vm305, %v4182, 0.0
      %v4188 = vadd.f32 %v3883, %v4186
      %v4189 = vadd.f32 %v3884, %v4187
      %v4190 = vld [vmem:[%s1092] sm:$0x3]
      %4191 = vrot.lane.b32.xlu0 %v4116, 113
      %v4192 = vpop.permute.xlu0 %4191
      %4193 = vrot.lane.b32.xlu0 %v4117, 113
      %v4194 = vpop.permute.xlu0 %4193
      %4195 = vrot.lane.b32.xlu0 %v4118, 113
      %v4196 = vpop.permute.xlu0 %4195
      %4197 = vrot.lane.b32.xlu0 %v4119, 113
      %v4198 = vpop.permute.xlu0 %4197
      %4199 = vrot.lane.b32.xlu0 %v4120, 113
      %v4200 = vpop.permute.xlu0 %4199
      %4201 = vrot.lane.b32.xlu0 %v4121, 113
      %v4202 = vpop.permute.xlu0 %4201
      %v4203 = vsel %vm1106, %v4192, %v4194
      %v4204 = vsel %vm1106, %v4194, %v4196
      %v4205 = vsel %vm1106, %v4198, %v4200
      %v4206 = vsel %vm1106, %v4200, %v4202
      %v4212 = vsel %vm663, %v4190, 0
      %4214 = vmatprep.subr.bf16.mxu0 0
      %4215 = vmatpush1.bf16.msra.mxu0 0
      %4216 = vmatprep.subr.bf16.mxu0 0
      %4217 = vmatpush1.bf16.msra.mxu0 0
      %4218 = vmatprep.subr.bf16.mxu0 0
      %4219 = vmatpush1.bf16.msra.mxu0 0
      %4220 = vmatprep.subr.bf16.mxu0 0
      %4221 = vmatpush1.bf16.msra.mxu0 0
      %4222 = vmatprep.subr.bf16.mxu0 0
      %4223 = vmatpush1.bf16.msra.mxu0 0
      %4224 = vmatprep.subr.bf16.mxu0 0
      %4225 = vmatpush1.bf16.msra.mxu0 0
      %4226 = vmatprep.subr.bf16.mxu0 %v4206
      %4227 = vmatpush1.bf16.msra.mxu0 %v4205
      %4228 = vmatprep.subr.bf16.mxu0 %v4204
      %4229 = vmatpush1.bf16.msra.mxu0 %v4203
      %4230 = vmatprep.subr.bf16.mxu0 0
      %4231 = vmatpush2.bf16.msra.mxu0 0
      %4232 = vmatprep.subr.bf16.mxu0 0
      %4233 = vmatpush2.bf16.msra.mxu0 0
      %4234 = vmatprep.subr.bf16.mxu0 0
      %4235 = vmatpush2.bf16.msra.mxu0 0
      %4236 = vmatprep.subr.bf16.mxu0 0
      %4237 = vmatpush2.bf16.msra.mxu0 0
      %4238 = vmatprep.subr.bf16.mxu0 0
      %4239 = vmatpush2.bf16.msra.mxu0 0
      %4240 = vmatprep.subr.bf16.mxu0 0
      %4241 = vmatpush2.bf16.msra.mxu0 0
      %4242 = vmatprep.subr.bf16.mxu0 0
      %4243 = vmatpush2.bf16.msra.mxu0 0
      %4244 = vmatprep.subr.bf16.mxu0 0
      %4245 = vmatpush2.bf16.msra.mxu0 0
      %4246 = vmatprep.mubr.bf16.mxu0 0
      %4247 = vmatmul.mubr.bf16.gmra.mxu0 %v4212
      %v4248 = vpop.f32.mrf.mxu0
      %v4249 = vadd.f32 0.0, %v4248
      %v4250 = vpop.f32.mrf.mxu0
      %v4251 = vadd.f32 0.0, %v4250
      %v4252 = vpop.f32.mrf.mxu0
      %v4253 = vpop.f32.mrf.mxu0
      %4254 = vdwg.mxu0
      %v4255 = vsel %vm259, %v4249, 0.0
      %v4256 = vsel %vm260, %v4251, 0.0
      %v4257 = vadd.f32 %v3952, %v4255
      %v4258 = vadd.f32 %v3953, %v4256
      %v4259 = vld [vmem:[%s1163] sm:$0x3]
      %4260 = vrot.lane.b32.xlu0 %v4116, 112
      %v4261 = vpop.permute.xlu0 %4260
      %4262 = vrot.lane.b32.xlu0 %v4117, 112
      %v4263 = vpop.permute.xlu0 %4262
      %4264 = vrot.lane.b32.xlu0 %v4118, 112
      %v4265 = vpop.permute.xlu0 %4264
      %4266 = vrot.lane.b32.xlu0 %v4119, 112
      %v4267 = vpop.permute.xlu0 %4266
      %4268 = vrot.lane.b32.xlu0 %v4120, 112
      %v4269 = vpop.permute.xlu0 %4268
      %4270 = vrot.lane.b32.xlu0 %v4121, 112
      %v4271 = vpop.permute.xlu0 %4270
      %v4272 = vsel %vm1177, %v4261, %v4263
      %v4273 = vsel %vm1177, %v4263, %v4265
      %v4274 = vsel %vm1177, %v4267, %v4269
      %v4275 = vsel %vm1177, %v4269, %v4271
      %v4281 = vsel %vm663, %v4259, 0
      %4283 = vmatprep.subr.bf16.mxu0 0
      %4284 = vmatpush1.bf16.msra.mxu0 0
      %4285 = vmatprep.subr.bf16.mxu0 0
      %4286 = vmatpush1.bf16.msra.mxu0 0
      %4287 = vmatprep.subr.bf16.mxu0 0
      %4288 = vmatpush1.bf16.msra.mxu0 0
      %4289 = vmatprep.subr.bf16.mxu0 0
      %4290 = vmatpush1.bf16.msra.mxu0 0
      %4291 = vmatprep.subr.bf16.mxu0 0
      %4292 = vmatpush1.bf16.msra.mxu0 0
      %4293 = vmatprep.subr.bf16.mxu0 0
      %4294 = vmatpush1.bf16.msra.mxu0 0
      %4295 = vmatprep.subr.bf16.mxu0 %v4275
      %4296 = vmatpush1.bf16.msra.mxu0 %v4274
      %4297 = vmatprep.subr.bf16.mxu0 %v4273
      %4298 = vmatpush1.bf16.msra.mxu0 %v4272
      %4299 = vmatprep.subr.bf16.mxu0 0
      %4300 = vmatpush2.bf16.msra.mxu0 0
      %4301 = vmatprep.subr.bf16.mxu0 0
      %4302 = vmatpush2.bf16.msra.mxu0 0
      %4303 = vmatprep.subr.bf16.mxu0 0
      %4304 = vmatpush2.bf16.msra.mxu0 0
      %4305 = vmatprep.subr.bf16.mxu0 0
      %4306 = vmatpush2.bf16.msra.mxu0 0
      %4307 = vmatprep.subr.bf16.mxu0 0
      %4308 = vmatpush2.bf16.msra.mxu0 0
      %4309 = vmatprep.subr.bf16.mxu0 0
      %4310 = vmatpush2.bf16.msra.mxu0 0
      %4311 = vmatprep.subr.bf16.mxu0 0
      %4312 = vmatpush2.bf16.msra.mxu0 0
      %4313 = vmatprep.subr.bf16.mxu0 0
      %4314 = vmatpush2.bf16.msra.mxu0 0
      %4315 = vmatprep.mubr.bf16.mxu0 0
      %4316 = vmatmul.mubr.bf16.gmra.mxu0 %v4281
      %v4317 = vpop.f32.mrf.mxu0
      %v4318 = vadd.f32 0.0, %v4317
      %v4319 = vpop.f32.mrf.mxu0
      %v4320 = vadd.f32 0.0, %v4319
      %v4321 = vpop.f32.mrf.mxu0
      %v4322 = vpop.f32.mrf.mxu0
      %4323 = vdwg.mxu0
      %v4324 = vadd.f32 %v4081, %v4318
      %v4325 = vadd.f32 %v4083, %v4320
      %v4326 = vld [vmem:[%s1232] sm:$0x3]
      %4327 = vrot.lane.b32.xlu0 %v4116, 111
      %v4328 = vpop.permute.xlu0 %4327
      %4329 = vrot.lane.b32.xlu0 %v4117, 111
      %v4330 = vpop.permute.xlu0 %4329
      %4331 = vrot.lane.b32.xlu0 %v4118, 111
      %v4332 = vpop.permute.xlu0 %4331
      %4333 = vrot.lane.b32.xlu0 %v4119, 111
      %v4334 = vpop.permute.xlu0 %4333
      %4335 = vrot.lane.b32.xlu0 %v4120, 111
      %v4336 = vpop.permute.xlu0 %4335
      %4337 = vrot.lane.b32.xlu0 %v4121, 111
      %v4338 = vpop.permute.xlu0 %4337
      %v4339 = vsel %vm1246, %v4328, %v4330
      %v4340 = vsel %vm1246, %v4330, %v4332
      %v4341 = vsel %vm1246, %v4334, %v4336
      %v4342 = vsel %vm1246, %v4336, %v4338
      %v4348 = vsel %vm663, %v4326, 0
      %4350 = vmatprep.subr.bf16.mxu0 0
      %4351 = vmatpush1.bf16.msra.mxu0 0
      %4352 = vmatprep.subr.bf16.mxu0 0
      %4353 = vmatpush1.bf16.msra.mxu0 0
      %4354 = vmatprep.subr.bf16.mxu0 0
      %4355 = vmatpush1.bf16.msra.mxu0 0
      %4356 = vmatprep.subr.bf16.mxu0 0
      %4357 = vmatpush1.bf16.msra.mxu0 0
      %4358 = vmatprep.subr.bf16.mxu0 0
      %4359 = vmatpush1.bf16.msra.mxu0 0
      %4360 = vmatprep.subr.bf16.mxu0 0
      %4361 = vmatpush1.bf16.msra.mxu0 0
      %4362 = vmatprep.subr.bf16.mxu0 %v4342
      %4363 = vmatpush1.bf16.msra.mxu0 %v4341
      %4364 = vmatprep.subr.bf16.mxu0 %v4340
      %4365 = vmatpush1.bf16.msra.mxu0 %v4339
      %4366 = vmatprep.subr.bf16.mxu0 0
      %4367 = vmatpush2.bf16.msra.mxu0 0
      %4368 = vmatprep.subr.bf16.mxu0 0
      %4369 = vmatpush2.bf16.msra.mxu0 0
      %4370 = vmatprep.subr.bf16.mxu0 0
      %4371 = vmatpush2.bf16.msra.mxu0 0
      %4372 = vmatprep.subr.bf16.mxu0 0
      %4373 = vmatpush2.bf16.msra.mxu0 0
      %4374 = vmatprep.subr.bf16.mxu0 0
      %4375 = vmatpush2.bf16.msra.mxu0 0
      %4376 = vmatprep.subr.bf16.mxu0 0
      %4377 = vmatpush2.bf16.msra.mxu0 0
      %4378 = vmatprep.subr.bf16.mxu0 0
      %4379 = vmatpush2.bf16.msra.mxu0 0
      %4380 = vmatprep.subr.bf16.mxu0 0
      %4381 = vmatpush2.bf16.msra.mxu0 0
      %4382 = vmatprep.mubr.bf16.mxu0 0
      %4383 = vmatmul.mubr.bf16.gmra.mxu0 %v4348
      %v4384 = vpop.f32.mrf.mxu0
      %v4385 = vadd.f32 0.0, %v4384
      %v4386 = vpop.f32.mrf.mxu0
      %v4387 = vadd.f32 0.0, %v4386
      %v4388 = vpop.f32.mrf.mxu0
      %v4389 = vpop.f32.mrf.mxu0
      %4390 = vdwg.mxu0
      %v4391 = vsel %vm304, %v4385, 0.0
      %v4392 = vsel %vm305, %v4387, 0.0
      %v4393 = vadd.f32 %v4188, %v4391
      %v4394 = vadd.f32 %v4189, %v4392
      %v4395 = vadd.f32 %v4257, %v4324
      %v4396 = vadd.f32 %v4258, %v4325
      %v4397 = vadd.f32 %v4395, %v4393
      %v4398 = vadd.f32 %v4396, %v4394
      %v4399 = vld [vmem:[%s4] sm:$0x7]
      %4401 = vset.pattern.permute.xlu0 0
      %4402 = vperm.xlu0 %4401, %v4399
      %v4403 = vpop.permute.xlu0 %4402
      %v4405 = vadd.f32 %v4397, %v4403
      %v4406 = vadd.f32 %v4398, %v4403
      %v4409 = vcombine.low %v4405, %v4406
      %s4411 = scalar_lea.vmem %s231, 24
      %4412 = vst [vmem:[%s4411] sm:$0x77] %v4409
      %s4413 = smul.u32 4, %s16
      %p4414 = scmp.lt.s32.totalorder %s4413, 7
      %s4415 = scalar_select %p4414, %s4413, 7
      %s4416 = smul.addr %s4415, 2
      %s4417 = smul.addr %s4416, 4
      %s4418 = scalar_lea.vmem %s5, %s4417
      // Predicated region
      $region41: #{tpu_custom_call.1} parent=39 // pred_check
        %p4419 = pneg %p144
      $region42: #{tpu_custom_call.1} parent=39 // pred_check_branch
        %4421 = sbr.rel (%p4419) target = $region44
      $region43: #{tpu_custom_call.1} parent=39 // pred_region
        %s4422 = smul.u32 4, %s16
      $region44: #{tpu_custom_call.1} parent=39 // pred_fallthru
        _
    $region40: #{tpu_custom_call.1} parent=5 // pred_fallthru
      _
    %p4423 = scmp.le.s32.totalorder 2, %s11
    // Predicated region
    $region45: #{tpu_custom_call.1} parent=5 // pred_check
      %p4424 = pneg %p4423
    $region46: #{tpu_custom_call.1} parent=5 // pred_check_branch
      %4426 = sbr.rel (%p4424) target = $region48
    $region47: #{tpu_custom_call.1} parent=5 // pred_region
      %s4427 = ssub.s32 %s11, 2
      // Predicated region
      $region49: #{tpu_custom_call.1} parent=47 // pred_check
        %p4428 = pneg %p150
      $region50: #{tpu_custom_call.1} parent=47 // pred_check_branch
        %4430 = sbr.rel (%p4428) target = $region52
      $region51: #{tpu_custom_call.1} parent=47 // pred_region
        %s4431 = smul.u32 4, %s17
        %p4432 = scmp.lt.s32.totalorder %s4431, 7
        %s4433 = scalar_select %p4432, %s4431, 7
        %s4434 = smul.addr %s4433, 2
        %s4435 = smul.addr %s4434, 4
        %s4436 = scalar_lea.vmem %s5, %s4435
      $region52: #{tpu_custom_call.1} parent=47 // pred_fallthru
        _
    $region48: #{tpu_custom_call.1} parent=5 // pred_fallthru
      _
  $region6: #{tpu_custom_call.1} parent=0 // loop_footer
    %s15 = sadd.s32 1, %s11
  $region7: #{tpu_custom_call.1} parent=0 // loop_footer_branch
    %10 = sbr.rel target = $region3
  $region8: #{tpu_custom_call.1} parent=0 // loop_exit
    _

</llo_original>
